<compile_context>
chip_gen: v6e
topology: v6e:2x2x1
jax: 0.10.0
libtpu: 0.0.40
codegen_flags: <defaults>
</compile_context>

<pallas_src>
import functools

import jax
import jax.numpy as jnp
from jax.experimental import pallas as pl
from jax.experimental.pallas import tpu as pltpu


# ----------------------------- Pallas kernel ------------------------------- #

def _dense_layer_kernel(x_ref, w_ref, b_ref, o_ref, halo_ref, patches_ref,
                        *, H, W, C_in, C_out, B_BLK, K, K_pad):
    # x_ref:       (B_BLK, C_in, H*W)          f32   lane-dense NCHW input
    # w_ref:       (C_out, K_pad)              bf16  weight, K zero-padded
    # b_ref:       (C_out, 1)                  f32   bias
    # o_ref:       (B_BLK, C_in + C_out, H*W)  f32   lane-dense NCHW output
    # halo_ref:    (B_BLK, C_in, H+2, W+2)     f32   VMEM scratch (zero halo)
    # patches_ref: (K_pad, B_BLK*H*W)          f32   VMEM scratch (im2col)
    HW = H * W

    # Zero-fill the halo scratch every step (tiny; the interior is overwritten
    # below, the 1-px border stays 0 => "same" conv zero padding).  Done
    # unconditionally so it is correct even when the grid is sharded across
    # TensorCores ("parallel") and this core never sees program_id(0) == 0.
    halo_ref[...] = jnp.zeros_like(halo_ref)
    if K_pad > K:
        # Padded contraction rows must be zero: the matching weight columns
        # are zero, but uninitialized VMEM could contain NaN/Inf (0*NaN=NaN).
        patches_ref[K:, :] = jnp.zeros((K_pad - K, B_BLK * HW), jnp.float32)

    # ---- im2col straight into the VMEM scratch (no concat temporaries) ----
    for b in range(B_BLK):
        x_b = x_ref[b]                                        # (C_in, HW) f32
        halo_ref[b, :, 1:1 + H, 1:1 + W] = x_b.reshape(C_in, H, W)
        xt = halo_ref[b]                                      # (C_in, H+2, W+2)
        for k, (dy, dx) in enumerate((dy, dx) for dy in range(3)
                                     for dx in range(3)):
            if (dy, dx) == (1, 1):
                view = x_b                       # center tap == lane-dense x
            else:
                view = xt[:, dy:dy + H, dx:dx + W].reshape(C_in, HW)
            patches_ref[k * C_in:(k + 1) * C_in,
                        b * HW:(b + 1) * HW] = view

    # ---- single fat MXU matmul over the whole batch block ------------------
    # (C_out, K_pad) @ (K_pad, B_BLK*HW) -> (C_out, B_BLK*HW), f32 accumulate.
    acc = jnp.dot(w_ref[...], patches_ref[...].astype(jnp.bfloat16),
                  preferred_element_type=jnp.float32)
    y = jnp.maximum(acc + b_ref[...], 0.0)                    # bias+ReLU, f32

    # ---- split stores: passthrough channels, then conv channels ------------
    for b in range(B_BLK):
        o_ref[b, :C_in, :] = x_ref[b]
        o_ref[b, C_in:, :] = y[:, b * HW:(b + 1) * HW].astype(o_ref.dtype)


# ------------------------------ wrapper ------------------------------------ #

def _num_batch_blocks(N):
    """One fat grid step on single-TC chips (v5e/v6e); two parallel steps on
    dual-TensorCore v7x so both cores are used."""
    try:
        kind = jax.devices()[0].device_kind.lower()
    except Exception:
        kind = ""
    if ("v7" in kind or "7x" in kind) and N >= 2 and N % 2 == 0:
        return 2
    return 1


def dense_layer_pallas(x_nchw, w_hwio, b, num_blocks=None):
    """x: (N, Cin, H, W) f32; w: (3,3,Cin,Cout) HWIO; b: (Cout,).
    Returns (N, Cin+Cout, H, W) = concat([x, relu(conv3x3_same(x)+b)], axis=1)."""
    N, C_in, H, W = x_nchw.shape
    C_out = w_hwio.shape[-1]
    HW = H * W
    K = 9 * C_in
    K_pad = ((K + 7) // 8) * 8            # pad contraction dim to sublane tile

    if num_blocks is None:
        num_blocks = _num_batch_blocks(N)
    assert N % num_blocks == 0
    B_BLK = N // num_blocks

    # Lane-dense NCHW input (free reshape for contiguous NCHW).
    x_flat = x_nchw.reshape(N, C_in, HW)

    # (3,3,Cin,Cout) -> (Cout, 9*Cin); row order = (dy, dx, ci), matching the
    # in-kernel patch stacking (tap-outer, channel-inner).  Zero-pad K to
    # K_pad and cast to bf16 for the MXU.
    wt = jnp.transpose(w_hwio, (3, 0, 1, 2)).reshape(C_out, K)
    wt = jnp.pad(wt, ((0, 0), (0, K_pad - K))).astype(jnp.bfloat16)
    b2 = b.reshape(C_out, 1).astype(jnp.float32)

    kernel = functools.partial(_dense_layer_kernel, H=H, W=W, C_in=C_in,
                               C_out=C_out, B_BLK=B_BLK, K=K, K_pad=K_pad)

    flops = 2 * N * HW * K * C_out
    bytes_accessed = (x_flat.size * 4 + wt.size * 2 + b2.size * 4
                      + N * (C_in + C_out) * HW * 4)

    out = pl.pallas_call(
        kernel,
        out_shape=jax.ShapeDtypeStruct((N, C_in + C_out, HW), jnp.float32),
        grid=(num_blocks,),
        in_specs=[
            pl.BlockSpec((B_BLK, C_in, HW), lambda n: (n, 0, 0)),
            pl.BlockSpec((C_out, K_pad), lambda n: (0, 0)),
            pl.BlockSpec((C_out, 1), lambda n: (0, 0)),
        ],
        out_specs=pl.BlockSpec((B_BLK, C_in + C_out, HW), lambda n: (n, 0, 0)),
        scratch_shapes=[
            pltpu.VMEM((B_BLK, C_in, H + 2, W + 2), jnp.float32),
            pltpu.VMEM((K_pad, B_BLK * HW), jnp.float32),
        ],
        compiler_params=pltpu.CompilerParams(
            dimension_semantics=("parallel",),
            vmem_limit_bytes=32 * 1024 * 1024,
        ),
        cost_estimate=pl.CostEstimate(flops=flops, transcendentals=0,
                                      bytes_accessed=bytes_accessed),
    )(x_flat, wt, b2)

    return out.reshape(N, C_in + C_out, H, W)


# --------------------------- pure-JAX reference ----------------------------- #

def dense_layer_ref(x, w, b):
    y = jax.lax.conv_general_dilated(
        x, w, window_strides=(1, 1), padding="SAME",
        dimension_numbers=("NCHW", "HWIO", "NCHW"),
        precision=jax.lax.Precision.HIGHEST)
    y = jax.nn.relu(y + b[None, :, None, None])
    return jnp.concatenate([x, y], axis=1)


# ------------------------------------ main ----------------------------------- #

if __name__ == "__main__":
    N, C_in, C_out, H, W = 2, 4, 32, 16, 16
    key = jax.random.PRNGKey(0)
    kx, kw, kb = jax.random.split(key, 3)
    x = jax.random.normal(kx, (N, C_in, H, W), jnp.float32)
    w = jax.random.normal(kw, (3, 3, C_in, C_out), jnp.float32) / jnp.sqrt(9.0 * C_in)
    b = 0.01 * jax.random.normal(kb, (C_out,), jnp.float32)

    fwd = jax.jit(lambda inp: dense_layer_pallas(inp, w, b))
    out = jax.block_until_ready(fwd(x))
    assert out.shape == (N, C_in + C_out, H, W), out.shape

    ref = jax.block_until_ready(dense_layer_ref(x, w, b))
    err = float(jnp.max(jnp.abs(out - ref)))
    assert err < 5e-2, f"mismatch vs reference: {err}"  # bf16 MXU operands vs f32 ref
    print("KERNEL_OK")
</pallas_src>

<mosaic_0001>
module attributes {stable_mosaic.version = 11 : i64} {
  func.func @_dense_layer_kernel(%arg0: i32, %arg1: memref<2x4x256xf32, #tpu.memory_space<vmem>>, %arg2: memref<32x40xbf16, #tpu.memory_space<vmem>>, %arg3: memref<32x1xf32, #tpu.memory_space<vmem>>, %arg4: memref<2x36x256xf32, #tpu.memory_space<vmem>>, %arg5: memref<2x4x18x18xf32, #tpu.memory_space<vmem>>, %arg6: memref<40x512xf32, #tpu.memory_space<vmem>>) attributes {dimension_semantics = [#tpu.dimension_semantics<parallel>], iteration_bounds = array<i64: 1>, scalar_prefetch = 0 : i64, scratch_operands = 2 : i64, tpu.core_type = #tpu.core_type<tc>, window_params = [{transform_indices = @transform_0, window_bounds = array<i64: 2, 4, 256>}, {pipeline_mode = #tpu.pipeline_mode<synchronous>, transform_indices = @transform_1, window_bounds = array<i64: 32, 40>}, {pipeline_mode = #tpu.pipeline_mode<synchronous>, transform_indices = @transform_2, window_bounds = array<i64: 32, 1>}, {transform_indices = @transform_3, window_bounds = array<i64: 2, 36, 256>}]} {
    %cst = arith.constant 0.000000e+00 : f32
    %0 = vector.broadcast %cst : f32 to vector<2x4x18x18xf32>
    %c0 = arith.constant 0 : index
    %c0_0 = arith.constant 0 : index
    %c0_1 = arith.constant 0 : index
    %c0_2 = arith.constant 0 : index
    %1 = vector.load %arg5[%c0, %c0_0, %c0_1, %c0_2] : memref<2x4x18x18xf32, #tpu.memory_space<vmem>>, vector<2x4x18x18xf32>
    tpu.vector_store %arg5[%c0, %c0_0, %c0_1, %c0_2], %0 {strides = array<i32>} : memref<2x4x18x18xf32, #tpu.memory_space<vmem>>, vector<2x4x18x18xf32>,
    %cst_3 = arith.constant 0.000000e+00 : f32
    %2 = vector.broadcast %cst_3 : f32 to vector<4x512xf32>
    %c36 = arith.constant 36 : index
    %c0_4 = arith.constant 0 : index
    %3 = vector.load %arg6[%c36, %c0_4] : memref<40x512xf32, #tpu.memory_space<vmem>>, vector<4x512xf32>
    tpu.vector_store %arg6[%c36, %c0_4], %2 {strides = array<i32>} : memref<40x512xf32, #tpu.memory_space<vmem>>, vector<4x512xf32>,
    %c0_5 = arith.constant 0 : index
    %c0_6 = arith.constant 0 : index
    %c0_7 = arith.constant 0 : index
    %4 = vector.load %arg1[%c0_5, %c0_6, %c0_7] : memref<2x4x256xf32, #tpu.memory_space<vmem>>, vector<1x4x256xf32>
    %5 = vector.shape_cast %4 : vector<1x4x256xf32> to vector<4x256xf32>
    %6 = vector.shape_cast %5 : vector<4x256xf32> to vector<4x16x16xf32>
    %c0_8 = arith.constant 0 : index
    %c0_9 = arith.constant 0 : index
    %c1 = arith.constant 1 : index
    %c1_10 = arith.constant 1 : index
    %7 = vector.load %arg5[%c0_8, %c0_9, %c1, %c1_10] : memref<2x4x18x18xf32, #tpu.memory_space<vmem>>, vector<1x4x16x16xf32>
    %8 = vector.shape_cast %7 : vector<1x4x16x16xf32> to vector<4x16x16xf32>
    %9 = vector.shape_cast %6 : vector<4x16x16xf32> to vector<1x4x16x16xf32>
    tpu.vector_store %arg5[%c0_8, %c0_9, %c1, %c1_10], %9 {strides = array<i32>} : memref<2x4x18x18xf32, #tpu.memory_space<vmem>>, vector<1x4x16x16xf32>,
    %c0_11 = arith.constant 0 : index
    %c0_12 = arith.constant 0 : index
    %c0_13 = arith.constant 0 : index
    %c0_14 = arith.constant 0 : index
    %10 = vector.load %arg5[%c0_11, %c0_12, %c0_13, %c0_14] : memref<2x4x18x18xf32, #tpu.memory_space<vmem>>, vector<1x4x18x18xf32>
    %11 = vector.shape_cast %10 : vector<1x4x18x18xf32> to vector<4x18x18xf32>
    %12 = vector.extract_strided_slice %11 {offsets = [0, 0, 0], sizes = [4, 16, 16], strides = [1, 1, 1]} : vector<4x18x18xf32> to vector<4x16x16xf32>
    %13 = vector.shape_cast %12 : vector<4x16x16xf32> to vector<4x256xf32>
    %c0_15 = arith.constant 0 : index
    %c0_16 = arith.constant 0 : index
    %14 = vector.load %arg6[%c0_15, %c0_16] : memref<40x512xf32, #tpu.memory_space<vmem>>, vector<4x256xf32>
    tpu.vector_store %arg6[%c0_15, %c0_16], %13 {strides = array<i32>} : memref<40x512xf32, #tpu.memory_space<vmem>>, vector<4x256xf32>,
    %15 = vector.extract_strided_slice %11 {offsets = [0, 0, 1], sizes = [4, 16, 16], strides = [1, 1, 1]} : vector<4x18x18xf32> to vector<4x16x16xf32>
    %16 = vector.shape_cast %15 : vector<4x16x16xf32> to vector<4x256xf32>
    %c4 = arith.constant 4 : index
    %c0_17 = arith.constant 0 : index
    %17 = vector.load %arg6[%c4, %c0_17] : memref<40x512xf32, #tpu.memory_space<vmem>>, vector<4x256xf32>
    tpu.vector_store %arg6[%c4, %c0_17], %16 {strides = array<i32>} : memref<40x512xf32, #tpu.memory_space<vmem>>, vector<4x256xf32>,
    %18 = vector.extract_strided_slice %11 {offsets = [0, 0, 2], sizes = [4, 16, 16], strides = [1, 1, 1]} : vector<4x18x18xf32> to vector<4x16x16xf32>
    %19 = vector.shape_cast %18 : vector<4x16x16xf32> to vector<4x256xf32>
    %c8 = arith.constant 8 : index
    %c0_18 = arith.constant 0 : index
    %20 = vector.load %arg6[%c8, %c0_18] : memref<40x512xf32, #tpu.memory_space<vmem>>, vector<4x256xf32>
    tpu.vector_store %arg6[%c8, %c0_18], %19 {strides = array<i32>} : memref<40x512xf32, #tpu.memory_space<vmem>>, vector<4x256xf32>,
    %21 = vector.extract_strided_slice %11 {offsets = [0, 1, 0], sizes = [4, 16, 16], strides = [1, 1, 1]} : vector<4x18x18xf32> to vector<4x16x16xf32>
    %22 = vector.shape_cast %21 : vector<4x16x16xf32> to vector<4x256xf32>
    %c12 = arith.constant 12 : index
    %c0_19 = arith.constant 0 : index
    %23 = vector.load %arg6[%c12, %c0_19] : memref<40x512xf32, #tpu.memory_space<vmem>>, vector<4x256xf32>
    tpu.vector_store %arg6[%c12, %c0_19], %22 {strides = array<i32>} : memref<40x512xf32, #tpu.memory_space<vmem>>, vector<4x256xf32>,
    %c16 = arith.constant 16 : index
    %c0_20 = arith.constant 0 : index
    %24 = vector.load %arg6[%c16, %c0_20] : memref<40x512xf32, #tpu.memory_space<vmem>>, vector<4x256xf32>
    tpu.vector_store %arg6[%c16, %c0_20], %5 {strides = array<i32>} : memref<40x512xf32, #tpu.memory_space<vmem>>, vector<4x256xf32>,
    %25 = vector.extract_strided_slice %11 {offsets = [0, 1, 2], sizes = [4, 16, 16], strides = [1, 1, 1]} : vector<4x18x18xf32> to vector<4x16x16xf32>
    %26 = vector.shape_cast %25 : vector<4x16x16xf32> to vector<4x256xf32>
    %c20 = arith.constant 20 : index
    %c0_21 = arith.constant 0 : index
    %27 = vector.load %arg6[%c20, %c0_21] : memref<40x512xf32, #tpu.memory_space<vmem>>, vector<4x256xf32>
    tpu.vector_store %arg6[%c20, %c0_21], %26 {strides = array<i32>} : memref<40x512xf32, #tpu.memory_space<vmem>>, vector<4x256xf32>,
    %28 = vector.extract_strided_slice %11 {offsets = [0, 2, 0], sizes = [4, 16, 16], strides = [1, 1, 1]} : vector<4x18x18xf32> to vector<4x16x16xf32>
    %29 = vector.shape_cast %28 : vector<4x16x16xf32> to vector<4x256xf32>
    %c24 = arith.constant 24 : index
    %c0_22 = arith.constant 0 : index
    %30 = vector.load %arg6[%c24, %c0_22] : memref<40x512xf32, #tpu.memory_space<vmem>>, vector<4x256xf32>
    tpu.vector_store %arg6[%c24, %c0_22], %29 {strides = array<i32>} : memref<40x512xf32, #tpu.memory_space<vmem>>, vector<4x256xf32>,
    %31 = vector.extract_strided_slice %11 {offsets = [0, 2, 1], sizes = [4, 16, 16], strides = [1, 1, 1]} : vector<4x18x18xf32> to vector<4x16x16xf32>
    %32 = vector.shape_cast %31 : vector<4x16x16xf32> to vector<4x256xf32>
    %c28 = arith.constant 28 : index
    %c0_23 = arith.constant 0 : index
    %33 = vector.load %arg6[%c28, %c0_23] : memref<40x512xf32, #tpu.memory_space<vmem>>, vector<4x256xf32>
    tpu.vector_store %arg6[%c28, %c0_23], %32 {strides = array<i32>} : memref<40x512xf32, #tpu.memory_space<vmem>>, vector<4x256xf32>,
    %34 = vector.extract_strided_slice %11 {offsets = [0, 2, 2], sizes = [4, 16, 16], strides = [1, 1, 1]} : vector<4x18x18xf32> to vector<4x16x16xf32>
    %35 = vector.shape_cast %34 : vector<4x16x16xf32> to vector<4x256xf32>
    %c32 = arith.constant 32 : index
    %c0_24 = arith.constant 0 : index
    %36 = vector.load %arg6[%c32, %c0_24] : memref<40x512xf32, #tpu.memory_space<vmem>>, vector<4x256xf32>
    tpu.vector_store %arg6[%c32, %c0_24], %35 {strides = array<i32>} : memref<40x512xf32, #tpu.memory_space<vmem>>, vector<4x256xf32>,
    %c1_25 = arith.constant 1 : index
    %c0_26 = arith.constant 0 : index
    %c0_27 = arith.constant 0 : index
    %37 = vector.load %arg1[%c1_25, %c0_26, %c0_27] : memref<2x4x256xf32, #tpu.memory_space<vmem>>, vector<1x4x256xf32>
    %38 = vector.shape_cast %37 : vector<1x4x256xf32> to vector<4x256xf32>
    %39 = vector.shape_cast %38 : vector<4x256xf32> to vector<4x16x16xf32>
    %c1_28 = arith.constant 1 : index
    %c0_29 = arith.constant 0 : index
    %c1_30 = arith.constant 1 : index
    %c1_31 = arith.constant 1 : index
    %40 = vector.load %arg5[%c1_28, %c0_29, %c1_30, %c1_31] : memref<2x4x18x18xf32, #tpu.memory_space<vmem>>, vector<1x4x16x16xf32>
    %41 = vector.shape_cast %40 : vector<1x4x16x16xf32> to vector<4x16x16xf32>
    %42 = vector.shape_cast %39 : vector<4x16x16xf32> to vector<1x4x16x16xf32>
    tpu.vector_store %arg5[%c1_28, %c0_29, %c1_30, %c1_31], %42 {strides = array<i32>} : memref<2x4x18x18xf32, #tpu.memory_space<vmem>>, vector<1x4x16x16xf32>,
    %c1_32 = arith.constant 1 : index
    %c0_33 = arith.constant 0 : index
    %c0_34 = arith.constant 0 : index
    %c0_35 = arith.constant 0 : index
    %43 = vector.load %arg5[%c1_32, %c0_33, %c0_34, %c0_35] : memref<2x4x18x18xf32, #tpu.memory_space<vmem>>, vector<1x4x18x18xf32>
    %44 = vector.shape_cast %43 : vector<1x4x18x18xf32> to vector<4x18x18xf32>
    %45 = vector.extract_strided_slice %44 {offsets = [0, 0, 0], sizes = [4, 16, 16], strides = [1, 1, 1]} : vector<4x18x18xf32> to vector<4x16x16xf32>
    %46 = vector.shape_cast %45 : vector<4x16x16xf32> to vector<4x256xf32>
    %c0_36 = arith.constant 0 : index
    %c256 = arith.constant 256 : index
    %47 = vector.load %arg6[%c0_36, %c256] : memref<40x512xf32, #tpu.memory_space<vmem>>, vector<4x256xf32>
    tpu.vector_store %arg6[%c0_36, %c256], %46 {strides = array<i32>} : memref<40x512xf32, #tpu.memory_space<vmem>>, vector<4x256xf32>,
    %48 = vector.extract_strided_slice %44 {offsets = [0, 0, 1], sizes = [4, 16, 16], strides = [1, 1, 1]} : vector<4x18x18xf32> to vector<4x16x16xf32>
    %49 = vector.shape_cast %48 : vector<4x16x16xf32> to vector<4x256xf32>
    %c4_37 = arith.constant 4 : index
    %c256_38 = arith.constant 256 : index
    %50 = vector.load %arg6[%c4_37, %c256_38] : memref<40x512xf32, #tpu.memory_space<vmem>>, vector<4x256xf32>
    tpu.vector_store %arg6[%c4_37, %c256_38], %49 {strides = array<i32>} : memref<40x512xf32, #tpu.memory_space<vmem>>, vector<4x256xf32>,
    %51 = vector.extract_strided_slice %44 {offsets = [0, 0, 2], sizes = [4, 16, 16], strides = [1, 1, 1]} : vector<4x18x18xf32> to vector<4x16x16xf32>
    %52 = vector.shape_cast %51 : vector<4x16x16xf32> to vector<4x256xf32>
    %c8_39 = arith.constant 8 : index
    %c256_40 = arith.constant 256 : index
    %53 = vector.load %arg6[%c8_39, %c256_40] : memref<40x512xf32, #tpu.memory_space<vmem>>, vector<4x256xf32>
    tpu.vector_store %arg6[%c8_39, %c256_40], %52 {strides = array<i32>} : memref<40x512xf32, #tpu.memory_space<vmem>>, vector<4x256xf32>,
    %54 = vector.extract_strided_slice %44 {offsets = [0, 1, 0], sizes = [4, 16, 16], strides = [1, 1, 1]} : vector<4x18x18xf32> to vector<4x16x16xf32>
    %55 = vector.shape_cast %54 : vector<4x16x16xf32> to vector<4x256xf32>
    %c12_41 = arith.constant 12 : index
    %c256_42 = arith.constant 256 : index
    %56 = vector.load %arg6[%c12_41, %c256_42] : memref<40x512xf32, #tpu.memory_space<vmem>>, vector<4x256xf32>
    tpu.vector_store %arg6[%c12_41, %c256_42], %55 {strides = array<i32>} : memref<40x512xf32, #tpu.memory_space<vmem>>, vector<4x256xf32>,
    %c16_43 = arith.constant 16 : index
    %c256_44 = arith.constant 256 : index
    %57 = vector.load %arg6[%c16_43, %c256_44] : memref<40x512xf32, #tpu.memory_space<vmem>>, vector<4x256xf32>
    tpu.vector_store %arg6[%c16_43, %c256_44], %38 {strides = array<i32>} : memref<40x512xf32, #tpu.memory_space<vmem>>, vector<4x256xf32>,
    %58 = vector.extract_strided_slice %44 {offsets = [0, 1, 2], sizes = [4, 16, 16], strides = [1, 1, 1]} : vector<4x18x18xf32> to vector<4x16x16xf32>
    %59 = vector.shape_cast %58 : vector<4x16x16xf32> to vector<4x256xf32>
    %c20_45 = arith.constant 20 : index
    %c256_46 = arith.constant 256 : index
    %60 = vector.load %arg6[%c20_45, %c256_46] : memref<40x512xf32, #tpu.memory_space<vmem>>, vector<4x256xf32>
    tpu.vector_store %arg6[%c20_45, %c256_46], %59 {strides = array<i32>} : memref<40x512xf32, #tpu.memory_space<vmem>>, vector<4x256xf32>,
    %61 = vector.extract_strided_slice %44 {offsets = [0, 2, 0], sizes = [4, 16, 16], strides = [1, 1, 1]} : vector<4x18x18xf32> to vector<4x16x16xf32>
    %62 = vector.shape_cast %61 : vector<4x16x16xf32> to vector<4x256xf32>
    %c24_47 = arith.constant 24 : index
    %c256_48 = arith.constant 256 : index
    %63 = vector.load %arg6[%c24_47, %c256_48] : memref<40x512xf32, #tpu.memory_space<vmem>>, vector<4x256xf32>
    tpu.vector_store %arg6[%c24_47, %c256_48], %62 {strides = array<i32>} : memref<40x512xf32, #tpu.memory_space<vmem>>, vector<4x256xf32>,
    %64 = vector.extract_strided_slice %44 {offsets = [0, 2, 1], sizes = [4, 16, 16], strides = [1, 1, 1]} : vector<4x18x18xf32> to vector<4x16x16xf32>
    %65 = vector.shape_cast %64 : vector<4x16x16xf32> to vector<4x256xf32>
    %c28_49 = arith.constant 28 : index
    %c256_50 = arith.constant 256 : index
    %66 = vector.load %arg6[%c28_49, %c256_50] : memref<40x512xf32, #tpu.memory_space<vmem>>, vector<4x256xf32>
    tpu.vector_store %arg6[%c28_49, %c256_50], %65 {strides = array<i32>} : memref<40x512xf32, #tpu.memory_space<vmem>>, vector<4x256xf32>,
    %67 = vector.extract_strided_slice %44 {offsets = [0, 2, 2], sizes = [4, 16, 16], strides = [1, 1, 1]} : vector<4x18x18xf32> to vector<4x16x16xf32>
    %68 = vector.shape_cast %67 : vector<4x16x16xf32> to vector<4x256xf32>
    %c32_51 = arith.constant 32 : index
    %c256_52 = arith.constant 256 : index
    %69 = vector.load %arg6[%c32_51, %c256_52] : memref<40x512xf32, #tpu.memory_space<vmem>>, vector<4x256xf32>
    tpu.vector_store %arg6[%c32_51, %c256_52], %68 {strides = array<i32>} : memref<40x512xf32, #tpu.memory_space<vmem>>, vector<4x256xf32>,
    %c0_53 = arith.constant 0 : index
    %c0_54 = arith.constant 0 : index
    %70 = vector.load %arg2[%c0_53, %c0_54] : memref<32x40xbf16, #tpu.memory_space<vmem>>, vector<32x40xbf16>
    %c0_55 = arith.constant 0 : index
    %c0_56 = arith.constant 0 : index
    %71 = vector.load %arg6[%c0_55, %c0_56] : memref<40x512xf32, #tpu.memory_space<vmem>>, vector<40x512xf32>
    %72 = arith.truncf %71 : vector<40x512xf32> to vector<40x512xbf16>
    %cst_57 = arith.constant dense<0.000000e+00> : vector<32x512xf32>
    %73 = tpu.matmul %70, %72, %cst_57 {dimension_numbers = #tpu.dot_dimension_numbers<[1], [0], [0], [1], [0, 0, 1, 1], [], []>} : vector<32x40xbf16>, vector<40x512xbf16>, vector<32x512xf32> -> vector<32x512xf32>
    %c0_58 = arith.constant 0 : index
    %c0_59 = arith.constant 0 : index
    %74 = vector.load %arg3[%c0_58, %c0_59] : memref<32x1xf32, #tpu.memory_space<vmem>>, vector<32x1xf32>
    %75 = vector.broadcast %74 : vector<32x1xf32> to vector<32x512xf32>
    %76 = arith.addf %73, %75 : vector<32x512xf32>
    %cst_60 = arith.constant 0.000000e+00 : f32
    %77 = vector.broadcast %cst_60 : f32 to vector<32x512xf32>
    %78 = arith.maximumf %76, %77 : vector<32x512xf32>
    %c0_61 = arith.constant 0 : index
    %c0_62 = arith.constant 0 : index
    %c0_63 = arith.constant 0 : index
    %79 = vector.load %arg1[%c0_61, %c0_62, %c0_63] : memref<2x4x256xf32, #tpu.memory_space<vmem>>, vector<1x4x256xf32>
    %80 = vector.shape_cast %79 : vector<1x4x256xf32> to vector<4x256xf32>
    %c0_64 = arith.constant 0 : index
    %c0_65 = arith.constant 0 : index
    %c0_66 = arith.constant 0 : index
    %81 = vector.load %arg4[%c0_64, %c0_65, %c0_66] : memref<2x36x256xf32, #tpu.memory_space<vmem>>, vector<1x4x256xf32>
    %82 = vector.shape_cast %81 : vector<1x4x256xf32> to vector<4x256xf32>
    %83 = vector.shape_cast %80 : vector<4x256xf32> to vector<1x4x256xf32>
    tpu.vector_store %arg4[%c0_64, %c0_65, %c0_66], %83 {strides = array<i32>} : memref<2x36x256xf32, #tpu.memory_space<vmem>>, vector<1x4x256xf32>,
    %84 = vector.extract_strided_slice %78 {offsets = [0, 0], sizes = [32, 256], strides = [1, 1]} : vector<32x512xf32> to vector<32x256xf32>
    %c0_67 = arith.constant 0 : index
    %c4_68 = arith.constant 4 : index
    %c0_69 = arith.constant 0 : index
    %85 = vector.load %arg4[%c0_67, %c4_68, %c0_69] : memref<2x36x256xf32, #tpu.memory_space<vmem>>, vector<1x32x256xf32>
    %86 = vector.shape_cast %85 : vector<1x32x256xf32> to vector<32x256xf32>
    %87 = vector.shape_cast %84 : vector<32x256xf32> to vector<1x32x256xf32>
    tpu.vector_store %arg4[%c0_67, %c4_68, %c0_69], %87 {strides = array<i32>} : memref<2x36x256xf32, #tpu.memory_space<vmem>>, vector<1x32x256xf32>,
    %c1_70 = arith.constant 1 : index
    %c0_71 = arith.constant 0 : index
    %c0_72 = arith.constant 0 : index
    %88 = vector.load %arg1[%c1_70, %c0_71, %c0_72] : memref<2x4x256xf32, #tpu.memory_space<vmem>>, vector<1x4x256xf32>
    %89 = vector.shape_cast %88 : vector<1x4x256xf32> to vector<4x256xf32>
    %c1_73 = arith.constant 1 : index
    %c0_74 = arith.constant 0 : index
    %c0_75 = arith.constant 0 : index
    %90 = vector.load %arg4[%c1_73, %c0_74, %c0_75] : memref<2x36x256xf32, #tpu.memory_space<vmem>>, vector<1x4x256xf32>
    %91 = vector.shape_cast %90 : vector<1x4x256xf32> to vector<4x256xf32>
    %92 = vector.shape_cast %89 : vector<4x256xf32> to vector<1x4x256xf32>
    tpu.vector_store %arg4[%c1_73, %c0_74, %c0_75], %92 {strides = array<i32>} : memref<2x36x256xf32, #tpu.memory_space<vmem>>, vector<1x4x256xf32>,
    %93 = vector.extract_strided_slice %78 {offsets = [0, 256], sizes = [32, 256], strides = [1, 1]} : vector<32x512xf32> to vector<32x256xf32>
    %c1_76 = arith.constant 1 : index
    %c4_77 = arith.constant 4 : index
    %c0_78 = arith.constant 0 : index
    %94 = vector.load %arg4[%c1_76, %c4_77, %c0_78] : memref<2x36x256xf32, #tpu.memory_space<vmem>>, vector<1x32x256xf32>
    %95 = vector.shape_cast %94 : vector<1x32x256xf32> to vector<32x256xf32>
    %96 = vector.shape_cast %93 : vector<32x256xf32> to vector<1x32x256xf32>
    tpu.vector_store %arg4[%c1_76, %c4_77, %c0_78], %96 {strides = array<i32>} : memref<2x36x256xf32, #tpu.memory_space<vmem>>, vector<1x32x256xf32>,
    return
  }
  func.func @transform_0(%arg0: i32) -> (i32, i32, i32) {
    %c0_i32 = arith.constant 0 : i32
    %c0_i32_0 = arith.constant 0 : i32
    %c0_i32_1 = arith.constant 0 : i32
    return %arg0, %c0_i32, %c0_i32_0 : i32, i32, i32
  }
  func.func @transform_1(%arg0: i32) -> (i32, i32) {
    %c0_i32 = arith.constant 0 : i32
    %c0_i32_0 = arith.constant 0 : i32
    %c0_i32_1 = arith.constant 0 : i32
    return %c0_i32, %c0_i32_0 : i32, i32
  }
  func.func @transform_2(%arg0: i32) -> (i32, i32) {
    %c0_i32 = arith.constant 0 : i32
    %c0_i32_0 = arith.constant 0 : i32
    %c0_i32_1 = arith.constant 0 : i32
    return %c0_i32, %c0_i32_0 : i32, i32
  }
  func.func @transform_3(%arg0: i32) -> (i32, i32, i32) {
    %c0_i32 = arith.constant 0 : i32
    %c0_i32_0 = arith.constant 0 : i32
    %c0_i32_1 = arith.constant 0 : i32
    return %arg0, %c0_i32, %c0_i32_0 : i32, i32, i32
  }
}

</mosaic_0001>

<llo_original>
// kernel: _lambda_.1
$region0: #{_lambda_.1}
  #allocation0 [shape = 'u32[]', space=smem, size = 0x4, offset = 0x4, fixed_abs, tag = 'smem constant byte address 0x4 - core index']
  #allocation1 [shape = 'u32[144,128]{1,0:T(1,128)}', space=vmem, size = 0x12000, scoped, tag = 'internal scratch']
  #allocation2 [shape = 'f32[2,4,18,18]{3,2,1,0:T(8,128)}', space=vmem, size = 0x18000, scoped, tag = 'scratch operand']
  #allocation3 [shape = 'f32[40,512]{1,0:T(8,128)}', space=vmem, size = 0x14000, scoped, tag = 'scratch operand']
  %s0 = inlined_call_operand.vmem [shape: f32[2,4,256], index: 0, kind: input, shape index: {}]
  %s1 = inlined_call_operand.vmem [shape: bf16[32,40], index: 1, kind: input, shape index: {}]
  %s2 = inlined_call_operand.vmem [shape: f32[32,1], index: 2, kind: input, shape index: {}]
  %s3 = inlined_call_operand.vmem [shape: f32[2,36,256], index: 3, kind: output, shape index: {}]
  %s4 = sld [smem:[#allocation0]]
  $region22: #{_lambda_.1} parent=0
    _
  %s6 = ssub.s32 1, %s4
  %s7 = scalar_select 0, %s6, %s4
  // Predicated region
  $region2: #{_lambda_.1} parent=0 // pred_check
    _
  $region3: #{_lambda_.1} parent=0 // pred_check_branch
    %9 = sbr.rel (0) target = $region5
  $region4: #{_lambda_.1} parent=0 // pred_region
    _
  $region5: #{_lambda_.1} parent=0 // pred_fallthru
    _
  // Predicated region
  $region6: #{_lambda_.1} parent=0 // pred_check
    _
  $region7: #{_lambda_.1} parent=0 // pred_check_branch
    %11 = sbr.rel (0) target = $region9
  $region8: #{_lambda_.1} parent=0 // pred_region
    _
  $region9: #{_lambda_.1} parent=0 // pred_fallthru
    _
  // Predicated region
  $region10: #{_lambda_.1} parent=0 // pred_check
    _
  $region11: #{_lambda_.1} parent=0 // pred_check_branch
    %13 = sbr.rel (0) target = $region13
  $region12: #{_lambda_.1} parent=0 // pred_region
    _
  $region13: #{_lambda_.1} parent=0 // pred_fallthru
    _
  %vm15 = vcmask 146432
  %16 = vst.msk [vmem:[#allocation2] sm:$0xff] %vm15, 0.0
  %17 = vst.msk [vmem:[#allocation2 + $0x8] sm:$0xff] %vm15, 0.0
  %vm18 = vcmask 140288
  %19 = vst.msk [vmem:[#allocation2 + $0x10] sm:$0x3] %vm18, 0.0
  %20 = vst.msk [vmem:[#allocation2 + $0x18] sm:$0xff] %vm15, 0.0
  %21 = vst.msk [vmem:[#allocation2 + $0x20] sm:$0xff] %vm15, 0.0
  %22 = vst.msk [vmem:[#allocation2 + $0x28] sm:$0x3] %vm18, 0.0
  %23 = vst.msk [vmem:[#allocation2 + $0x30] sm:$0xff] %vm15, 0.0
  %24 = vst.msk [vmem:[#allocation2 + $0x38] sm:$0xff] %vm15, 0.0
  %25 = vst.msk [vmem:[#allocation2 + $0x40] sm:$0x3] %vm18, 0.0
  %26 = vst.msk [vmem:[#allocation2 + $0x48] sm:$0xff] %vm15, 0.0
  %27 = vst.msk [vmem:[#allocation2 + $0x50] sm:$0xff] %vm15, 0.0
  %28 = vst.msk [vmem:[#allocation2 + $0x58] sm:$0x3] %vm18, 0.0
  %29 = vst.msk [vmem:[#allocation2 + $0x60] sm:$0xff] %vm15, 0.0
  %30 = vst.msk [vmem:[#allocation2 + $0x68] sm:$0xff] %vm15, 0.0
  %31 = vst.msk [vmem:[#allocation2 + $0x70] sm:$0x3] %vm18, 0.0
  %32 = vst.msk [vmem:[#allocation2 + $0x78] sm:$0xff] %vm15, 0.0
  %33 = vst.msk [vmem:[#allocation2 + $0x80] sm:$0xff] %vm15, 0.0
  %34 = vst.msk [vmem:[#allocation2 + $0x88] sm:$0x3] %vm18, 0.0
  %35 = vst.msk [vmem:[#allocation2 + $0x90] sm:$0xff] %vm15, 0.0
  %36 = vst.msk [vmem:[#allocation2 + $0x98] sm:$0xff] %vm15, 0.0
  %37 = vst.msk [vmem:[#allocation2 + $0xa0] sm:$0x3] %vm18, 0.0
  %38 = vst.msk [vmem:[#allocation2 + $0xa8] sm:$0xff] %vm15, 0.0
  %39 = vst.msk [vmem:[#allocation2 + $0xb0] sm:$0xff] %vm15, 0.0
  %40 = vst.msk [vmem:[#allocation2 + $0xb8] sm:$0x3] %vm18, 0.0
  %41 = vst [vmem:[#allocation3 + $0x80] sm:$0xf0] 0.0
  %42 = vst [vmem:[#allocation3 + $0x88] sm:$0xf0] 0.0
  %43 = vst [vmem:[#allocation3 + $0x90] sm:$0xf0] 0.0
  %44 = vst [vmem:[#allocation3 + $0x98] sm:$0xf0] 0.0
  %v45 = vld [vmem:[%s0] sm:$0xff]
  %v47 = vrot.slane %v45, 4
  %49 = vrot.lane.b32.xlu0 %v45, 112
  %v50 = vpop.permute.xlu0 %49
  %v51 = vrot.slane %v50, 4
  %53 = vrot.lane.b32.xlu0 %v45, 96
  %v54 = vpop.permute.xlu0 %53
  %v55 = vrot.slane %v54, 4
  %57 = vrot.lane.b32.xlu0 %v45, 80
  %v58 = vpop.permute.xlu0 %57
  %v59 = vrot.slane %v58, 4
  %61 = vrot.lane.b32.xlu0 %v45, 64
  %v62 = vpop.permute.xlu0 %61
  %v63 = vrot.slane %v62, 4
  %65 = vrot.lane.b32.xlu0 %v45, 48
  %v66 = vpop.permute.xlu0 %65
  %v67 = vrot.slane %v66, 4
  %69 = vrot.lane.b32.xlu0 %v45, 32
  %v70 = vpop.permute.xlu0 %69
  %v71 = vrot.slane %v70, 4
  %73 = vrot.lane.b32.xlu0 %v45, 16
  %v74 = vpop.permute.xlu0 %73
  %v75 = vrot.slane %v74, 4
  %v84 = vcombine.low %v45, %v54
  %v86 = vunpack.c.l.s4 1983009808
  %v87 = vunpack.c.0.s8 %v86
  %v88 = vlaneseq
  %v89 = vshrl.u32 %v88, 7
  %v90 = vsub.s32 %v87, %v89
  %v91 = vrot.slane %v84, %v90
  %v92 = vcombine.low %v50, %v58
  %v94 = vunpack.c.l.s4 1983009808
  %v95 = vunpack.c.0.s8 %v94
  %v96 = vlaneseq
  %v97 = vshrl.u32 %v96, 7
  %v98 = vsub.s32 %v95, %v97
  %v99 = vrot.slane %v92, %v98
  %v100 = vcombine.low %v91, %v99
  %v101 = vcombine.high %v91, %v99
  %v103 = vunpack.c.l.s4 1934713408
  %v104 = vunpack.c.0.s8 %v103
  %v105 = vlaneseq
  %v106 = vshrl.u32 %v105, 7
  %v107 = vsub.s32 %v104, %v106
  %v108 = vrot.slane %v100, %v107
  %v110 = vunpack.c.l.s4 1934713408
  %v111 = vunpack.c.0.s8 %v110
  %v112 = vlaneseq
  %v113 = vshrl.u32 %v112, 7
  %v114 = vsub.s32 %v111, %v113
  %v115 = vrot.slane %v101, %v114
  %v116 = vcombine.high %v108, 0.0
  %v117 = vcombine.high %v115, 0.0
  %v118 = vcombine.low %v62, %v70
  %v120 = vunpack.c.l.s4 1983009808
  %v121 = vunpack.c.0.s8 %v120
  %v122 = vlaneseq
  %v123 = vshrl.u32 %v122, 7
  %v124 = vsub.s32 %v121, %v123
  %v125 = vrot.slane %v118, %v124
  %v126 = vcombine.low %v66, %v74
  %v128 = vunpack.c.l.s4 1983009808
  %v129 = vunpack.c.0.s8 %v128
  %v130 = vlaneseq
  %v131 = vshrl.u32 %v130, 7
  %v132 = vsub.s32 %v129, %v131
  %v133 = vrot.slane %v126, %v132
  %v134 = vcombine.low %v125, %v133
  %v135 = vcombine.high %v125, %v133
  %v137 = vunpack.c.l.s4 1934713408
  %v138 = vunpack.c.0.s8 %v137
  %v139 = vlaneseq
  %v140 = vshrl.u32 %v139, 7
  %v141 = vsub.s32 %v138, %v140
  %v142 = vrot.slane %v134, %v141
  %v144 = vunpack.c.l.s4 1934713408
  %v145 = vunpack.c.0.s8 %v144
  %v146 = vlaneseq
  %v147 = vshrl.u32 %v146, 7
  %v148 = vsub.s32 %v145, %v147
  %v149 = vrot.slane %v135, %v148
  %v150 = vcombine.high %v142, 0.0
  %v151 = vcombine.high %v149, 0.0
  %v152 = vcombine.low %v47, %v55
  %v154 = vunpack.c.l.s4 1983009808
  %v155 = vunpack.c.0.s8 %v154
  %v156 = vlaneseq
  %v157 = vshrl.u32 %v156, 7
  %v158 = vsub.s32 %v155, %v157
  %v159 = vrot.slane %v152, %v158
  %v160 = vcombine.low %v51, %v59
  %v162 = vunpack.c.l.s4 1983009808
  %v163 = vunpack.c.0.s8 %v162
  %v164 = vlaneseq
  %v165 = vshrl.u32 %v164, 7
  %v166 = vsub.s32 %v163, %v165
  %v167 = vrot.slane %v160, %v166
  %v168 = vcombine.low %v159, %v167
  %v169 = vcombine.high %v159, %v167
  %v171 = vunpack.c.l.s4 1934713408
  %v172 = vunpack.c.0.s8 %v171
  %v173 = vlaneseq
  %v174 = vshrl.u32 %v173, 7
  %v175 = vsub.s32 %v172, %v174
  %v176 = vrot.slane %v168, %v175
  %v178 = vunpack.c.l.s4 1934713408
  %v179 = vunpack.c.0.s8 %v178
  %v180 = vlaneseq
  %v181 = vshrl.u32 %v180, 7
  %v182 = vsub.s32 %v179, %v181
  %v183 = vrot.slane %v169, %v182
  %v184 = vcombine.high %v176, 0.0
  %v185 = vcombine.high %v183, 0.0
  %v186 = vcombine.low %v63, %v71
  %v188 = vunpack.c.l.s4 1983009808
  %v189 = vunpack.c.0.s8 %v188
  %v190 = vlaneseq
  %v191 = vshrl.u32 %v190, 7
  %v192 = vsub.s32 %v189, %v191
  %v193 = vrot.slane %v186, %v192
  %v194 = vcombine.low %v67, %v75
  %v196 = vunpack.c.l.s4 1983009808
  %v197 = vunpack.c.0.s8 %v196
  %v198 = vlaneseq
  %v199 = vshrl.u32 %v198, 7
  %v200 = vsub.s32 %v197, %v199
  %v201 = vrot.slane %v194, %v200
  %v202 = vcombine.low %v193, %v201
  %v203 = vcombine.high %v193, %v201
  %v205 = vunpack.c.l.s4 1934713408
  %v206 = vunpack.c.0.s8 %v205
  %v207 = vlaneseq
  %v208 = vshrl.u32 %v207, 7
  %v209 = vsub.s32 %v206, %v208
  %v210 = vrot.slane %v202, %v209
  %v212 = vunpack.c.l.s4 1934713408
  %v213 = vunpack.c.0.s8 %v212
  %v214 = vlaneseq
  %v215 = vshrl.u32 %v214, 7
  %v216 = vsub.s32 %v213, %v215
  %v217 = vrot.slane %v203, %v216
  %v218 = vcombine.high %v210, 0.0
  %v219 = vcombine.high %v217, 0.0
  %v236 = vcombine.low %v108, %v142
  %v237 = vcombine.low %v176, %v210
  %v238 = vcombine.low %v116, %v150
  %v239 = vcombine.low %v184, %v218
  %v240 = vcombine.low %v115, %v149
  %v241 = vcombine.low %v183, %v217
  %v242 = vcombine.low %v117, %v151
  %v243 = vcombine.low %v185, %v219
  %244 = vrot.lane.b32.xlu0 %v236, 1
  %v245 = vpop.permute.xlu0 %244
  %246 = vrot.lane.b32.xlu0 %v237, 1
  %v247 = vpop.permute.xlu0 %246
  %248 = vrot.lane.b32.xlu0 %v238, 1
  %v249 = vpop.permute.xlu0 %248
  %250 = vrot.lane.b32.xlu0 %v239, 1
  %v251 = vpop.permute.xlu0 %250
  %252 = vrot.lane.b32.xlu0 %v240, 1
  %v253 = vpop.permute.xlu0 %252
  %254 = vrot.lane.b32.xlu0 %v241, 1
  %v255 = vpop.permute.xlu0 %254
  %256 = vrot.lane.b32.xlu0 %v242, 1
  %v257 = vpop.permute.xlu0 %256
  %258 = vrot.lane.b32.xlu0 %v243, 1
  %v259 = vpop.permute.xlu0 %258
  %vm268 = vcmask 138248
  %269 = vst.msk [vmem:[#allocation2 + $0x1] sm:$0xff] %vm268, %v245
  %270 = vst.msk [vmem:[#allocation2 + $0x9] sm:$0xff] %vm268, %v247
  %271 = vst.msk [vmem:[#allocation2 + $0x19] sm:$0xff] %vm268, %v249
  %272 = vst.msk [vmem:[#allocation2 + $0x21] sm:$0xff] %vm268, %v251
  %273 = vst.msk [vmem:[#allocation2 + $0x31] sm:$0xff] %vm268, %v253
  %274 = vst.msk [vmem:[#allocation2 + $0x39] sm:$0xff] %vm268, %v255
  %275 = vst.msk [vmem:[#allocation2 + $0x49] sm:$0xff] %vm268, %v257
  %276 = vst.msk [vmem:[#allocation2 + $0x51] sm:$0xff] %vm268, %v259
  %v277 = vld [vmem:[#allocation2] sm:$0xff]
  %v278 = vld [vmem:[#allocation2 + $0x8] sm:$0xff]
  %v279 = vld [vmem:[#allocation2 + $0x10] sm:$0x3]
  %v280 = vld [vmem:[#allocation2 + $0x18] sm:$0xff]
  %v281 = vld [vmem:[#allocation2 + $0x20] sm:$0xff]
  %v282 = vld [vmem:[#allocation2 + $0x28] sm:$0x3]
  %v283 = vld [vmem:[#allocation2 + $0x30] sm:$0xff]
  %v284 = vld [vmem:[#allocation2 + $0x38] sm:$0xff]
  %v285 = vld [vmem:[#allocation2 + $0x40] sm:$0x3]
  %v286 = vld [vmem:[#allocation2 + $0x48] sm:$0xff]
  %v287 = vld [vmem:[#allocation2 + $0x50] sm:$0xff]
  %v288 = vld [vmem:[#allocation2 + $0x58] sm:$0x3]
  %v289 = vcombine.low %v277, %v283
  %v290 = vcombine.high %v277, %v283
  %v292 = vunpack.c.l.s4 1983009808
  %v293 = vunpack.c.0.s8 %v292
  %v294 = vlaneseq
  %v295 = vshrl.u32 %v294, 7
  %v296 = vsub.s32 %v293, %v295
  %v297 = vrot.slane %v289, %v296
  %v299 = vunpack.c.l.s4 1983009808
  %v300 = vunpack.c.0.s8 %v299
  %v301 = vlaneseq
  %v302 = vshrl.u32 %v301, 7
  %v303 = vsub.s32 %v300, %v302
  %v304 = vrot.slane %v290, %v303
  %v305 = vcombine.low %v280, %v286
  %v306 = vcombine.high %v280, %v286
  %v308 = vunpack.c.l.s4 1983009808
  %v309 = vunpack.c.0.s8 %v308
  %v310 = vlaneseq
  %v311 = vshrl.u32 %v310, 7
  %v312 = vsub.s32 %v309, %v311
  %v313 = vrot.slane %v305, %v312
  %v315 = vunpack.c.l.s4 1983009808
  %v316 = vunpack.c.0.s8 %v315
  %v317 = vlaneseq
  %v318 = vshrl.u32 %v317, 7
  %v319 = vsub.s32 %v316, %v318
  %v320 = vrot.slane %v306, %v319
  %v321 = vcombine.low %v297, %v313
  %v322 = vcombine.high %v297, %v313
  %v324 = vunpack.c.l.s4 1934713408
  %v325 = vunpack.c.0.s8 %v324
  %v326 = vlaneseq
  %v327 = vshrl.u32 %v326, 7
  %v328 = vsub.s32 %v325, %v327
  %v329 = vrot.slane %v321, %v328
  %v331 = vunpack.c.l.s4 1934713408
  %v332 = vunpack.c.0.s8 %v331
  %v333 = vlaneseq
  %v334 = vshrl.u32 %v333, 7
  %v335 = vsub.s32 %v332, %v334
  %v336 = vrot.slane %v322, %v335
  %v337 = vcombine.low %v304, %v320
  %v338 = vcombine.high %v304, %v320
  %v340 = vunpack.c.l.s4 1934713408
  %v341 = vunpack.c.0.s8 %v340
  %v342 = vlaneseq
  %v343 = vshrl.u32 %v342, 7
  %v344 = vsub.s32 %v341, %v343
  %v345 = vrot.slane %v337, %v344
  %v347 = vunpack.c.l.s4 1934713408
  %v348 = vunpack.c.0.s8 %v347
  %v349 = vlaneseq
  %v350 = vshrl.u32 %v349, 7
  %v351 = vsub.s32 %v348, %v350
  %v352 = vrot.slane %v338, %v351
  %v353 = vcombine.high %v329, 0.0
  %v354 = vcombine.high %v336, 0.0
  %v355 = vcombine.high %v345, 0.0
  %v356 = vcombine.high %v352, 0.0
  %v357 = vcombine.low %v278, %v284
  %v358 = vcombine.high %v278, %v284
  %v360 = vunpack.c.l.s4 1983009808
  %v361 = vunpack.c.0.s8 %v360
  %v362 = vlaneseq
  %v363 = vshrl.u32 %v362, 7
  %v364 = vsub.s32 %v361, %v363
  %v365 = vrot.slane %v357, %v364
  %v367 = vunpack.c.l.s4 1983009808
  %v368 = vunpack.c.0.s8 %v367
  %v369 = vlaneseq
  %v370 = vshrl.u32 %v369, 7
  %v371 = vsub.s32 %v368, %v370
  %v372 = vrot.slane %v358, %v371
  %v373 = vcombine.low %v281, %v287
  %v374 = vcombine.high %v281, %v287
  %v376 = vunpack.c.l.s4 1983009808
  %v377 = vunpack.c.0.s8 %v376
  %v378 = vlaneseq
  %v379 = vshrl.u32 %v378, 7
  %v380 = vsub.s32 %v377, %v379
  %v381 = vrot.slane %v373, %v380
  %v383 = vunpack.c.l.s4 1983009808
  %v384 = vunpack.c.0.s8 %v383
  %v385 = vlaneseq
  %v386 = vshrl.u32 %v385, 7
  %v387 = vsub.s32 %v384, %v386
  %v388 = vrot.slane %v374, %v387
  %v389 = vcombine.low %v365, %v381
  %v390 = vcombine.high %v365, %v381
  %v392 = vunpack.c.l.s4 1934713408
  %v393 = vunpack.c.0.s8 %v392
  %v394 = vlaneseq
  %v395 = vshrl.u32 %v394, 7
  %v396 = vsub.s32 %v393, %v395
  %v397 = vrot.slane %v389, %v396
  %v399 = vunpack.c.l.s4 1934713408
  %v400 = vunpack.c.0.s8 %v399
  %v401 = vlaneseq
  %v402 = vshrl.u32 %v401, 7
  %v403 = vsub.s32 %v400, %v402
  %v404 = vrot.slane %v390, %v403
  %v405 = vcombine.low %v372, %v388
  %v406 = vcombine.high %v372, %v388
  %v408 = vunpack.c.l.s4 1934713408
  %v409 = vunpack.c.0.s8 %v408
  %v410 = vlaneseq
  %v411 = vshrl.u32 %v410, 7
  %v412 = vsub.s32 %v409, %v411
  %v413 = vrot.slane %v405, %v412
  %v415 = vunpack.c.l.s4 1934713408
  %v416 = vunpack.c.0.s8 %v415
  %v417 = vlaneseq
  %v418 = vshrl.u32 %v417, 7
  %v419 = vsub.s32 %v416, %v418
  %v420 = vrot.slane %v406, %v419
  %v421 = vcombine.high %v397, 0.0
  %v422 = vcombine.high %v404, 0.0
  %v423 = vcombine.high %v413, 0.0
  %v424 = vcombine.high %v420, 0.0
  %426 = vrot.lane.b32.xlu0 %v353, 16
  %v427 = vpop.permute.xlu0 %426
  %430 = vrot.lane.b32.xlu0 %v336, 32
  %v431 = vpop.permute.xlu0 %430
  %434 = vrot.lane.b32.xlu0 %v354, 48
  %v435 = vpop.permute.xlu0 %434
  %438 = vrot.lane.b32.xlu0 %v345, 64
  %v439 = vpop.permute.xlu0 %438
  %442 = vrot.lane.b32.xlu0 %v355, 80
  %v443 = vpop.permute.xlu0 %442
  %446 = vrot.lane.b32.xlu0 %v352, 96
  %v447 = vpop.permute.xlu0 %446
  %450 = vrot.lane.b32.xlu0 %v356, 112
  %v451 = vpop.permute.xlu0 %450
  %454 = vrot.lane.b32.xlu0 %v421, 16
  %v455 = vpop.permute.xlu0 %454
  %458 = vrot.lane.b32.xlu0 %v404, 32
  %v459 = vpop.permute.xlu0 %458
  %462 = vrot.lane.b32.xlu0 %v422, 48
  %v463 = vpop.permute.xlu0 %462
  %466 = vrot.lane.b32.xlu0 %v413, 64
  %v467 = vpop.permute.xlu0 %466
  %470 = vrot.lane.b32.xlu0 %v423, 80
  %v471 = vpop.permute.xlu0 %470
  %474 = vrot.lane.b32.xlu0 %v420, 96
  %v475 = vpop.permute.xlu0 %474
  %478 = vrot.lane.b32.xlu0 %v424, 112
  %v479 = vpop.permute.xlu0 %478
  %vm481 = vcmask 130048
  %v482 = vsel %vm481, %v329, %v427
  %vm483 = vcmask 261120
  %v484 = vsel %vm483, %v482, %v431
  %vm485 = vcmask 392192
  %v486 = vsel %vm485, %v484, %v435
  %vm487 = vcmask 523264
  %v488 = vsel %vm487, %v486, %v439
  %vm489 = vcmask 654336
  %v490 = vsel %vm489, %v488, %v443
  %vm491 = vcmask 785408
  %v492 = vsel %vm491, %v490, %v447
  %vm493 = vcmask 916480
  %v494 = vsel %vm493, %v492, %v451
  %v495 = vsel %vm481, %v397, %v455
  %v496 = vsel %vm483, %v495, %v459
  %v497 = vsel %vm485, %v496, %v463
  %v498 = vsel %vm487, %v497, %v467
  %v499 = vsel %vm489, %v498, %v471
  %v500 = vsel %vm491, %v499, %v475
  %v501 = vsel %vm493, %v500, %v479
  %502 = vst [vmem:[#allocation3] sm:$0xf] %v494
  %503 = vst [vmem:[#allocation3 + $0x8] sm:$0xf] %v501
  %512 = vrot.lane.b32.xlu0 %v277, 127
  %v513 = vpop.permute.xlu0 %512
  %514 = vrot.lane.b32.xlu0 %v278, 127
  %v515 = vpop.permute.xlu0 %514
  %516 = vrot.lane.b32.xlu0 %v280, 127
  %v517 = vpop.permute.xlu0 %516
  %518 = vrot.lane.b32.xlu0 %v281, 127
  %v519 = vpop.permute.xlu0 %518
  %520 = vrot.lane.b32.xlu0 %v283, 127
  %v521 = vpop.permute.xlu0 %520
  %522 = vrot.lane.b32.xlu0 %v284, 127
  %v523 = vpop.permute.xlu0 %522
  %524 = vrot.lane.b32.xlu0 %v286, 127
  %v525 = vpop.permute.xlu0 %524
  %526 = vrot.lane.b32.xlu0 %v287, 127
  %v527 = vpop.permute.xlu0 %526
  %v536 = vcombine.low %v513, %v521
  %v537 = vcombine.high %v513, %v521
  %v539 = vunpack.c.l.s4 1983009808
  %v540 = vunpack.c.0.s8 %v539
  %v541 = vlaneseq
  %v542 = vshrl.u32 %v541, 7
  %v543 = vsub.s32 %v540, %v542
  %v544 = vrot.slane %v536, %v543
  %v546 = vunpack.c.l.s4 1983009808
  %v547 = vunpack.c.0.s8 %v546
  %v548 = vlaneseq
  %v549 = vshrl.u32 %v548, 7
  %v550 = vsub.s32 %v547, %v549
  %v551 = vrot.slane %v537, %v550
  %v552 = vcombine.low %v517, %v525
  %v553 = vcombine.high %v517, %v525
  %v555 = vunpack.c.l.s4 1983009808
  %v556 = vunpack.c.0.s8 %v555
  %v557 = vlaneseq
  %v558 = vshrl.u32 %v557, 7
  %v559 = vsub.s32 %v556, %v558
  %v560 = vrot.slane %v552, %v559
  %v562 = vunpack.c.l.s4 1983009808
  %v563 = vunpack.c.0.s8 %v562
  %v564 = vlaneseq
  %v565 = vshrl.u32 %v564, 7
  %v566 = vsub.s32 %v563, %v565
  %v567 = vrot.slane %v553, %v566
  %v568 = vcombine.low %v544, %v560
  %v569 = vcombine.high %v544, %v560
  %v571 = vunpack.c.l.s4 1934713408
  %v572 = vunpack.c.0.s8 %v571
  %v573 = vlaneseq
  %v574 = vshrl.u32 %v573, 7
  %v575 = vsub.s32 %v572, %v574
  %v576 = vrot.slane %v568, %v575
  %v578 = vunpack.c.l.s4 1934713408
  %v579 = vunpack.c.0.s8 %v578
  %v580 = vlaneseq
  %v581 = vshrl.u32 %v580, 7
  %v582 = vsub.s32 %v579, %v581
  %v583 = vrot.slane %v569, %v582
  %v584 = vcombine.low %v551, %v567
  %v585 = vcombine.high %v551, %v567
  %v587 = vunpack.c.l.s4 1934713408
  %v588 = vunpack.c.0.s8 %v587
  %v589 = vlaneseq
  %v590 = vshrl.u32 %v589, 7
  %v591 = vsub.s32 %v588, %v590
  %v592 = vrot.slane %v584, %v591
  %v594 = vunpack.c.l.s4 1934713408
  %v595 = vunpack.c.0.s8 %v594
  %v596 = vlaneseq
  %v597 = vshrl.u32 %v596, 7
  %v598 = vsub.s32 %v595, %v597
  %v599 = vrot.slane %v585, %v598
  %v600 = vcombine.high %v576, 0.0
  %v601 = vcombine.high %v583, 0.0
  %v602 = vcombine.high %v592, 0.0
  %v603 = vcombine.high %v599, 0.0
  %v604 = vcombine.low %v515, %v523
  %v605 = vcombine.high %v515, %v523
  %v607 = vunpack.c.l.s4 1983009808
  %v608 = vunpack.c.0.s8 %v607
  %v609 = vlaneseq
  %v610 = vshrl.u32 %v609, 7
  %v611 = vsub.s32 %v608, %v610
  %v612 = vrot.slane %v604, %v611
  %v614 = vunpack.c.l.s4 1983009808
  %v615 = vunpack.c.0.s8 %v614
  %v616 = vlaneseq
  %v617 = vshrl.u32 %v616, 7
  %v618 = vsub.s32 %v615, %v617
  %v619 = vrot.slane %v605, %v618
  %v620 = vcombine.low %v519, %v527
  %v621 = vcombine.high %v519, %v527
  %v623 = vunpack.c.l.s4 1983009808
  %v624 = vunpack.c.0.s8 %v623
  %v625 = vlaneseq
  %v626 = vshrl.u32 %v625, 7
  %v627 = vsub.s32 %v624, %v626
  %v628 = vrot.slane %v620, %v627
  %v630 = vunpack.c.l.s4 1983009808
  %v631 = vunpack.c.0.s8 %v630
  %v632 = vlaneseq
  %v633 = vshrl.u32 %v632, 7
  %v634 = vsub.s32 %v631, %v633
  %v635 = vrot.slane %v621, %v634
  %v636 = vcombine.low %v612, %v628
  %v637 = vcombine.high %v612, %v628
  %v639 = vunpack.c.l.s4 1934713408
  %v640 = vunpack.c.0.s8 %v639
  %v641 = vlaneseq
  %v642 = vshrl.u32 %v641, 7
  %v643 = vsub.s32 %v640, %v642
  %v644 = vrot.slane %v636, %v643
  %v646 = vunpack.c.l.s4 1934713408
  %v647 = vunpack.c.0.s8 %v646
  %v648 = vlaneseq
  %v649 = vshrl.u32 %v648, 7
  %v650 = vsub.s32 %v647, %v649
  %v651 = vrot.slane %v637, %v650
  %v652 = vcombine.low %v619, %v635
  %v653 = vcombine.high %v619, %v635
  %v655 = vunpack.c.l.s4 1934713408
  %v656 = vunpack.c.0.s8 %v655
  %v657 = vlaneseq
  %v658 = vshrl.u32 %v657, 7
  %v659 = vsub.s32 %v656, %v658
  %v660 = vrot.slane %v652, %v659
  %v662 = vunpack.c.l.s4 1934713408
  %v663 = vunpack.c.0.s8 %v662
  %v664 = vlaneseq
  %v665 = vshrl.u32 %v664, 7
  %v666 = vsub.s32 %v663, %v665
  %v667 = vrot.slane %v653, %v666
  %v668 = vcombine.high %v644, 0.0
  %v669 = vcombine.high %v651, 0.0
  %v670 = vcombine.high %v660, 0.0
  %v671 = vcombine.high %v667, 0.0
  %673 = vrot.lane.b32.xlu0 %v600, 16
  %v674 = vpop.permute.xlu0 %673
  %677 = vrot.lane.b32.xlu0 %v583, 32
  %v678 = vpop.permute.xlu0 %677
  %681 = vrot.lane.b32.xlu0 %v601, 48
  %v682 = vpop.permute.xlu0 %681
  %685 = vrot.lane.b32.xlu0 %v592, 64
  %v686 = vpop.permute.xlu0 %685
  %689 = vrot.lane.b32.xlu0 %v602, 80
  %v690 = vpop.permute.xlu0 %689
  %693 = vrot.lane.b32.xlu0 %v599, 96
  %v694 = vpop.permute.xlu0 %693
  %697 = vrot.lane.b32.xlu0 %v603, 112
  %v698 = vpop.permute.xlu0 %697
  %701 = vrot.lane.b32.xlu0 %v668, 16
  %v702 = vpop.permute.xlu0 %701
  %705 = vrot.lane.b32.xlu0 %v651, 32
  %v706 = vpop.permute.xlu0 %705
  %709 = vrot.lane.b32.xlu0 %v669, 48
  %v710 = vpop.permute.xlu0 %709
  %713 = vrot.lane.b32.xlu0 %v660, 64
  %v714 = vpop.permute.xlu0 %713
  %717 = vrot.lane.b32.xlu0 %v670, 80
  %v718 = vpop.permute.xlu0 %717
  %721 = vrot.lane.b32.xlu0 %v667, 96
  %v722 = vpop.permute.xlu0 %721
  %725 = vrot.lane.b32.xlu0 %v671, 112
  %v726 = vpop.permute.xlu0 %725
  %v728 = vsel %vm481, %v576, %v674
  %v729 = vsel %vm483, %v728, %v678
  %v730 = vsel %vm485, %v729, %v682
  %v731 = vsel %vm487, %v730, %v686
  %v732 = vsel %vm489, %v731, %v690
  %v733 = vsel %vm491, %v732, %v694
  %v734 = vsel %vm493, %v733, %v698
  %v735 = vsel %vm481, %v644, %v702
  %v736 = vsel %vm483, %v735, %v706
  %v737 = vsel %vm485, %v736, %v710
  %v738 = vsel %vm487, %v737, %v714
  %v739 = vsel %vm489, %v738, %v718
  %v740 = vsel %vm491, %v739, %v722
  %v741 = vsel %vm493, %v740, %v726
  %v744 = vrot.slane %v734, 4
  %v745 = vrot.slane %v741, 4
  %748 = vst [vmem:[#allocation3] sm:$0xf0] %v744
  %749 = vst [vmem:[#allocation3 + $0x8] sm:$0xf0] %v745
  %750 = vrot.lane.b32.xlu0 %v277, 126
  %v751 = vpop.permute.xlu0 %750
  %752 = vrot.lane.b32.xlu0 %v278, 126
  %v753 = vpop.permute.xlu0 %752
  %754 = vrot.lane.b32.xlu0 %v280, 126
  %v755 = vpop.permute.xlu0 %754
  %756 = vrot.lane.b32.xlu0 %v281, 126
  %v757 = vpop.permute.xlu0 %756
  %758 = vrot.lane.b32.xlu0 %v283, 126
  %v759 = vpop.permute.xlu0 %758
  %760 = vrot.lane.b32.xlu0 %v284, 126
  %v761 = vpop.permute.xlu0 %760
  %762 = vrot.lane.b32.xlu0 %v286, 126
  %v763 = vpop.permute.xlu0 %762
  %764 = vrot.lane.b32.xlu0 %v287, 126
  %v765 = vpop.permute.xlu0 %764
  %v774 = vcombine.low %v751, %v759
  %v775 = vcombine.high %v751, %v759
  %v777 = vunpack.c.l.s4 1983009808
  %v778 = vunpack.c.0.s8 %v777
  %v779 = vlaneseq
  %v780 = vshrl.u32 %v779, 7
  %v781 = vsub.s32 %v778, %v780
  %v782 = vrot.slane %v774, %v781
  %v784 = vunpack.c.l.s4 1983009808
  %v785 = vunpack.c.0.s8 %v784
  %v786 = vlaneseq
  %v787 = vshrl.u32 %v786, 7
  %v788 = vsub.s32 %v785, %v787
  %v789 = vrot.slane %v775, %v788
  %v790 = vcombine.low %v755, %v763
  %v791 = vcombine.high %v755, %v763
  %v793 = vunpack.c.l.s4 1983009808
  %v794 = vunpack.c.0.s8 %v793
  %v795 = vlaneseq
  %v796 = vshrl.u32 %v795, 7
  %v797 = vsub.s32 %v794, %v796
  %v798 = vrot.slane %v790, %v797
  %v800 = vunpack.c.l.s4 1983009808
  %v801 = vunpack.c.0.s8 %v800
  %v802 = vlaneseq
  %v803 = vshrl.u32 %v802, 7
  %v804 = vsub.s32 %v801, %v803
  %v805 = vrot.slane %v791, %v804
  %v806 = vcombine.low %v782, %v798
  %v807 = vcombine.high %v782, %v798
  %v809 = vunpack.c.l.s4 1934713408
  %v810 = vunpack.c.0.s8 %v809
  %v811 = vlaneseq
  %v812 = vshrl.u32 %v811, 7
  %v813 = vsub.s32 %v810, %v812
  %v814 = vrot.slane %v806, %v813
  %v816 = vunpack.c.l.s4 1934713408
  %v817 = vunpack.c.0.s8 %v816
  %v818 = vlaneseq
  %v819 = vshrl.u32 %v818, 7
  %v820 = vsub.s32 %v817, %v819
  %v821 = vrot.slane %v807, %v820
  %v822 = vcombine.low %v789, %v805
  %v823 = vcombine.high %v789, %v805
  %v825 = vunpack.c.l.s4 1934713408
  %v826 = vunpack.c.0.s8 %v825
  %v827 = vlaneseq
  %v828 = vshrl.u32 %v827, 7
  %v829 = vsub.s32 %v826, %v828
  %v830 = vrot.slane %v822, %v829
  %v832 = vunpack.c.l.s4 1934713408
  %v833 = vunpack.c.0.s8 %v832
  %v834 = vlaneseq
  %v835 = vshrl.u32 %v834, 7
  %v836 = vsub.s32 %v833, %v835
  %v837 = vrot.slane %v823, %v836
  %v838 = vcombine.high %v814, 0.0
  %v839 = vcombine.high %v821, 0.0
  %v840 = vcombine.high %v830, 0.0
  %v841 = vcombine.high %v837, 0.0
  %v842 = vcombine.low %v753, %v761
  %v843 = vcombine.high %v753, %v761
  %v845 = vunpack.c.l.s4 1983009808
  %v846 = vunpack.c.0.s8 %v845
  %v847 = vlaneseq
  %v848 = vshrl.u32 %v847, 7
  %v849 = vsub.s32 %v846, %v848
  %v850 = vrot.slane %v842, %v849
  %v852 = vunpack.c.l.s4 1983009808
  %v853 = vunpack.c.0.s8 %v852
  %v854 = vlaneseq
  %v855 = vshrl.u32 %v854, 7
  %v856 = vsub.s32 %v853, %v855
  %v857 = vrot.slane %v843, %v856
  %v858 = vcombine.low %v757, %v765
  %v859 = vcombine.high %v757, %v765
  %v861 = vunpack.c.l.s4 1983009808
  %v862 = vunpack.c.0.s8 %v861
  %v863 = vlaneseq
  %v864 = vshrl.u32 %v863, 7
  %v865 = vsub.s32 %v862, %v864
  %v866 = vrot.slane %v858, %v865
  %v868 = vunpack.c.l.s4 1983009808
  %v869 = vunpack.c.0.s8 %v868
  %v870 = vlaneseq
  %v871 = vshrl.u32 %v870, 7
  %v872 = vsub.s32 %v869, %v871
  %v873 = vrot.slane %v859, %v872
  %v874 = vcombine.low %v850, %v866
  %v875 = vcombine.high %v850, %v866
  %v877 = vunpack.c.l.s4 1934713408
  %v878 = vunpack.c.0.s8 %v877
  %v879 = vlaneseq
  %v880 = vshrl.u32 %v879, 7
  %v881 = vsub.s32 %v878, %v880
  %v882 = vrot.slane %v874, %v881
  %v884 = vunpack.c.l.s4 1934713408
  %v885 = vunpack.c.0.s8 %v884
  %v886 = vlaneseq
  %v887 = vshrl.u32 %v886, 7
  %v888 = vsub.s32 %v885, %v887
  %v889 = vrot.slane %v875, %v888
  %v890 = vcombine.low %v857, %v873
  %v891 = vcombine.high %v857, %v873
  %v893 = vunpack.c.l.s4 1934713408
  %v894 = vunpack.c.0.s8 %v893
  %v895 = vlaneseq
  %v896 = vshrl.u32 %v895, 7
  %v897 = vsub.s32 %v894, %v896
  %v898 = vrot.slane %v890, %v897
  %v900 = vunpack.c.l.s4 1934713408
  %v901 = vunpack.c.0.s8 %v900
  %v902 = vlaneseq
  %v903 = vshrl.u32 %v902, 7
  %v904 = vsub.s32 %v901, %v903
  %v905 = vrot.slane %v891, %v904
  %v906 = vcombine.high %v882, 0.0
  %v907 = vcombine.high %v889, 0.0
  %v908 = vcombine.high %v898, 0.0
  %v909 = vcombine.high %v905, 0.0
  %911 = vrot.lane.b32.xlu0 %v838, 16
  %v912 = vpop.permute.xlu0 %911
  %915 = vrot.lane.b32.xlu0 %v821, 32
  %v916 = vpop.permute.xlu0 %915
  %919 = vrot.lane.b32.xlu0 %v839, 48
  %v920 = vpop.permute.xlu0 %919
  %923 = vrot.lane.b32.xlu0 %v830, 64
  %v924 = vpop.permute.xlu0 %923
  %927 = vrot.lane.b32.xlu0 %v840, 80
  %v928 = vpop.permute.xlu0 %927
  %931 = vrot.lane.b32.xlu0 %v837, 96
  %v932 = vpop.permute.xlu0 %931
  %935 = vrot.lane.b32.xlu0 %v841, 112
  %v936 = vpop.permute.xlu0 %935
  %939 = vrot.lane.b32.xlu0 %v906, 16
  %v940 = vpop.permute.xlu0 %939
  %943 = vrot.lane.b32.xlu0 %v889, 32
  %v944 = vpop.permute.xlu0 %943
  %947 = vrot.lane.b32.xlu0 %v907, 48
  %v948 = vpop.permute.xlu0 %947
  %951 = vrot.lane.b32.xlu0 %v898, 64
  %v952 = vpop.permute.xlu0 %951
  %955 = vrot.lane.b32.xlu0 %v908, 80
  %v956 = vpop.permute.xlu0 %955
  %959 = vrot.lane.b32.xlu0 %v905, 96
  %v960 = vpop.permute.xlu0 %959
  %963 = vrot.lane.b32.xlu0 %v909, 112
  %v964 = vpop.permute.xlu0 %963
  %v966 = vsel %vm481, %v814, %v912
  %v967 = vsel %vm483, %v966, %v916
  %v968 = vsel %vm485, %v967, %v920
  %v969 = vsel %vm487, %v968, %v924
  %v970 = vsel %vm489, %v969, %v928
  %v971 = vsel %vm491, %v970, %v932
  %v972 = vsel %vm493, %v971, %v936
  %v973 = vsel %vm481, %v882, %v940
  %v974 = vsel %vm483, %v973, %v944
  %v975 = vsel %vm485, %v974, %v948
  %v976 = vsel %vm487, %v975, %v952
  %v977 = vsel %vm489, %v976, %v956
  %v978 = vsel %vm491, %v977, %v960
  %v979 = vsel %vm493, %v978, %v964
  %980 = vst [vmem:[#allocation3 + $0x20] sm:$0xf] %v972
  %981 = vst [vmem:[#allocation3 + $0x28] sm:$0xf] %v979
  %vm986 = vcmask 1046528
  %v987 = vrot.slane %v277, 1
  %v988 = vrot.slane %v278, 1
  %v989 = vsel %vm986, %v987, %v988
  %v990 = vrot.slane %v279, 1
  %v991 = vsel %vm986, %v988, %v990
  %v992 = vrot.slane %v280, 1
  %v993 = vrot.slane %v281, 1
  %v994 = vsel %vm986, %v992, %v993
  %v995 = vrot.slane %v282, 1
  %v996 = vsel %vm986, %v993, %v995
  %v997 = vrot.slane %v283, 1
  %v998 = vrot.slane %v284, 1
  %v999 = vsel %vm986, %v997, %v998
  %v1000 = vrot.slane %v285, 1
  %v1001 = vsel %vm986, %v998, %v1000
  %v1002 = vrot.slane %v286, 1
  %v1003 = vrot.slane %v287, 1
  %v1004 = vsel %vm986, %v1002, %v1003
  %v1005 = vrot.slane %v288, 1
  %v1006 = vsel %vm986, %v1003, %v1005
  %v1015 = vcombine.low %v989, %v999
  %v1016 = vcombine.high %v989, %v999
  %v1018 = vunpack.c.l.s4 1983009808
  %v1019 = vunpack.c.0.s8 %v1018
  %v1020 = vlaneseq
  %v1021 = vshrl.u32 %v1020, 7
  %v1022 = vsub.s32 %v1019, %v1021
  %v1023 = vrot.slane %v1015, %v1022
  %v1025 = vunpack.c.l.s4 1983009808
  %v1026 = vunpack.c.0.s8 %v1025
  %v1027 = vlaneseq
  %v1028 = vshrl.u32 %v1027, 7
  %v1029 = vsub.s32 %v1026, %v1028
  %v1030 = vrot.slane %v1016, %v1029
  %v1031 = vcombine.low %v994, %v1004
  %v1032 = vcombine.high %v994, %v1004
  %v1034 = vunpack.c.l.s4 1983009808
  %v1035 = vunpack.c.0.s8 %v1034
  %v1036 = vlaneseq
  %v1037 = vshrl.u32 %v1036, 7
  %v1038 = vsub.s32 %v1035, %v1037
  %v1039 = vrot.slane %v1031, %v1038
  %v1041 = vunpack.c.l.s4 1983009808
  %v1042 = vunpack.c.0.s8 %v1041
  %v1043 = vlaneseq
  %v1044 = vshrl.u32 %v1043, 7
  %v1045 = vsub.s32 %v1042, %v1044
  %v1046 = vrot.slane %v1032, %v1045
  %v1047 = vcombine.low %v1023, %v1039
  %v1048 = vcombine.high %v1023, %v1039
  %v1050 = vunpack.c.l.s4 1934713408
  %v1051 = vunpack.c.0.s8 %v1050
  %v1052 = vlaneseq
  %v1053 = vshrl.u32 %v1052, 7
  %v1054 = vsub.s32 %v1051, %v1053
  %v1055 = vrot.slane %v1047, %v1054
  %v1057 = vunpack.c.l.s4 1934713408
  %v1058 = vunpack.c.0.s8 %v1057
  %v1059 = vlaneseq
  %v1060 = vshrl.u32 %v1059, 7
  %v1061 = vsub.s32 %v1058, %v1060
  %v1062 = vrot.slane %v1048, %v1061
  %v1063 = vcombine.low %v1030, %v1046
  %v1064 = vcombine.high %v1030, %v1046
  %v1066 = vunpack.c.l.s4 1934713408
  %v1067 = vunpack.c.0.s8 %v1066
  %v1068 = vlaneseq
  %v1069 = vshrl.u32 %v1068, 7
  %v1070 = vsub.s32 %v1067, %v1069
  %v1071 = vrot.slane %v1063, %v1070
  %v1073 = vunpack.c.l.s4 1934713408
  %v1074 = vunpack.c.0.s8 %v1073
  %v1075 = vlaneseq
  %v1076 = vshrl.u32 %v1075, 7
  %v1077 = vsub.s32 %v1074, %v1076
  %v1078 = vrot.slane %v1064, %v1077
  %v1079 = vcombine.high %v1055, 0.0
  %v1080 = vcombine.high %v1062, 0.0
  %v1081 = vcombine.high %v1071, 0.0
  %v1082 = vcombine.high %v1078, 0.0
  %v1083 = vcombine.low %v991, %v1001
  %v1084 = vcombine.high %v991, %v1001
  %v1086 = vunpack.c.l.s4 1983009808
  %v1087 = vunpack.c.0.s8 %v1086
  %v1088 = vlaneseq
  %v1089 = vshrl.u32 %v1088, 7
  %v1090 = vsub.s32 %v1087, %v1089
  %v1091 = vrot.slane %v1083, %v1090
  %v1093 = vunpack.c.l.s4 1983009808
  %v1094 = vunpack.c.0.s8 %v1093
  %v1095 = vlaneseq
  %v1096 = vshrl.u32 %v1095, 7
  %v1097 = vsub.s32 %v1094, %v1096
  %v1098 = vrot.slane %v1084, %v1097
  %v1099 = vcombine.low %v996, %v1006
  %v1100 = vcombine.high %v996, %v1006
  %v1102 = vunpack.c.l.s4 1983009808
  %v1103 = vunpack.c.0.s8 %v1102
  %v1104 = vlaneseq
  %v1105 = vshrl.u32 %v1104, 7
  %v1106 = vsub.s32 %v1103, %v1105
  %v1107 = vrot.slane %v1099, %v1106
  %v1109 = vunpack.c.l.s4 1983009808
  %v1110 = vunpack.c.0.s8 %v1109
  %v1111 = vlaneseq
  %v1112 = vshrl.u32 %v1111, 7
  %v1113 = vsub.s32 %v1110, %v1112
  %v1114 = vrot.slane %v1100, %v1113
  %v1115 = vcombine.low %v1091, %v1107
  %v1116 = vcombine.high %v1091, %v1107
  %v1118 = vunpack.c.l.s4 1934713408
  %v1119 = vunpack.c.0.s8 %v1118
  %v1120 = vlaneseq
  %v1121 = vshrl.u32 %v1120, 7
  %v1122 = vsub.s32 %v1119, %v1121
  %v1123 = vrot.slane %v1115, %v1122
  %v1125 = vunpack.c.l.s4 1934713408
  %v1126 = vunpack.c.0.s8 %v1125
  %v1127 = vlaneseq
  %v1128 = vshrl.u32 %v1127, 7
  %v1129 = vsub.s32 %v1126, %v1128
  %v1130 = vrot.slane %v1116, %v1129
  %v1131 = vcombine.low %v1098, %v1114
  %v1132 = vcombine.high %v1098, %v1114
  %v1134 = vunpack.c.l.s4 1934713408
  %v1135 = vunpack.c.0.s8 %v1134
  %v1136 = vlaneseq
  %v1137 = vshrl.u32 %v1136, 7
  %v1138 = vsub.s32 %v1135, %v1137
  %v1139 = vrot.slane %v1131, %v1138
  %v1141 = vunpack.c.l.s4 1934713408
  %v1142 = vunpack.c.0.s8 %v1141
  %v1143 = vlaneseq
  %v1144 = vshrl.u32 %v1143, 7
  %v1145 = vsub.s32 %v1142, %v1144
  %v1146 = vrot.slane %v1132, %v1145
  %v1147 = vcombine.high %v1123, 0.0
  %v1148 = vcombine.high %v1130, 0.0
  %v1149 = vcombine.high %v1139, 0.0
  %v1150 = vcombine.high %v1146, 0.0
  %1152 = vrot.lane.b32.xlu0 %v1079, 16
  %v1153 = vpop.permute.xlu0 %1152
  %1156 = vrot.lane.b32.xlu0 %v1062, 32
  %v1157 = vpop.permute.xlu0 %1156
  %1160 = vrot.lane.b32.xlu0 %v1080, 48
  %v1161 = vpop.permute.xlu0 %1160
  %1164 = vrot.lane.b32.xlu0 %v1071, 64
  %v1165 = vpop.permute.xlu0 %1164
  %1168 = vrot.lane.b32.xlu0 %v1081, 80
  %v1169 = vpop.permute.xlu0 %1168
  %1172 = vrot.lane.b32.xlu0 %v1078, 96
  %v1173 = vpop.permute.xlu0 %1172
  %1176 = vrot.lane.b32.xlu0 %v1082, 112
  %v1177 = vpop.permute.xlu0 %1176
  %1180 = vrot.lane.b32.xlu0 %v1147, 16
  %v1181 = vpop.permute.xlu0 %1180
  %1184 = vrot.lane.b32.xlu0 %v1130, 32
  %v1185 = vpop.permute.xlu0 %1184
  %1188 = vrot.lane.b32.xlu0 %v1148, 48
  %v1189 = vpop.permute.xlu0 %1188
  %1192 = vrot.lane.b32.xlu0 %v1139, 64
  %v1193 = vpop.permute.xlu0 %1192
  %1196 = vrot.lane.b32.xlu0 %v1149, 80
  %v1197 = vpop.permute.xlu0 %1196
  %1200 = vrot.lane.b32.xlu0 %v1146, 96
  %v1201 = vpop.permute.xlu0 %1200
  %1204 = vrot.lane.b32.xlu0 %v1150, 112
  %v1205 = vpop.permute.xlu0 %1204
  %v1207 = vsel %vm481, %v1055, %v1153
  %v1208 = vsel %vm483, %v1207, %v1157
  %v1209 = vsel %vm485, %v1208, %v1161
  %v1210 = vsel %vm487, %v1209, %v1165
  %v1211 = vsel %vm489, %v1210, %v1169
  %v1212 = vsel %vm491, %v1211, %v1173
  %v1213 = vsel %vm493, %v1212, %v1177
  %v1214 = vsel %vm481, %v1123, %v1181
  %v1215 = vsel %vm483, %v1214, %v1185
  %v1216 = vsel %vm485, %v1215, %v1189
  %v1217 = vsel %vm487, %v1216, %v1193
  %v1218 = vsel %vm489, %v1217, %v1197
  %v1219 = vsel %vm491, %v1218, %v1201
  %v1220 = vsel %vm493, %v1219, %v1205
  %v1223 = vrot.slane %v1213, 4
  %v1224 = vrot.slane %v1220, 4
  %1227 = vst [vmem:[#allocation3 + $0x20] sm:$0xf0] %v1223
  %1228 = vst [vmem:[#allocation3 + $0x28] sm:$0xf0] %v1224
  %v1229 = vcombine.high %v45, %v45
  %1231 = vst [vmem:[#allocation3 + $0x40] sm:$0xf] %v45
  %1232 = vst [vmem:[#allocation3 + $0x48] sm:$0xf] %v1229
  %1233 = vrot.lane.b32.xlu0 %v989, 126
  %v1234 = vpop.permute.xlu0 %1233
  %1235 = vrot.lane.b32.xlu0 %v991, 126
  %v1236 = vpop.permute.xlu0 %1235
  %1237 = vrot.lane.b32.xlu0 %v994, 126
  %v1238 = vpop.permute.xlu0 %1237
  %1239 = vrot.lane.b32.xlu0 %v996, 126
  %v1240 = vpop.permute.xlu0 %1239
  %1241 = vrot.lane.b32.xlu0 %v999, 126
  %v1242 = vpop.permute.xlu0 %1241
  %1243 = vrot.lane.b32.xlu0 %v1001, 126
  %v1244 = vpop.permute.xlu0 %1243
  %1245 = vrot.lane.b32.xlu0 %v1004, 126
  %v1246 = vpop.permute.xlu0 %1245
  %1247 = vrot.lane.b32.xlu0 %v1006, 126
  %v1248 = vpop.permute.xlu0 %1247
  %v1257 = vcombine.low %v1234, %v1242
  %v1258 = vcombine.high %v1234, %v1242
  %v1260 = vunpack.c.l.s4 1983009808
  %v1261 = vunpack.c.0.s8 %v1260
  %v1262 = vlaneseq
  %v1263 = vshrl.u32 %v1262, 7
  %v1264 = vsub.s32 %v1261, %v1263
  %v1265 = vrot.slane %v1257, %v1264
  %v1267 = vunpack.c.l.s4 1983009808
  %v1268 = vunpack.c.0.s8 %v1267
  %v1269 = vlaneseq
  %v1270 = vshrl.u32 %v1269, 7
  %v1271 = vsub.s32 %v1268, %v1270
  %v1272 = vrot.slane %v1258, %v1271
  %v1273 = vcombine.low %v1238, %v1246
  %v1274 = vcombine.high %v1238, %v1246
  %v1276 = vunpack.c.l.s4 1983009808
  %v1277 = vunpack.c.0.s8 %v1276
  %v1278 = vlaneseq
  %v1279 = vshrl.u32 %v1278, 7
  %v1280 = vsub.s32 %v1277, %v1279
  %v1281 = vrot.slane %v1273, %v1280
  %v1283 = vunpack.c.l.s4 1983009808
  %v1284 = vunpack.c.0.s8 %v1283
  %v1285 = vlaneseq
  %v1286 = vshrl.u32 %v1285, 7
  %v1287 = vsub.s32 %v1284, %v1286
  %v1288 = vrot.slane %v1274, %v1287
  %v1289 = vcombine.low %v1265, %v1281
  %v1290 = vcombine.high %v1265, %v1281
  %v1292 = vunpack.c.l.s4 1934713408
  %v1293 = vunpack.c.0.s8 %v1292
  %v1294 = vlaneseq
  %v1295 = vshrl.u32 %v1294, 7
  %v1296 = vsub.s32 %v1293, %v1295
  %v1297 = vrot.slane %v1289, %v1296
  %v1299 = vunpack.c.l.s4 1934713408
  %v1300 = vunpack.c.0.s8 %v1299
  %v1301 = vlaneseq
  %v1302 = vshrl.u32 %v1301, 7
  %v1303 = vsub.s32 %v1300, %v1302
  %v1304 = vrot.slane %v1290, %v1303
  %v1305 = vcombine.low %v1272, %v1288
  %v1306 = vcombine.high %v1272, %v1288
  %v1308 = vunpack.c.l.s4 1934713408
  %v1309 = vunpack.c.0.s8 %v1308
  %v1310 = vlaneseq
  %v1311 = vshrl.u32 %v1310, 7
  %v1312 = vsub.s32 %v1309, %v1311
  %v1313 = vrot.slane %v1305, %v1312
  %v1315 = vunpack.c.l.s4 1934713408
  %v1316 = vunpack.c.0.s8 %v1315
  %v1317 = vlaneseq
  %v1318 = vshrl.u32 %v1317, 7
  %v1319 = vsub.s32 %v1316, %v1318
  %v1320 = vrot.slane %v1306, %v1319
  %v1321 = vcombine.high %v1297, 0.0
  %v1322 = vcombine.high %v1304, 0.0
  %v1323 = vcombine.high %v1313, 0.0
  %v1324 = vcombine.high %v1320, 0.0
  %v1325 = vcombine.low %v1236, %v1244
  %v1326 = vcombine.high %v1236, %v1244
  %v1328 = vunpack.c.l.s4 1983009808
  %v1329 = vunpack.c.0.s8 %v1328
  %v1330 = vlaneseq
  %v1331 = vshrl.u32 %v1330, 7
  %v1332 = vsub.s32 %v1329, %v1331
  %v1333 = vrot.slane %v1325, %v1332
  %v1335 = vunpack.c.l.s4 1983009808
  %v1336 = vunpack.c.0.s8 %v1335
  %v1337 = vlaneseq
  %v1338 = vshrl.u32 %v1337, 7
  %v1339 = vsub.s32 %v1336, %v1338
  %v1340 = vrot.slane %v1326, %v1339
  %v1341 = vcombine.low %v1240, %v1248
  %v1342 = vcombine.high %v1240, %v1248
  %v1344 = vunpack.c.l.s4 1983009808
  %v1345 = vunpack.c.0.s8 %v1344
  %v1346 = vlaneseq
  %v1347 = vshrl.u32 %v1346, 7
  %v1348 = vsub.s32 %v1345, %v1347
  %v1349 = vrot.slane %v1341, %v1348
  %v1351 = vunpack.c.l.s4 1983009808
  %v1352 = vunpack.c.0.s8 %v1351
  %v1353 = vlaneseq
  %v1354 = vshrl.u32 %v1353, 7
  %v1355 = vsub.s32 %v1352, %v1354
  %v1356 = vrot.slane %v1342, %v1355
  %v1357 = vcombine.low %v1333, %v1349
  %v1358 = vcombine.high %v1333, %v1349
  %v1360 = vunpack.c.l.s4 1934713408
  %v1361 = vunpack.c.0.s8 %v1360
  %v1362 = vlaneseq
  %v1363 = vshrl.u32 %v1362, 7
  %v1364 = vsub.s32 %v1361, %v1363
  %v1365 = vrot.slane %v1357, %v1364
  %v1367 = vunpack.c.l.s4 1934713408
  %v1368 = vunpack.c.0.s8 %v1367
  %v1369 = vlaneseq
  %v1370 = vshrl.u32 %v1369, 7
  %v1371 = vsub.s32 %v1368, %v1370
  %v1372 = vrot.slane %v1358, %v1371
  %v1373 = vcombine.low %v1340, %v1356
  %v1374 = vcombine.high %v1340, %v1356
  %v1376 = vunpack.c.l.s4 1934713408
  %v1377 = vunpack.c.0.s8 %v1376
  %v1378 = vlaneseq
  %v1379 = vshrl.u32 %v1378, 7
  %v1380 = vsub.s32 %v1377, %v1379
  %v1381 = vrot.slane %v1373, %v1380
  %v1383 = vunpack.c.l.s4 1934713408
  %v1384 = vunpack.c.0.s8 %v1383
  %v1385 = vlaneseq
  %v1386 = vshrl.u32 %v1385, 7
  %v1387 = vsub.s32 %v1384, %v1386
  %v1388 = vrot.slane %v1374, %v1387
  %v1389 = vcombine.high %v1365, 0.0
  %v1390 = vcombine.high %v1372, 0.0
  %v1391 = vcombine.high %v1381, 0.0
  %v1392 = vcombine.high %v1388, 0.0
  %1394 = vrot.lane.b32.xlu0 %v1321, 16
  %v1395 = vpop.permute.xlu0 %1394
  %1398 = vrot.lane.b32.xlu0 %v1304, 32
  %v1399 = vpop.permute.xlu0 %1398
  %1402 = vrot.lane.b32.xlu0 %v1322, 48
  %v1403 = vpop.permute.xlu0 %1402
  %1406 = vrot.lane.b32.xlu0 %v1313, 64
  %v1407 = vpop.permute.xlu0 %1406
  %1410 = vrot.lane.b32.xlu0 %v1323, 80
  %v1411 = vpop.permute.xlu0 %1410
  %1414 = vrot.lane.b32.xlu0 %v1320, 96
  %v1415 = vpop.permute.xlu0 %1414
  %1418 = vrot.lane.b32.xlu0 %v1324, 112
  %v1419 = vpop.permute.xlu0 %1418
  %1422 = vrot.lane.b32.xlu0 %v1389, 16
  %v1423 = vpop.permute.xlu0 %1422
  %1426 = vrot.lane.b32.xlu0 %v1372, 32
  %v1427 = vpop.permute.xlu0 %1426
  %1430 = vrot.lane.b32.xlu0 %v1390, 48
  %v1431 = vpop.permute.xlu0 %1430
  %1434 = vrot.lane.b32.xlu0 %v1381, 64
  %v1435 = vpop.permute.xlu0 %1434
  %1438 = vrot.lane.b32.xlu0 %v1391, 80
  %v1439 = vpop.permute.xlu0 %1438
  %1442 = vrot.lane.b32.xlu0 %v1388, 96
  %v1443 = vpop.permute.xlu0 %1442
  %1446 = vrot.lane.b32.xlu0 %v1392, 112
  %v1447 = vpop.permute.xlu0 %1446
  %v1449 = vsel %vm481, %v1297, %v1395
  %v1450 = vsel %vm483, %v1449, %v1399
  %v1451 = vsel %vm485, %v1450, %v1403
  %v1452 = vsel %vm487, %v1451, %v1407
  %v1453 = vsel %vm489, %v1452, %v1411
  %v1454 = vsel %vm491, %v1453, %v1415
  %v1455 = vsel %vm493, %v1454, %v1419
  %v1456 = vsel %vm481, %v1365, %v1423
  %v1457 = vsel %vm483, %v1456, %v1427
  %v1458 = vsel %vm485, %v1457, %v1431
  %v1459 = vsel %vm487, %v1458, %v1435
  %v1460 = vsel %vm489, %v1459, %v1439
  %v1461 = vsel %vm491, %v1460, %v1443
  %v1462 = vsel %vm493, %v1461, %v1447
  %v1465 = vrot.slane %v1455, 4
  %v1466 = vrot.slane %v1462, 4
  %1469 = vst [vmem:[#allocation3 + $0x40] sm:$0xf0] %v1465
  %1470 = vst [vmem:[#allocation3 + $0x48] sm:$0xf0] %v1466
  %vm1471 = vcmask 1045504
  %v1472 = vrot.slane %v277, 2
  %v1473 = vrot.slane %v278, 2
  %v1474 = vsel %vm1471, %v1472, %v1473
  %v1475 = vrot.slane %v279, 2
  %v1476 = vsel %vm1471, %v1473, %v1475
  %v1477 = vrot.slane %v280, 2
  %v1478 = vrot.slane %v281, 2
  %v1479 = vsel %vm1471, %v1477, %v1478
  %v1480 = vrot.slane %v282, 2
  %v1481 = vsel %vm1471, %v1478, %v1480
  %v1482 = vrot.slane %v283, 2
  %v1483 = vrot.slane %v284, 2
  %v1484 = vsel %vm1471, %v1482, %v1483
  %v1485 = vrot.slane %v285, 2
  %v1486 = vsel %vm1471, %v1483, %v1485
  %v1487 = vrot.slane %v286, 2
  %v1488 = vrot.slane %v287, 2
  %v1489 = vsel %vm1471, %v1487, %v1488
  %v1490 = vrot.slane %v288, 2
  %v1491 = vsel %vm1471, %v1488, %v1490
  %v1500 = vcombine.low %v1474, %v1484
  %v1501 = vcombine.high %v1474, %v1484
  %v1503 = vunpack.c.l.s4 1983009808
  %v1504 = vunpack.c.0.s8 %v1503
  %v1505 = vlaneseq
  %v1506 = vshrl.u32 %v1505, 7
  %v1507 = vsub.s32 %v1504, %v1506
  %v1508 = vrot.slane %v1500, %v1507
  %v1510 = vunpack.c.l.s4 1983009808
  %v1511 = vunpack.c.0.s8 %v1510
  %v1512 = vlaneseq
  %v1513 = vshrl.u32 %v1512, 7
  %v1514 = vsub.s32 %v1511, %v1513
  %v1515 = vrot.slane %v1501, %v1514
  %v1516 = vcombine.low %v1479, %v1489
  %v1517 = vcombine.high %v1479, %v1489
  %v1519 = vunpack.c.l.s4 1983009808
  %v1520 = vunpack.c.0.s8 %v1519
  %v1521 = vlaneseq
  %v1522 = vshrl.u32 %v1521, 7
  %v1523 = vsub.s32 %v1520, %v1522
  %v1524 = vrot.slane %v1516, %v1523
  %v1526 = vunpack.c.l.s4 1983009808
  %v1527 = vunpack.c.0.s8 %v1526
  %v1528 = vlaneseq
  %v1529 = vshrl.u32 %v1528, 7
  %v1530 = vsub.s32 %v1527, %v1529
  %v1531 = vrot.slane %v1517, %v1530
  %v1532 = vcombine.low %v1508, %v1524
  %v1533 = vcombine.high %v1508, %v1524
  %v1535 = vunpack.c.l.s4 1934713408
  %v1536 = vunpack.c.0.s8 %v1535
  %v1537 = vlaneseq
  %v1538 = vshrl.u32 %v1537, 7
  %v1539 = vsub.s32 %v1536, %v1538
  %v1540 = vrot.slane %v1532, %v1539
  %v1542 = vunpack.c.l.s4 1934713408
  %v1543 = vunpack.c.0.s8 %v1542
  %v1544 = vlaneseq
  %v1545 = vshrl.u32 %v1544, 7
  %v1546 = vsub.s32 %v1543, %v1545
  %v1547 = vrot.slane %v1533, %v1546
  %v1548 = vcombine.low %v1515, %v1531
  %v1549 = vcombine.high %v1515, %v1531
  %v1551 = vunpack.c.l.s4 1934713408
  %v1552 = vunpack.c.0.s8 %v1551
  %v1553 = vlaneseq
  %v1554 = vshrl.u32 %v1553, 7
  %v1555 = vsub.s32 %v1552, %v1554
  %v1556 = vrot.slane %v1548, %v1555
  %v1558 = vunpack.c.l.s4 1934713408
  %v1559 = vunpack.c.0.s8 %v1558
  %v1560 = vlaneseq
  %v1561 = vshrl.u32 %v1560, 7
  %v1562 = vsub.s32 %v1559, %v1561
  %v1563 = vrot.slane %v1549, %v1562
  %v1564 = vcombine.high %v1540, 0.0
  %v1565 = vcombine.high %v1547, 0.0
  %v1566 = vcombine.high %v1556, 0.0
  %v1567 = vcombine.high %v1563, 0.0
  %v1568 = vcombine.low %v1476, %v1486
  %v1569 = vcombine.high %v1476, %v1486
  %v1571 = vunpack.c.l.s4 1983009808
  %v1572 = vunpack.c.0.s8 %v1571
  %v1573 = vlaneseq
  %v1574 = vshrl.u32 %v1573, 7
  %v1575 = vsub.s32 %v1572, %v1574
  %v1576 = vrot.slane %v1568, %v1575
  %v1578 = vunpack.c.l.s4 1983009808
  %v1579 = vunpack.c.0.s8 %v1578
  %v1580 = vlaneseq
  %v1581 = vshrl.u32 %v1580, 7
  %v1582 = vsub.s32 %v1579, %v1581
  %v1583 = vrot.slane %v1569, %v1582
  %v1584 = vcombine.low %v1481, %v1491
  %v1585 = vcombine.high %v1481, %v1491
  %v1587 = vunpack.c.l.s4 1983009808
  %v1588 = vunpack.c.0.s8 %v1587
  %v1589 = vlaneseq
  %v1590 = vshrl.u32 %v1589, 7
  %v1591 = vsub.s32 %v1588, %v1590
  %v1592 = vrot.slane %v1584, %v1591
  %v1594 = vunpack.c.l.s4 1983009808
  %v1595 = vunpack.c.0.s8 %v1594
  %v1596 = vlaneseq
  %v1597 = vshrl.u32 %v1596, 7
  %v1598 = vsub.s32 %v1595, %v1597
  %v1599 = vrot.slane %v1585, %v1598
  %v1600 = vcombine.low %v1576, %v1592
  %v1601 = vcombine.high %v1576, %v1592
  %v1603 = vunpack.c.l.s4 1934713408
  %v1604 = vunpack.c.0.s8 %v1603
  %v1605 = vlaneseq
  %v1606 = vshrl.u32 %v1605, 7
  %v1607 = vsub.s32 %v1604, %v1606
  %v1608 = vrot.slane %v1600, %v1607
  %v1610 = vunpack.c.l.s4 1934713408
  %v1611 = vunpack.c.0.s8 %v1610
  %v1612 = vlaneseq
  %v1613 = vshrl.u32 %v1612, 7
  %v1614 = vsub.s32 %v1611, %v1613
  %v1615 = vrot.slane %v1601, %v1614
  %v1616 = vcombine.low %v1583, %v1599
  %v1617 = vcombine.high %v1583, %v1599
  %v1619 = vunpack.c.l.s4 1934713408
  %v1620 = vunpack.c.0.s8 %v1619
  %v1621 = vlaneseq
  %v1622 = vshrl.u32 %v1621, 7
  %v1623 = vsub.s32 %v1620, %v1622
  %v1624 = vrot.slane %v1616, %v1623
  %v1626 = vunpack.c.l.s4 1934713408
  %v1627 = vunpack.c.0.s8 %v1626
  %v1628 = vlaneseq
  %v1629 = vshrl.u32 %v1628, 7
  %v1630 = vsub.s32 %v1627, %v1629
  %v1631 = vrot.slane %v1617, %v1630
  %v1632 = vcombine.high %v1608, 0.0
  %v1633 = vcombine.high %v1615, 0.0
  %v1634 = vcombine.high %v1624, 0.0
  %v1635 = vcombine.high %v1631, 0.0
  %1637 = vrot.lane.b32.xlu0 %v1564, 16
  %v1638 = vpop.permute.xlu0 %1637
  %1641 = vrot.lane.b32.xlu0 %v1547, 32
  %v1642 = vpop.permute.xlu0 %1641
  %1645 = vrot.lane.b32.xlu0 %v1565, 48
  %v1646 = vpop.permute.xlu0 %1645
  %1649 = vrot.lane.b32.xlu0 %v1556, 64
  %v1650 = vpop.permute.xlu0 %1649
  %1653 = vrot.lane.b32.xlu0 %v1566, 80
  %v1654 = vpop.permute.xlu0 %1653
  %1657 = vrot.lane.b32.xlu0 %v1563, 96
  %v1658 = vpop.permute.xlu0 %1657
  %1661 = vrot.lane.b32.xlu0 %v1567, 112
  %v1662 = vpop.permute.xlu0 %1661
  %1665 = vrot.lane.b32.xlu0 %v1632, 16
  %v1666 = vpop.permute.xlu0 %1665
  %1669 = vrot.lane.b32.xlu0 %v1615, 32
  %v1670 = vpop.permute.xlu0 %1669
  %1673 = vrot.lane.b32.xlu0 %v1633, 48
  %v1674 = vpop.permute.xlu0 %1673
  %1677 = vrot.lane.b32.xlu0 %v1624, 64
  %v1678 = vpop.permute.xlu0 %1677
  %1681 = vrot.lane.b32.xlu0 %v1634, 80
  %v1682 = vpop.permute.xlu0 %1681
  %1685 = vrot.lane.b32.xlu0 %v1631, 96
  %v1686 = vpop.permute.xlu0 %1685
  %1689 = vrot.lane.b32.xlu0 %v1635, 112
  %v1690 = vpop.permute.xlu0 %1689
  %v1692 = vsel %vm481, %v1540, %v1638
  %v1693 = vsel %vm483, %v1692, %v1642
  %v1694 = vsel %vm485, %v1693, %v1646
  %v1695 = vsel %vm487, %v1694, %v1650
  %v1696 = vsel %vm489, %v1695, %v1654
  %v1697 = vsel %vm491, %v1696, %v1658
  %v1698 = vsel %vm493, %v1697, %v1662
  %v1699 = vsel %vm481, %v1608, %v1666
  %v1700 = vsel %vm483, %v1699, %v1670
  %v1701 = vsel %vm485, %v1700, %v1674
  %v1702 = vsel %vm487, %v1701, %v1678
  %v1703 = vsel %vm489, %v1702, %v1682
  %v1704 = vsel %vm491, %v1703, %v1686
  %v1705 = vsel %vm493, %v1704, %v1690
  %1706 = vst [vmem:[#allocation3 + $0x60] sm:$0xf] %v1698
  %1707 = vst [vmem:[#allocation3 + $0x68] sm:$0xf] %v1705
  %1708 = vrot.lane.b32.xlu0 %v1474, 127
  %v1709 = vpop.permute.xlu0 %1708
  %1710 = vrot.lane.b32.xlu0 %v1476, 127
  %v1711 = vpop.permute.xlu0 %1710
  %1712 = vrot.lane.b32.xlu0 %v1479, 127
  %v1713 = vpop.permute.xlu0 %1712
  %1714 = vrot.lane.b32.xlu0 %v1481, 127
  %v1715 = vpop.permute.xlu0 %1714
  %1716 = vrot.lane.b32.xlu0 %v1484, 127
  %v1717 = vpop.permute.xlu0 %1716
  %1718 = vrot.lane.b32.xlu0 %v1486, 127
  %v1719 = vpop.permute.xlu0 %1718
  %1720 = vrot.lane.b32.xlu0 %v1489, 127
  %v1721 = vpop.permute.xlu0 %1720
  %1722 = vrot.lane.b32.xlu0 %v1491, 127
  %v1723 = vpop.permute.xlu0 %1722
  %v1732 = vcombine.low %v1709, %v1717
  %v1733 = vcombine.high %v1709, %v1717
  %v1735 = vunpack.c.l.s4 1983009808
  %v1736 = vunpack.c.0.s8 %v1735
  %v1737 = vlaneseq
  %v1738 = vshrl.u32 %v1737, 7
  %v1739 = vsub.s32 %v1736, %v1738
  %v1740 = vrot.slane %v1732, %v1739
  %v1742 = vunpack.c.l.s4 1983009808
  %v1743 = vunpack.c.0.s8 %v1742
  %v1744 = vlaneseq
  %v1745 = vshrl.u32 %v1744, 7
  %v1746 = vsub.s32 %v1743, %v1745
  %v1747 = vrot.slane %v1733, %v1746
  %v1748 = vcombine.low %v1713, %v1721
  %v1749 = vcombine.high %v1713, %v1721
  %v1751 = vunpack.c.l.s4 1983009808
  %v1752 = vunpack.c.0.s8 %v1751
  %v1753 = vlaneseq
  %v1754 = vshrl.u32 %v1753, 7
  %v1755 = vsub.s32 %v1752, %v1754
  %v1756 = vrot.slane %v1748, %v1755
  %v1758 = vunpack.c.l.s4 1983009808
  %v1759 = vunpack.c.0.s8 %v1758
  %v1760 = vlaneseq
  %v1761 = vshrl.u32 %v1760, 7
  %v1762 = vsub.s32 %v1759, %v1761
  %v1763 = vrot.slane %v1749, %v1762
  %v1764 = vcombine.low %v1740, %v1756
  %v1765 = vcombine.high %v1740, %v1756
  %v1767 = vunpack.c.l.s4 1934713408
  %v1768 = vunpack.c.0.s8 %v1767
  %v1769 = vlaneseq
  %v1770 = vshrl.u32 %v1769, 7
  %v1771 = vsub.s32 %v1768, %v1770
  %v1772 = vrot.slane %v1764, %v1771
  %v1774 = vunpack.c.l.s4 1934713408
  %v1775 = vunpack.c.0.s8 %v1774
  %v1776 = vlaneseq
  %v1777 = vshrl.u32 %v1776, 7
  %v1778 = vsub.s32 %v1775, %v1777
  %v1779 = vrot.slane %v1765, %v1778
  %v1780 = vcombine.low %v1747, %v1763
  %v1781 = vcombine.high %v1747, %v1763
  %v1783 = vunpack.c.l.s4 1934713408
  %v1784 = vunpack.c.0.s8 %v1783
  %v1785 = vlaneseq
  %v1786 = vshrl.u32 %v1785, 7
  %v1787 = vsub.s32 %v1784, %v1786
  %v1788 = vrot.slane %v1780, %v1787
  %v1790 = vunpack.c.l.s4 1934713408
  %v1791 = vunpack.c.0.s8 %v1790
  %v1792 = vlaneseq
  %v1793 = vshrl.u32 %v1792, 7
  %v1794 = vsub.s32 %v1791, %v1793
  %v1795 = vrot.slane %v1781, %v1794
  %v1796 = vcombine.high %v1772, 0.0
  %v1797 = vcombine.high %v1779, 0.0
  %v1798 = vcombine.high %v1788, 0.0
  %v1799 = vcombine.high %v1795, 0.0
  %v1800 = vcombine.low %v1711, %v1719
  %v1801 = vcombine.high %v1711, %v1719
  %v1803 = vunpack.c.l.s4 1983009808
  %v1804 = vunpack.c.0.s8 %v1803
  %v1805 = vlaneseq
  %v1806 = vshrl.u32 %v1805, 7
  %v1807 = vsub.s32 %v1804, %v1806
  %v1808 = vrot.slane %v1800, %v1807
  %v1810 = vunpack.c.l.s4 1983009808
  %v1811 = vunpack.c.0.s8 %v1810
  %v1812 = vlaneseq
  %v1813 = vshrl.u32 %v1812, 7
  %v1814 = vsub.s32 %v1811, %v1813
  %v1815 = vrot.slane %v1801, %v1814
  %v1816 = vcombine.low %v1715, %v1723
  %v1817 = vcombine.high %v1715, %v1723
  %v1819 = vunpack.c.l.s4 1983009808
  %v1820 = vunpack.c.0.s8 %v1819
  %v1821 = vlaneseq
  %v1822 = vshrl.u32 %v1821, 7
  %v1823 = vsub.s32 %v1820, %v1822
  %v1824 = vrot.slane %v1816, %v1823
  %v1826 = vunpack.c.l.s4 1983009808
  %v1827 = vunpack.c.0.s8 %v1826
  %v1828 = vlaneseq
  %v1829 = vshrl.u32 %v1828, 7
  %v1830 = vsub.s32 %v1827, %v1829
  %v1831 = vrot.slane %v1817, %v1830
  %v1832 = vcombine.low %v1808, %v1824
  %v1833 = vcombine.high %v1808, %v1824
  %v1835 = vunpack.c.l.s4 1934713408
  %v1836 = vunpack.c.0.s8 %v1835
  %v1837 = vlaneseq
  %v1838 = vshrl.u32 %v1837, 7
  %v1839 = vsub.s32 %v1836, %v1838
  %v1840 = vrot.slane %v1832, %v1839
  %v1842 = vunpack.c.l.s4 1934713408
  %v1843 = vunpack.c.0.s8 %v1842
  %v1844 = vlaneseq
  %v1845 = vshrl.u32 %v1844, 7
  %v1846 = vsub.s32 %v1843, %v1845
  %v1847 = vrot.slane %v1833, %v1846
  %v1848 = vcombine.low %v1815, %v1831
  %v1849 = vcombine.high %v1815, %v1831
  %v1851 = vunpack.c.l.s4 1934713408
  %v1852 = vunpack.c.0.s8 %v1851
  %v1853 = vlaneseq
  %v1854 = vshrl.u32 %v1853, 7
  %v1855 = vsub.s32 %v1852, %v1854
  %v1856 = vrot.slane %v1848, %v1855
  %v1858 = vunpack.c.l.s4 1934713408
  %v1859 = vunpack.c.0.s8 %v1858
  %v1860 = vlaneseq
  %v1861 = vshrl.u32 %v1860, 7
  %v1862 = vsub.s32 %v1859, %v1861
  %v1863 = vrot.slane %v1849, %v1862
  %v1864 = vcombine.high %v1840, 0.0
  %v1865 = vcombine.high %v1847, 0.0
  %v1866 = vcombine.high %v1856, 0.0
  %v1867 = vcombine.high %v1863, 0.0
  %1869 = vrot.lane.b32.xlu0 %v1796, 16
  %v1870 = vpop.permute.xlu0 %1869
  %1873 = vrot.lane.b32.xlu0 %v1779, 32
  %v1874 = vpop.permute.xlu0 %1873
  %1877 = vrot.lane.b32.xlu0 %v1797, 48
  %v1878 = vpop.permute.xlu0 %1877
  %1881 = vrot.lane.b32.xlu0 %v1788, 64
  %v1882 = vpop.permute.xlu0 %1881
  %1885 = vrot.lane.b32.xlu0 %v1798, 80
  %v1886 = vpop.permute.xlu0 %1885
  %1889 = vrot.lane.b32.xlu0 %v1795, 96
  %v1890 = vpop.permute.xlu0 %1889
  %1893 = vrot.lane.b32.xlu0 %v1799, 112
  %v1894 = vpop.permute.xlu0 %1893
  %1897 = vrot.lane.b32.xlu0 %v1864, 16
  %v1898 = vpop.permute.xlu0 %1897
  %1901 = vrot.lane.b32.xlu0 %v1847, 32
  %v1902 = vpop.permute.xlu0 %1901
  %1905 = vrot.lane.b32.xlu0 %v1865, 48
  %v1906 = vpop.permute.xlu0 %1905
  %1909 = vrot.lane.b32.xlu0 %v1856, 64
  %v1910 = vpop.permute.xlu0 %1909
  %1913 = vrot.lane.b32.xlu0 %v1866, 80
  %v1914 = vpop.permute.xlu0 %1913
  %1917 = vrot.lane.b32.xlu0 %v1863, 96
  %v1918 = vpop.permute.xlu0 %1917
  %1921 = vrot.lane.b32.xlu0 %v1867, 112
  %v1922 = vpop.permute.xlu0 %1921
  %v1924 = vsel %vm481, %v1772, %v1870
  %v1925 = vsel %vm483, %v1924, %v1874
  %v1926 = vsel %vm485, %v1925, %v1878
  %v1927 = vsel %vm487, %v1926, %v1882
  %v1928 = vsel %vm489, %v1927, %v1886
  %v1929 = vsel %vm491, %v1928, %v1890
  %v1930 = vsel %vm493, %v1929, %v1894
  %v1931 = vsel %vm481, %v1840, %v1898
  %v1932 = vsel %vm483, %v1931, %v1902
  %v1933 = vsel %vm485, %v1932, %v1906
  %v1934 = vsel %vm487, %v1933, %v1910
  %v1935 = vsel %vm489, %v1934, %v1914
  %v1936 = vsel %vm491, %v1935, %v1918
  %v1937 = vsel %vm493, %v1936, %v1922
  %v1940 = vrot.slane %v1930, 4
  %v1941 = vrot.slane %v1937, 4
  %1944 = vst [vmem:[#allocation3 + $0x60] sm:$0xf0] %v1940
  %1945 = vst [vmem:[#allocation3 + $0x68] sm:$0xf0] %v1941
  %1946 = vrot.lane.b32.xlu0 %v1474, 126
  %v1947 = vpop.permute.xlu0 %1946
  %1948 = vrot.lane.b32.xlu0 %v1476, 126
  %v1949 = vpop.permute.xlu0 %1948
  %1950 = vrot.lane.b32.xlu0 %v1479, 126
  %v1951 = vpop.permute.xlu0 %1950
  %1952 = vrot.lane.b32.xlu0 %v1481, 126
  %v1953 = vpop.permute.xlu0 %1952
  %1954 = vrot.lane.b32.xlu0 %v1484, 126
  %v1955 = vpop.permute.xlu0 %1954
  %1956 = vrot.lane.b32.xlu0 %v1486, 126
  %v1957 = vpop.permute.xlu0 %1956
  %1958 = vrot.lane.b32.xlu0 %v1489, 126
  %v1959 = vpop.permute.xlu0 %1958
  %1960 = vrot.lane.b32.xlu0 %v1491, 126
  %v1961 = vpop.permute.xlu0 %1960
  %v1970 = vcombine.low %v1947, %v1955
  %v1971 = vcombine.high %v1947, %v1955
  %v1973 = vunpack.c.l.s4 1983009808
  %v1974 = vunpack.c.0.s8 %v1973
  %v1975 = vlaneseq
  %v1976 = vshrl.u32 %v1975, 7
  %v1977 = vsub.s32 %v1974, %v1976
  %v1978 = vrot.slane %v1970, %v1977
  %v1980 = vunpack.c.l.s4 1983009808
  %v1981 = vunpack.c.0.s8 %v1980
  %v1982 = vlaneseq
  %v1983 = vshrl.u32 %v1982, 7
  %v1984 = vsub.s32 %v1981, %v1983
  %v1985 = vrot.slane %v1971, %v1984
  %v1986 = vcombine.low %v1951, %v1959
  %v1987 = vcombine.high %v1951, %v1959
  %v1989 = vunpack.c.l.s4 1983009808
  %v1990 = vunpack.c.0.s8 %v1989
  %v1991 = vlaneseq
  %v1992 = vshrl.u32 %v1991, 7
  %v1993 = vsub.s32 %v1990, %v1992
  %v1994 = vrot.slane %v1986, %v1993
  %v1996 = vunpack.c.l.s4 1983009808
  %v1997 = vunpack.c.0.s8 %v1996
  %v1998 = vlaneseq
  %v1999 = vshrl.u32 %v1998, 7
  %v2000 = vsub.s32 %v1997, %v1999
  %v2001 = vrot.slane %v1987, %v2000
  %v2002 = vcombine.low %v1978, %v1994
  %v2003 = vcombine.high %v1978, %v1994
  %v2005 = vunpack.c.l.s4 1934713408
  %v2006 = vunpack.c.0.s8 %v2005
  %v2007 = vlaneseq
  %v2008 = vshrl.u32 %v2007, 7
  %v2009 = vsub.s32 %v2006, %v2008
  %v2010 = vrot.slane %v2002, %v2009
  %v2012 = vunpack.c.l.s4 1934713408
  %v2013 = vunpack.c.0.s8 %v2012
  %v2014 = vlaneseq
  %v2015 = vshrl.u32 %v2014, 7
  %v2016 = vsub.s32 %v2013, %v2015
  %v2017 = vrot.slane %v2003, %v2016
  %v2018 = vcombine.low %v1985, %v2001
  %v2019 = vcombine.high %v1985, %v2001
  %v2021 = vunpack.c.l.s4 1934713408
  %v2022 = vunpack.c.0.s8 %v2021
  %v2023 = vlaneseq
  %v2024 = vshrl.u32 %v2023, 7
  %v2025 = vsub.s32 %v2022, %v2024
  %v2026 = vrot.slane %v2018, %v2025
  %v2028 = vunpack.c.l.s4 1934713408
  %v2029 = vunpack.c.0.s8 %v2028
  %v2030 = vlaneseq
  %v2031 = vshrl.u32 %v2030, 7
  %v2032 = vsub.s32 %v2029, %v2031
  %v2033 = vrot.slane %v2019, %v2032
  %v2034 = vcombine.high %v2010, 0.0
  %v2035 = vcombine.high %v2017, 0.0
  %v2036 = vcombine.high %v2026, 0.0
  %v2037 = vcombine.high %v2033, 0.0
  %v2038 = vcombine.low %v1949, %v1957
  %v2039 = vcombine.high %v1949, %v1957
  %v2041 = vunpack.c.l.s4 1983009808
  %v2042 = vunpack.c.0.s8 %v2041
  %v2043 = vlaneseq
  %v2044 = vshrl.u32 %v2043, 7
  %v2045 = vsub.s32 %v2042, %v2044
  %v2046 = vrot.slane %v2038, %v2045
  %v2048 = vunpack.c.l.s4 1983009808
  %v2049 = vunpack.c.0.s8 %v2048
  %v2050 = vlaneseq
  %v2051 = vshrl.u32 %v2050, 7
  %v2052 = vsub.s32 %v2049, %v2051
  %v2053 = vrot.slane %v2039, %v2052
  %v2054 = vcombine.low %v1953, %v1961
  %v2055 = vcombine.high %v1953, %v1961
  %v2057 = vunpack.c.l.s4 1983009808
  %v2058 = vunpack.c.0.s8 %v2057
  %v2059 = vlaneseq
  %v2060 = vshrl.u32 %v2059, 7
  %v2061 = vsub.s32 %v2058, %v2060
  %v2062 = vrot.slane %v2054, %v2061
  %v2064 = vunpack.c.l.s4 1983009808
  %v2065 = vunpack.c.0.s8 %v2064
  %v2066 = vlaneseq
  %v2067 = vshrl.u32 %v2066, 7
  %v2068 = vsub.s32 %v2065, %v2067
  %v2069 = vrot.slane %v2055, %v2068
  %v2070 = vcombine.low %v2046, %v2062
  %v2071 = vcombine.high %v2046, %v2062
  %v2073 = vunpack.c.l.s4 1934713408
  %v2074 = vunpack.c.0.s8 %v2073
  %v2075 = vlaneseq
  %v2076 = vshrl.u32 %v2075, 7
  %v2077 = vsub.s32 %v2074, %v2076
  %v2078 = vrot.slane %v2070, %v2077
  %v2080 = vunpack.c.l.s4 1934713408
  %v2081 = vunpack.c.0.s8 %v2080
  %v2082 = vlaneseq
  %v2083 = vshrl.u32 %v2082, 7
  %v2084 = vsub.s32 %v2081, %v2083
  %v2085 = vrot.slane %v2071, %v2084
  %v2086 = vcombine.low %v2053, %v2069
  %v2087 = vcombine.high %v2053, %v2069
  %v2089 = vunpack.c.l.s4 1934713408
  %v2090 = vunpack.c.0.s8 %v2089
  %v2091 = vlaneseq
  %v2092 = vshrl.u32 %v2091, 7
  %v2093 = vsub.s32 %v2090, %v2092
  %v2094 = vrot.slane %v2086, %v2093
  %v2096 = vunpack.c.l.s4 1934713408
  %v2097 = vunpack.c.0.s8 %v2096
  %v2098 = vlaneseq
  %v2099 = vshrl.u32 %v2098, 7
  %v2100 = vsub.s32 %v2097, %v2099
  %v2101 = vrot.slane %v2087, %v2100
  %v2102 = vcombine.high %v2078, 0.0
  %v2103 = vcombine.high %v2085, 0.0
  %v2104 = vcombine.high %v2094, 0.0
  %v2105 = vcombine.high %v2101, 0.0
  %2107 = vrot.lane.b32.xlu0 %v2034, 16
  %v2108 = vpop.permute.xlu0 %2107
  %2111 = vrot.lane.b32.xlu0 %v2017, 32
  %v2112 = vpop.permute.xlu0 %2111
  %2115 = vrot.lane.b32.xlu0 %v2035, 48
  %v2116 = vpop.permute.xlu0 %2115
  %2119 = vrot.lane.b32.xlu0 %v2026, 64
  %v2120 = vpop.permute.xlu0 %2119
  %2123 = vrot.lane.b32.xlu0 %v2036, 80
  %v2124 = vpop.permute.xlu0 %2123
  %2127 = vrot.lane.b32.xlu0 %v2033, 96
  %v2128 = vpop.permute.xlu0 %2127
  %2131 = vrot.lane.b32.xlu0 %v2037, 112
  %v2132 = vpop.permute.xlu0 %2131
  %2135 = vrot.lane.b32.xlu0 %v2102, 16
  %v2136 = vpop.permute.xlu0 %2135
  %2139 = vrot.lane.b32.xlu0 %v2085, 32
  %v2140 = vpop.permute.xlu0 %2139
  %2143 = vrot.lane.b32.xlu0 %v2103, 48
  %v2144 = vpop.permute.xlu0 %2143
  %2147 = vrot.lane.b32.xlu0 %v2094, 64
  %v2148 = vpop.permute.xlu0 %2147
  %2151 = vrot.lane.b32.xlu0 %v2104, 80
  %v2152 = vpop.permute.xlu0 %2151
  %2155 = vrot.lane.b32.xlu0 %v2101, 96
  %v2156 = vpop.permute.xlu0 %2155
  %2159 = vrot.lane.b32.xlu0 %v2105, 112
  %v2160 = vpop.permute.xlu0 %2159
  %v2162 = vsel %vm481, %v2010, %v2108
  %v2163 = vsel %vm483, %v2162, %v2112
  %v2164 = vsel %vm485, %v2163, %v2116
  %v2165 = vsel %vm487, %v2164, %v2120
  %v2166 = vsel %vm489, %v2165, %v2124
  %v2167 = vsel %vm491, %v2166, %v2128
  %v2168 = vsel %vm493, %v2167, %v2132
  %v2169 = vsel %vm481, %v2078, %v2136
  %v2170 = vsel %vm483, %v2169, %v2140
  %v2171 = vsel %vm485, %v2170, %v2144
  %v2172 = vsel %vm487, %v2171, %v2148
  %v2173 = vsel %vm489, %v2172, %v2152
  %v2174 = vsel %vm491, %v2173, %v2156
  %v2175 = vsel %vm493, %v2174, %v2160
  %2176 = vst [vmem:[#allocation3 + $0x80] sm:$0xf] %v2168
  %2177 = vst [vmem:[#allocation3 + $0x88] sm:$0xf] %v2175
  %s2178 = scalar_lea.vmem %s0, 8
  %v2179 = vld [vmem:[%s2178] sm:$0xff]
  %v2181 = vrot.slane %v2179, 4
  %2183 = vrot.lane.b32.xlu0 %v2179, 112
  %v2184 = vpop.permute.xlu0 %2183
  %v2185 = vrot.slane %v2184, 4
  %2187 = vrot.lane.b32.xlu0 %v2179, 96
  %v2188 = vpop.permute.xlu0 %2187
  %v2189 = vrot.slane %v2188, 4
  %2191 = vrot.lane.b32.xlu0 %v2179, 80
  %v2192 = vpop.permute.xlu0 %2191
  %v2193 = vrot.slane %v2192, 4
  %2195 = vrot.lane.b32.xlu0 %v2179, 64
  %v2196 = vpop.permute.xlu0 %2195
  %v2197 = vrot.slane %v2196, 4
  %2199 = vrot.lane.b32.xlu0 %v2179, 48
  %v2200 = vpop.permute.xlu0 %2199
  %v2201 = vrot.slane %v2200, 4
  %2203 = vrot.lane.b32.xlu0 %v2179, 32
  %v2204 = vpop.permute.xlu0 %2203
  %v2205 = vrot.slane %v2204, 4
  %2207 = vrot.lane.b32.xlu0 %v2179, 16
  %v2208 = vpop.permute.xlu0 %2207
  %v2209 = vrot.slane %v2208, 4
  %v2218 = vcombine.low %v2179, %v2188
  %v2220 = vunpack.c.l.s4 1983009808
  %v2221 = vunpack.c.0.s8 %v2220
  %v2222 = vlaneseq
  %v2223 = vshrl.u32 %v2222, 7
  %v2224 = vsub.s32 %v2221, %v2223
  %v2225 = vrot.slane %v2218, %v2224
  %v2226 = vcombine.low %v2184, %v2192
  %v2228 = vunpack.c.l.s4 1983009808
  %v2229 = vunpack.c.0.s8 %v2228
  %v2230 = vlaneseq
  %v2231 = vshrl.u32 %v2230, 7
  %v2232 = vsub.s32 %v2229, %v2231
  %v2233 = vrot.slane %v2226, %v2232
  %v2234 = vcombine.low %v2225, %v2233
  %v2235 = vcombine.high %v2225, %v2233
  %v2237 = vunpack.c.l.s4 1934713408
  %v2238 = vunpack.c.0.s8 %v2237
  %v2239 = vlaneseq
  %v2240 = vshrl.u32 %v2239, 7
  %v2241 = vsub.s32 %v2238, %v2240
  %v2242 = vrot.slane %v2234, %v2241
  %v2244 = vunpack.c.l.s4 1934713408
  %v2245 = vunpack.c.0.s8 %v2244
  %v2246 = vlaneseq
  %v2247 = vshrl.u32 %v2246, 7
  %v2248 = vsub.s32 %v2245, %v2247
  %v2249 = vrot.slane %v2235, %v2248
  %v2250 = vcombine.high %v2242, 0.0
  %v2251 = vcombine.high %v2249, 0.0
  %v2252 = vcombine.low %v2196, %v2204
  %v2254 = vunpack.c.l.s4 1983009808
  %v2255 = vunpack.c.0.s8 %v2254
  %v2256 = vlaneseq
  %v2257 = vshrl.u32 %v2256, 7
  %v2258 = vsub.s32 %v2255, %v2257
  %v2259 = vrot.slane %v2252, %v2258
  %v2260 = vcombine.low %v2200, %v2208
  %v2262 = vunpack.c.l.s4 1983009808
  %v2263 = vunpack.c.0.s8 %v2262
  %v2264 = vlaneseq
  %v2265 = vshrl.u32 %v2264, 7
  %v2266 = vsub.s32 %v2263, %v2265
  %v2267 = vrot.slane %v2260, %v2266
  %v2268 = vcombine.low %v2259, %v2267
  %v2269 = vcombine.high %v2259, %v2267
  %v2271 = vunpack.c.l.s4 1934713408
  %v2272 = vunpack.c.0.s8 %v2271
  %v2273 = vlaneseq
  %v2274 = vshrl.u32 %v2273, 7
  %v2275 = vsub.s32 %v2272, %v2274
  %v2276 = vrot.slane %v2268, %v2275
  %v2278 = vunpack.c.l.s4 1934713408
  %v2279 = vunpack.c.0.s8 %v2278
  %v2280 = vlaneseq
  %v2281 = vshrl.u32 %v2280, 7
  %v2282 = vsub.s32 %v2279, %v2281
  %v2283 = vrot.slane %v2269, %v2282
  %v2284 = vcombine.high %v2276, 0.0
  %v2285 = vcombine.high %v2283, 0.0
  %v2286 = vcombine.low %v2181, %v2189
  %v2288 = vunpack.c.l.s4 1983009808
  %v2289 = vunpack.c.0.s8 %v2288
  %v2290 = vlaneseq
  %v2291 = vshrl.u32 %v2290, 7
  %v2292 = vsub.s32 %v2289, %v2291
  %v2293 = vrot.slane %v2286, %v2292
  %v2294 = vcombine.low %v2185, %v2193
  %v2296 = vunpack.c.l.s4 1983009808
  %v2297 = vunpack.c.0.s8 %v2296
  %v2298 = vlaneseq
  %v2299 = vshrl.u32 %v2298, 7
  %v2300 = vsub.s32 %v2297, %v2299
  %v2301 = vrot.slane %v2294, %v2300
  %v2302 = vcombine.low %v2293, %v2301
  %v2303 = vcombine.high %v2293, %v2301
  %v2305 = vunpack.c.l.s4 1934713408
  %v2306 = vunpack.c.0.s8 %v2305
  %v2307 = vlaneseq
  %v2308 = vshrl.u32 %v2307, 7
  %v2309 = vsub.s32 %v2306, %v2308
  %v2310 = vrot.slane %v2302, %v2309
  %v2312 = vunpack.c.l.s4 1934713408
  %v2313 = vunpack.c.0.s8 %v2312
  %v2314 = vlaneseq
  %v2315 = vshrl.u32 %v2314, 7
  %v2316 = vsub.s32 %v2313, %v2315
  %v2317 = vrot.slane %v2303, %v2316
  %v2318 = vcombine.high %v2310, 0.0
  %v2319 = vcombine.high %v2317, 0.0
  %v2320 = vcombine.low %v2197, %v2205
  %v2322 = vunpack.c.l.s4 1983009808
  %v2323 = vunpack.c.0.s8 %v2322
  %v2324 = vlaneseq
  %v2325 = vshrl.u32 %v2324, 7
  %v2326 = vsub.s32 %v2323, %v2325
  %v2327 = vrot.slane %v2320, %v2326
  %v2328 = vcombine.low %v2201, %v2209
  %v2330 = vunpack.c.l.s4 1983009808
  %v2331 = vunpack.c.0.s8 %v2330
  %v2332 = vlaneseq
  %v2333 = vshrl.u32 %v2332, 7
  %v2334 = vsub.s32 %v2331, %v2333
  %v2335 = vrot.slane %v2328, %v2334
  %v2336 = vcombine.low %v2327, %v2335
  %v2337 = vcombine.high %v2327, %v2335
  %v2339 = vunpack.c.l.s4 1934713408
  %v2340 = vunpack.c.0.s8 %v2339
  %v2341 = vlaneseq
  %v2342 = vshrl.u32 %v2341, 7
  %v2343 = vsub.s32 %v2340, %v2342
  %v2344 = vrot.slane %v2336, %v2343
  %v2346 = vunpack.c.l.s4 1934713408
  %v2347 = vunpack.c.0.s8 %v2346
  %v2348 = vlaneseq
  %v2349 = vshrl.u32 %v2348, 7
  %v2350 = vsub.s32 %v2347, %v2349
  %v2351 = vrot.slane %v2337, %v2350
  %v2352 = vcombine.high %v2344, 0.0
  %v2353 = vcombine.high %v2351, 0.0
  %v2370 = vcombine.low %v2242, %v2276
  %v2371 = vcombine.low %v2310, %v2344
  %v2372 = vcombine.low %v2250, %v2284
  %v2373 = vcombine.low %v2318, %v2352
  %v2374 = vcombine.low %v2249, %v2283
  %v2375 = vcombine.low %v2317, %v2351
  %v2376 = vcombine.low %v2251, %v2285
  %v2377 = vcombine.low %v2319, %v2353
  %2378 = vrot.lane.b32.xlu0 %v2370, 1
  %v2379 = vpop.permute.xlu0 %2378
  %2380 = vrot.lane.b32.xlu0 %v2371, 1
  %v2381 = vpop.permute.xlu0 %2380
  %2382 = vrot.lane.b32.xlu0 %v2372, 1
  %v2383 = vpop.permute.xlu0 %2382
  %2384 = vrot.lane.b32.xlu0 %v2373, 1
  %v2385 = vpop.permute.xlu0 %2384
  %2386 = vrot.lane.b32.xlu0 %v2374, 1
  %v2387 = vpop.permute.xlu0 %2386
  %2388 = vrot.lane.b32.xlu0 %v2375, 1
  %v2389 = vpop.permute.xlu0 %2388
  %2390 = vrot.lane.b32.xlu0 %v2376, 1
  %v2391 = vpop.permute.xlu0 %2390
  %2392 = vrot.lane.b32.xlu0 %v2377, 1
  %v2393 = vpop.permute.xlu0 %2392
  %s2402 = scalar_lea.vmem [#allocation2], 96
  %2403 = vst.msk [vmem:[%s2402 + $0x1] sm:$0xff] %vm268, %v2379
  %2404 = vst.msk [vmem:[%s2402 + $0x9] sm:$0xff] %vm268, %v2381
  %2405 = vst.msk [vmem:[%s2402 + $0x19] sm:$0xff] %vm268, %v2383
  %2406 = vst.msk [vmem:[%s2402 + $0x21] sm:$0xff] %vm268, %v2385
  %2407 = vst.msk [vmem:[%s2402 + $0x31] sm:$0xff] %vm268, %v2387
  %2408 = vst.msk [vmem:[%s2402 + $0x39] sm:$0xff] %vm268, %v2389
  %2409 = vst.msk [vmem:[%s2402 + $0x49] sm:$0xff] %vm268, %v2391
  %2410 = vst.msk [vmem:[%s2402 + $0x51] sm:$0xff] %vm268, %v2393
  %v2411 = vld [vmem:[%s2402] sm:$0xff]
  %v2412 = vld [vmem:[%s2402 + $0x8] sm:$0xff]
  %v2413 = vld [vmem:[%s2402 + $0x10] sm:$0x3]
  %v2414 = vld [vmem:[%s2402 + $0x18] sm:$0xff]
  %v2415 = vld [vmem:[%s2402 + $0x20] sm:$0xff]
  %v2416 = vld [vmem:[%s2402 + $0x28] sm:$0x3]
  %v2417 = vld [vmem:[%s2402 + $0x30] sm:$0xff]
  %v2418 = vld [vmem:[%s2402 + $0x38] sm:$0xff]
  %v2419 = vld [vmem:[%s2402 + $0x40] sm:$0x3]
  %v2420 = vld [vmem:[%s2402 + $0x48] sm:$0xff]
  %v2421 = vld [vmem:[%s2402 + $0x50] sm:$0xff]
  %v2422 = vld [vmem:[%s2402 + $0x58] sm:$0x3]
  %v2423 = vcombine.low %v2411, %v2417
  %v2424 = vcombine.high %v2411, %v2417
  %v2426 = vunpack.c.l.s4 1983009808
  %v2427 = vunpack.c.0.s8 %v2426
  %v2428 = vlaneseq
  %v2429 = vshrl.u32 %v2428, 7
  %v2430 = vsub.s32 %v2427, %v2429
  %v2431 = vrot.slane %v2423, %v2430
  %v2433 = vunpack.c.l.s4 1983009808
  %v2434 = vunpack.c.0.s8 %v2433
  %v2435 = vlaneseq
  %v2436 = vshrl.u32 %v2435, 7
  %v2437 = vsub.s32 %v2434, %v2436
  %v2438 = vrot.slane %v2424, %v2437
  %v2439 = vcombine.low %v2414, %v2420
  %v2440 = vcombine.high %v2414, %v2420
  %v2442 = vunpack.c.l.s4 1983009808
  %v2443 = vunpack.c.0.s8 %v2442
  %v2444 = vlaneseq
  %v2445 = vshrl.u32 %v2444, 7
  %v2446 = vsub.s32 %v2443, %v2445
  %v2447 = vrot.slane %v2439, %v2446
  %v2449 = vunpack.c.l.s4 1983009808
  %v2450 = vunpack.c.0.s8 %v2449
  %v2451 = vlaneseq
  %v2452 = vshrl.u32 %v2451, 7
  %v2453 = vsub.s32 %v2450, %v2452
  %v2454 = vrot.slane %v2440, %v2453
  %v2455 = vcombine.low %v2431, %v2447
  %v2456 = vcombine.high %v2431, %v2447
  %v2458 = vunpack.c.l.s4 1934713408
  %v2459 = vunpack.c.0.s8 %v2458
  %v2460 = vlaneseq
  %v2461 = vshrl.u32 %v2460, 7
  %v2462 = vsub.s32 %v2459, %v2461
  %v2463 = vrot.slane %v2455, %v2462
  %v2465 = vunpack.c.l.s4 1934713408
  %v2466 = vunpack.c.0.s8 %v2465
  %v2467 = vlaneseq
  %v2468 = vshrl.u32 %v2467, 7
  %v2469 = vsub.s32 %v2466, %v2468
  %v2470 = vrot.slane %v2456, %v2469
  %v2471 = vcombine.low %v2438, %v2454
  %v2472 = vcombine.high %v2438, %v2454
  %v2474 = vunpack.c.l.s4 1934713408
  %v2475 = vunpack.c.0.s8 %v2474
  %v2476 = vlaneseq
  %v2477 = vshrl.u32 %v2476, 7
  %v2478 = vsub.s32 %v2475, %v2477
  %v2479 = vrot.slane %v2471, %v2478
  %v2481 = vunpack.c.l.s4 1934713408
  %v2482 = vunpack.c.0.s8 %v2481
  %v2483 = vlaneseq
  %v2484 = vshrl.u32 %v2483, 7
  %v2485 = vsub.s32 %v2482, %v2484
  %v2486 = vrot.slane %v2472, %v2485
  %v2487 = vcombine.high %v2463, 0.0
  %v2488 = vcombine.high %v2470, 0.0
  %v2489 = vcombine.high %v2479, 0.0
  %v2490 = vcombine.high %v2486, 0.0
  %v2491 = vcombine.low %v2412, %v2418
  %v2492 = vcombine.high %v2412, %v2418
  %v2494 = vunpack.c.l.s4 1983009808
  %v2495 = vunpack.c.0.s8 %v2494
  %v2496 = vlaneseq
  %v2497 = vshrl.u32 %v2496, 7
  %v2498 = vsub.s32 %v2495, %v2497
  %v2499 = vrot.slane %v2491, %v2498
  %v2501 = vunpack.c.l.s4 1983009808
  %v2502 = vunpack.c.0.s8 %v2501
  %v2503 = vlaneseq
  %v2504 = vshrl.u32 %v2503, 7
  %v2505 = vsub.s32 %v2502, %v2504
  %v2506 = vrot.slane %v2492, %v2505
  %v2507 = vcombine.low %v2415, %v2421
  %v2508 = vcombine.high %v2415, %v2421
  %v2510 = vunpack.c.l.s4 1983009808
  %v2511 = vunpack.c.0.s8 %v2510
  %v2512 = vlaneseq
  %v2513 = vshrl.u32 %v2512, 7
  %v2514 = vsub.s32 %v2511, %v2513
  %v2515 = vrot.slane %v2507, %v2514
  %v2517 = vunpack.c.l.s4 1983009808
  %v2518 = vunpack.c.0.s8 %v2517
  %v2519 = vlaneseq
  %v2520 = vshrl.u32 %v2519, 7
  %v2521 = vsub.s32 %v2518, %v2520
  %v2522 = vrot.slane %v2508, %v2521
  %v2523 = vcombine.low %v2499, %v2515
  %v2524 = vcombine.high %v2499, %v2515
  %v2526 = vunpack.c.l.s4 1934713408
  %v2527 = vunpack.c.0.s8 %v2526
  %v2528 = vlaneseq
  %v2529 = vshrl.u32 %v2528, 7
  %v2530 = vsub.s32 %v2527, %v2529
  %v2531 = vrot.slane %v2523, %v2530
  %v2533 = vunpack.c.l.s4 1934713408
  %v2534 = vunpack.c.0.s8 %v2533
  %v2535 = vlaneseq
  %v2536 = vshrl.u32 %v2535, 7
  %v2537 = vsub.s32 %v2534, %v2536
  %v2538 = vrot.slane %v2524, %v2537
  %v2539 = vcombine.low %v2506, %v2522
  %v2540 = vcombine.high %v2506, %v2522
  %v2542 = vunpack.c.l.s4 1934713408
  %v2543 = vunpack.c.0.s8 %v2542
  %v2544 = vlaneseq
  %v2545 = vshrl.u32 %v2544, 7
  %v2546 = vsub.s32 %v2543, %v2545
  %v2547 = vrot.slane %v2539, %v2546
  %v2549 = vunpack.c.l.s4 1934713408
  %v2550 = vunpack.c.0.s8 %v2549
  %v2551 = vlaneseq
  %v2552 = vshrl.u32 %v2551, 7
  %v2553 = vsub.s32 %v2550, %v2552
  %v2554 = vrot.slane %v2540, %v2553
  %v2555 = vcombine.high %v2531, 0.0
  %v2556 = vcombine.high %v2538, 0.0
  %v2557 = vcombine.high %v2547, 0.0
  %v2558 = vcombine.high %v2554, 0.0
  %2560 = vrot.lane.b32.xlu0 %v2487, 16
  %v2561 = vpop.permute.xlu0 %2560
  %2564 = vrot.lane.b32.xlu0 %v2470, 32
  %v2565 = vpop.permute.xlu0 %2564
  %2568 = vrot.lane.b32.xlu0 %v2488, 48
  %v2569 = vpop.permute.xlu0 %2568
  %2572 = vrot.lane.b32.xlu0 %v2479, 64
  %v2573 = vpop.permute.xlu0 %2572
  %2576 = vrot.lane.b32.xlu0 %v2489, 80
  %v2577 = vpop.permute.xlu0 %2576
  %2580 = vrot.lane.b32.xlu0 %v2486, 96
  %v2581 = vpop.permute.xlu0 %2580
  %2584 = vrot.lane.b32.xlu0 %v2490, 112
  %v2585 = vpop.permute.xlu0 %2584
  %2588 = vrot.lane.b32.xlu0 %v2555, 16
  %v2589 = vpop.permute.xlu0 %2588
  %2592 = vrot.lane.b32.xlu0 %v2538, 32
  %v2593 = vpop.permute.xlu0 %2592
  %2596 = vrot.lane.b32.xlu0 %v2556, 48
  %v2597 = vpop.permute.xlu0 %2596
  %2600 = vrot.lane.b32.xlu0 %v2547, 64
  %v2601 = vpop.permute.xlu0 %2600
  %2604 = vrot.lane.b32.xlu0 %v2557, 80
  %v2605 = vpop.permute.xlu0 %2604
  %2608 = vrot.lane.b32.xlu0 %v2554, 96
  %v2609 = vpop.permute.xlu0 %2608
  %2612 = vrot.lane.b32.xlu0 %v2558, 112
  %v2613 = vpop.permute.xlu0 %2612
  %v2615 = vsel %vm481, %v2463, %v2561
  %v2616 = vsel %vm483, %v2615, %v2565
  %v2617 = vsel %vm485, %v2616, %v2569
  %v2618 = vsel %vm487, %v2617, %v2573
  %v2619 = vsel %vm489, %v2618, %v2577
  %v2620 = vsel %vm491, %v2619, %v2581
  %v2621 = vsel %vm493, %v2620, %v2585
  %v2622 = vsel %vm481, %v2531, %v2589
  %v2623 = vsel %vm483, %v2622, %v2593
  %v2624 = vsel %vm485, %v2623, %v2597
  %v2625 = vsel %vm487, %v2624, %v2601
  %v2626 = vsel %vm489, %v2625, %v2605
  %v2627 = vsel %vm491, %v2626, %v2609
  %v2628 = vsel %vm493, %v2627, %v2613
  %2629 = vst [vmem:[#allocation3 + $0x10] sm:$0xf] %v2621
  %2630 = vst [vmem:[#allocation3 + $0x18] sm:$0xf] %v2628
  %2639 = vrot.lane.b32.xlu0 %v2411, 127
  %v2640 = vpop.permute.xlu0 %2639
  %2641 = vrot.lane.b32.xlu0 %v2412, 127
  %v2642 = vpop.permute.xlu0 %2641
  %2643 = vrot.lane.b32.xlu0 %v2414, 127
  %v2644 = vpop.permute.xlu0 %2643
  %2645 = vrot.lane.b32.xlu0 %v2415, 127
  %v2646 = vpop.permute.xlu0 %2645
  %2647 = vrot.lane.b32.xlu0 %v2417, 127
  %v2648 = vpop.permute.xlu0 %2647
  %2649 = vrot.lane.b32.xlu0 %v2418, 127
  %v2650 = vpop.permute.xlu0 %2649
  %2651 = vrot.lane.b32.xlu0 %v2420, 127
  %v2652 = vpop.permute.xlu0 %2651
  %2653 = vrot.lane.b32.xlu0 %v2421, 127
  %v2654 = vpop.permute.xlu0 %2653
  %v2663 = vcombine.low %v2640, %v2648
  %v2664 = vcombine.high %v2640, %v2648
  %v2666 = vunpack.c.l.s4 1983009808
  %v2667 = vunpack.c.0.s8 %v2666
  %v2668 = vlaneseq
  %v2669 = vshrl.u32 %v2668, 7
  %v2670 = vsub.s32 %v2667, %v2669
  %v2671 = vrot.slane %v2663, %v2670
  %v2673 = vunpack.c.l.s4 1983009808
  %v2674 = vunpack.c.0.s8 %v2673
  %v2675 = vlaneseq
  %v2676 = vshrl.u32 %v2675, 7
  %v2677 = vsub.s32 %v2674, %v2676
  %v2678 = vrot.slane %v2664, %v2677
  %v2679 = vcombine.low %v2644, %v2652
  %v2680 = vcombine.high %v2644, %v2652
  %v2682 = vunpack.c.l.s4 1983009808
  %v2683 = vunpack.c.0.s8 %v2682
  %v2684 = vlaneseq
  %v2685 = vshrl.u32 %v2684, 7
  %v2686 = vsub.s32 %v2683, %v2685
  %v2687 = vrot.slane %v2679, %v2686
  %v2689 = vunpack.c.l.s4 1983009808
  %v2690 = vunpack.c.0.s8 %v2689
  %v2691 = vlaneseq
  %v2692 = vshrl.u32 %v2691, 7
  %v2693 = vsub.s32 %v2690, %v2692
  %v2694 = vrot.slane %v2680, %v2693
  %v2695 = vcombine.low %v2671, %v2687
  %v2696 = vcombine.high %v2671, %v2687
  %v2698 = vunpack.c.l.s4 1934713408
  %v2699 = vunpack.c.0.s8 %v2698
  %v2700 = vlaneseq
  %v2701 = vshrl.u32 %v2700, 7
  %v2702 = vsub.s32 %v2699, %v2701
  %v2703 = vrot.slane %v2695, %v2702
  %v2705 = vunpack.c.l.s4 1934713408
  %v2706 = vunpack.c.0.s8 %v2705
  %v2707 = vlaneseq
  %v2708 = vshrl.u32 %v2707, 7
  %v2709 = vsub.s32 %v2706, %v2708
  %v2710 = vrot.slane %v2696, %v2709
  %v2711 = vcombine.low %v2678, %v2694
  %v2712 = vcombine.high %v2678, %v2694
  %v2714 = vunpack.c.l.s4 1934713408
  %v2715 = vunpack.c.0.s8 %v2714
  %v2716 = vlaneseq
  %v2717 = vshrl.u32 %v2716, 7
  %v2718 = vsub.s32 %v2715, %v2717
  %v2719 = vrot.slane %v2711, %v2718
  %v2721 = vunpack.c.l.s4 1934713408
  %v2722 = vunpack.c.0.s8 %v2721
  %v2723 = vlaneseq
  %v2724 = vshrl.u32 %v2723, 7
  %v2725 = vsub.s32 %v2722, %v2724
  %v2726 = vrot.slane %v2712, %v2725
  %v2727 = vcombine.high %v2703, 0.0
  %v2728 = vcombine.high %v2710, 0.0
  %v2729 = vcombine.high %v2719, 0.0
  %v2730 = vcombine.high %v2726, 0.0
  %v2731 = vcombine.low %v2642, %v2650
  %v2732 = vcombine.high %v2642, %v2650
  %v2734 = vunpack.c.l.s4 1983009808
  %v2735 = vunpack.c.0.s8 %v2734
  %v2736 = vlaneseq
  %v2737 = vshrl.u32 %v2736, 7
  %v2738 = vsub.s32 %v2735, %v2737
  %v2739 = vrot.slane %v2731, %v2738
  %v2741 = vunpack.c.l.s4 1983009808
  %v2742 = vunpack.c.0.s8 %v2741
  %v2743 = vlaneseq
  %v2744 = vshrl.u32 %v2743, 7
  %v2745 = vsub.s32 %v2742, %v2744
  %v2746 = vrot.slane %v2732, %v2745
  %v2747 = vcombine.low %v2646, %v2654
  %v2748 = vcombine.high %v2646, %v2654
  %v2750 = vunpack.c.l.s4 1983009808
  %v2751 = vunpack.c.0.s8 %v2750
  %v2752 = vlaneseq
  %v2753 = vshrl.u32 %v2752, 7
  %v2754 = vsub.s32 %v2751, %v2753
  %v2755 = vrot.slane %v2747, %v2754
  %v2757 = vunpack.c.l.s4 1983009808
  %v2758 = vunpack.c.0.s8 %v2757
  %v2759 = vlaneseq
  %v2760 = vshrl.u32 %v2759, 7
  %v2761 = vsub.s32 %v2758, %v2760
  %v2762 = vrot.slane %v2748, %v2761
  %v2763 = vcombine.low %v2739, %v2755
  %v2764 = vcombine.high %v2739, %v2755
  %v2766 = vunpack.c.l.s4 1934713408
  %v2767 = vunpack.c.0.s8 %v2766
  %v2768 = vlaneseq
  %v2769 = vshrl.u32 %v2768, 7
  %v2770 = vsub.s32 %v2767, %v2769
  %v2771 = vrot.slane %v2763, %v2770
  %v2773 = vunpack.c.l.s4 1934713408
  %v2774 = vunpack.c.0.s8 %v2773
  %v2775 = vlaneseq
  %v2776 = vshrl.u32 %v2775, 7
  %v2777 = vsub.s32 %v2774, %v2776
  %v2778 = vrot.slane %v2764, %v2777
  %v2779 = vcombine.low %v2746, %v2762
  %v2780 = vcombine.high %v2746, %v2762
  %v2782 = vunpack.c.l.s4 1934713408
  %v2783 = vunpack.c.0.s8 %v2782
  %v2784 = vlaneseq
  %v2785 = vshrl.u32 %v2784, 7
  %v2786 = vsub.s32 %v2783, %v2785
  %v2787 = vrot.slane %v2779, %v2786
  %v2789 = vunpack.c.l.s4 1934713408
  %v2790 = vunpack.c.0.s8 %v2789
  %v2791 = vlaneseq
  %v2792 = vshrl.u32 %v2791, 7
  %v2793 = vsub.s32 %v2790, %v2792
  %v2794 = vrot.slane %v2780, %v2793
  %v2795 = vcombine.high %v2771, 0.0
  %v2796 = vcombine.high %v2778, 0.0
  %v2797 = vcombine.high %v2787, 0.0
  %v2798 = vcombine.high %v2794, 0.0
  %2800 = vrot.lane.b32.xlu0 %v2727, 16
  %v2801 = vpop.permute.xlu0 %2800
  %2804 = vrot.lane.b32.xlu0 %v2710, 32
  %v2805 = vpop.permute.xlu0 %2804
  %2808 = vrot.lane.b32.xlu0 %v2728, 48
  %v2809 = vpop.permute.xlu0 %2808
  %2812 = vrot.lane.b32.xlu0 %v2719, 64
  %v2813 = vpop.permute.xlu0 %2812
  %2816 = vrot.lane.b32.xlu0 %v2729, 80
  %v2817 = vpop.permute.xlu0 %2816
  %2820 = vrot.lane.b32.xlu0 %v2726, 96
  %v2821 = vpop.permute.xlu0 %2820
  %2824 = vrot.lane.b32.xlu0 %v2730, 112
  %v2825 = vpop.permute.xlu0 %2824
  %2828 = vrot.lane.b32.xlu0 %v2795, 16
  %v2829 = vpop.permute.xlu0 %2828
  %2832 = vrot.lane.b32.xlu0 %v2778, 32
  %v2833 = vpop.permute.xlu0 %2832
  %2836 = vrot.lane.b32.xlu0 %v2796, 48
  %v2837 = vpop.permute.xlu0 %2836
  %2840 = vrot.lane.b32.xlu0 %v2787, 64
  %v2841 = vpop.permute.xlu0 %2840
  %2844 = vrot.lane.b32.xlu0 %v2797, 80
  %v2845 = vpop.permute.xlu0 %2844
  %2848 = vrot.lane.b32.xlu0 %v2794, 96
  %v2849 = vpop.permute.xlu0 %2848
  %2852 = vrot.lane.b32.xlu0 %v2798, 112
  %v2853 = vpop.permute.xlu0 %2852
  %v2855 = vsel %vm481, %v2703, %v2801
  %v2856 = vsel %vm483, %v2855, %v2805
  %v2857 = vsel %vm485, %v2856, %v2809
  %v2858 = vsel %vm487, %v2857, %v2813
  %v2859 = vsel %vm489, %v2858, %v2817
  %v2860 = vsel %vm491, %v2859, %v2821
  %v2861 = vsel %vm493, %v2860, %v2825
  %v2862 = vsel %vm481, %v2771, %v2829
  %v2863 = vsel %vm483, %v2862, %v2833
  %v2864 = vsel %vm485, %v2863, %v2837
  %v2865 = vsel %vm487, %v2864, %v2841
  %v2866 = vsel %vm489, %v2865, %v2845
  %v2867 = vsel %vm491, %v2866, %v2849
  %v2868 = vsel %vm493, %v2867, %v2853
  %v2871 = vrot.slane %v2861, 4
  %v2872 = vrot.slane %v2868, 4
  %2875 = vst [vmem:[#allocation3 + $0x10] sm:$0xf0] %v2871
  %2876 = vst [vmem:[#allocation3 + $0x18] sm:$0xf0] %v2872
  %2877 = vrot.lane.b32.xlu0 %v2411, 126
  %v2878 = vpop.permute.xlu0 %2877
  %2879 = vrot.lane.b32.xlu0 %v2412, 126
  %v2880 = vpop.permute.xlu0 %2879
  %2881 = vrot.lane.b32.xlu0 %v2414, 126
  %v2882 = vpop.permute.xlu0 %2881
  %2883 = vrot.lane.b32.xlu0 %v2415, 126
  %v2884 = vpop.permute.xlu0 %2883
  %2885 = vrot.lane.b32.xlu0 %v2417, 126
  %v2886 = vpop.permute.xlu0 %2885
  %2887 = vrot.lane.b32.xlu0 %v2418, 126
  %v2888 = vpop.permute.xlu0 %2887
  %2889 = vrot.lane.b32.xlu0 %v2420, 126
  %v2890 = vpop.permute.xlu0 %2889
  %2891 = vrot.lane.b32.xlu0 %v2421, 126
  %v2892 = vpop.permute.xlu0 %2891
  %v2901 = vcombine.low %v2878, %v2886
  %v2902 = vcombine.high %v2878, %v2886
  %v2904 = vunpack.c.l.s4 1983009808
  %v2905 = vunpack.c.0.s8 %v2904
  %v2906 = vlaneseq
  %v2907 = vshrl.u32 %v2906, 7
  %v2908 = vsub.s32 %v2905, %v2907
  %v2909 = vrot.slane %v2901, %v2908
  %v2911 = vunpack.c.l.s4 1983009808
  %v2912 = vunpack.c.0.s8 %v2911
  %v2913 = vlaneseq
  %v2914 = vshrl.u32 %v2913, 7
  %v2915 = vsub.s32 %v2912, %v2914
  %v2916 = vrot.slane %v2902, %v2915
  %v2917 = vcombine.low %v2882, %v2890
  %v2918 = vcombine.high %v2882, %v2890
  %v2920 = vunpack.c.l.s4 1983009808
  %v2921 = vunpack.c.0.s8 %v2920
  %v2922 = vlaneseq
  %v2923 = vshrl.u32 %v2922, 7
  %v2924 = vsub.s32 %v2921, %v2923
  %v2925 = vrot.slane %v2917, %v2924
  %v2927 = vunpack.c.l.s4 1983009808
  %v2928 = vunpack.c.0.s8 %v2927
  %v2929 = vlaneseq
  %v2930 = vshrl.u32 %v2929, 7
  %v2931 = vsub.s32 %v2928, %v2930
  %v2932 = vrot.slane %v2918, %v2931
  %v2933 = vcombine.low %v2909, %v2925
  %v2934 = vcombine.high %v2909, %v2925
  %v2936 = vunpack.c.l.s4 1934713408
  %v2937 = vunpack.c.0.s8 %v2936
  %v2938 = vlaneseq
  %v2939 = vshrl.u32 %v2938, 7
  %v2940 = vsub.s32 %v2937, %v2939
  %v2941 = vrot.slane %v2933, %v2940
  %v2943 = vunpack.c.l.s4 1934713408
  %v2944 = vunpack.c.0.s8 %v2943
  %v2945 = vlaneseq
  %v2946 = vshrl.u32 %v2945, 7
  %v2947 = vsub.s32 %v2944, %v2946
  %v2948 = vrot.slane %v2934, %v2947
  %v2949 = vcombine.low %v2916, %v2932
  %v2950 = vcombine.high %v2916, %v2932
  %v2952 = vunpack.c.l.s4 1934713408
  %v2953 = vunpack.c.0.s8 %v2952
  %v2954 = vlaneseq
  %v2955 = vshrl.u32 %v2954, 7
  %v2956 = vsub.s32 %v2953, %v2955
  %v2957 = vrot.slane %v2949, %v2956
  %v2959 = vunpack.c.l.s4 1934713408
  %v2960 = vunpack.c.0.s8 %v2959
  %v2961 = vlaneseq
  %v2962 = vshrl.u32 %v2961, 7
  %v2963 = vsub.s32 %v2960, %v2962
  %v2964 = vrot.slane %v2950, %v2963
  %v2965 = vcombine.high %v2941, 0.0
  %v2966 = vcombine.high %v2948, 0.0
  %v2967 = vcombine.high %v2957, 0.0
  %v2968 = vcombine.high %v2964, 0.0
  %v2969 = vcombine.low %v2880, %v2888
  %v2970 = vcombine.high %v2880, %v2888
  %v2972 = vunpack.c.l.s4 1983009808
  %v2973 = vunpack.c.0.s8 %v2972
  %v2974 = vlaneseq
  %v2975 = vshrl.u32 %v2974, 7
  %v2976 = vsub.s32 %v2973, %v2975
  %v2977 = vrot.slane %v2969, %v2976
  %v2979 = vunpack.c.l.s4 1983009808
  %v2980 = vunpack.c.0.s8 %v2979
  %v2981 = vlaneseq
  %v2982 = vshrl.u32 %v2981, 7
  %v2983 = vsub.s32 %v2980, %v2982
  %v2984 = vrot.slane %v2970, %v2983
  %v2985 = vcombine.low %v2884, %v2892
  %v2986 = vcombine.high %v2884, %v2892
  %v2988 = vunpack.c.l.s4 1983009808
  %v2989 = vunpack.c.0.s8 %v2988
  %v2990 = vlaneseq
  %v2991 = vshrl.u32 %v2990, 7
  %v2992 = vsub.s32 %v2989, %v2991
  %v2993 = vrot.slane %v2985, %v2992
  %v2995 = vunpack.c.l.s4 1983009808
  %v2996 = vunpack.c.0.s8 %v2995
  %v2997 = vlaneseq
  %v2998 = vshrl.u32 %v2997, 7
  %v2999 = vsub.s32 %v2996, %v2998
  %v3000 = vrot.slane %v2986, %v2999
  %v3001 = vcombine.low %v2977, %v2993
  %v3002 = vcombine.high %v2977, %v2993
  %v3004 = vunpack.c.l.s4 1934713408
  %v3005 = vunpack.c.0.s8 %v3004
  %v3006 = vlaneseq
  %v3007 = vshrl.u32 %v3006, 7
  %v3008 = vsub.s32 %v3005, %v3007
  %v3009 = vrot.slane %v3001, %v3008
  %v3011 = vunpack.c.l.s4 1934713408
  %v3012 = vunpack.c.0.s8 %v3011
  %v3013 = vlaneseq
  %v3014 = vshrl.u32 %v3013, 7
  %v3015 = vsub.s32 %v3012, %v3014
  %v3016 = vrot.slane %v3002, %v3015
  %v3017 = vcombine.low %v2984, %v3000
  %v3018 = vcombine.high %v2984, %v3000
  %v3020 = vunpack.c.l.s4 1934713408
  %v3021 = vunpack.c.0.s8 %v3020
  %v3022 = vlaneseq
  %v3023 = vshrl.u32 %v3022, 7
  %v3024 = vsub.s32 %v3021, %v3023
  %v3025 = vrot.slane %v3017, %v3024
  %v3027 = vunpack.c.l.s4 1934713408
  %v3028 = vunpack.c.0.s8 %v3027
  %v3029 = vlaneseq
  %v3030 = vshrl.u32 %v3029, 7
  %v3031 = vsub.s32 %v3028, %v3030
  %v3032 = vrot.slane %v3018, %v3031
  %v3033 = vcombine.high %v3009, 0.0
  %v3034 = vcombine.high %v3016, 0.0
  %v3035 = vcombine.high %v3025, 0.0
  %v3036 = vcombine.high %v3032, 0.0
  %3038 = vrot.lane.b32.xlu0 %v2965, 16
  %v3039 = vpop.permute.xlu0 %3038
  %3042 = vrot.lane.b32.xlu0 %v2948, 32
  %v3043 = vpop.permute.xlu0 %3042
  %3046 = vrot.lane.b32.xlu0 %v2966, 48
  %v3047 = vpop.permute.xlu0 %3046
  %3050 = vrot.lane.b32.xlu0 %v2957, 64
  %v3051 = vpop.permute.xlu0 %3050
  %3054 = vrot.lane.b32.xlu0 %v2967, 80
  %v3055 = vpop.permute.xlu0 %3054
  %3058 = vrot.lane.b32.xlu0 %v2964, 96
  %v3059 = vpop.permute.xlu0 %3058
  %3062 = vrot.lane.b32.xlu0 %v2968, 112
  %v3063 = vpop.permute.xlu0 %3062
  %3066 = vrot.lane.b32.xlu0 %v3033, 16
  %v3067 = vpop.permute.xlu0 %3066
  %3070 = vrot.lane.b32.xlu0 %v3016, 32
  %v3071 = vpop.permute.xlu0 %3070
  %3074 = vrot.lane.b32.xlu0 %v3034, 48
  %v3075 = vpop.permute.xlu0 %3074
  %3078 = vrot.lane.b32.xlu0 %v3025, 64
  %v3079 = vpop.permute.xlu0 %3078
  %3082 = vrot.lane.b32.xlu0 %v3035, 80
  %v3083 = vpop.permute.xlu0 %3082
  %3086 = vrot.lane.b32.xlu0 %v3032, 96
  %v3087 = vpop.permute.xlu0 %3086
  %3090 = vrot.lane.b32.xlu0 %v3036, 112
  %v3091 = vpop.permute.xlu0 %3090
  %v3093 = vsel %vm481, %v2941, %v3039
  %v3094 = vsel %vm483, %v3093, %v3043
  %v3095 = vsel %vm485, %v3094, %v3047
  %v3096 = vsel %vm487, %v3095, %v3051
  %v3097 = vsel %vm489, %v3096, %v3055
  %v3098 = vsel %vm491, %v3097, %v3059
  %v3099 = vsel %vm493, %v3098, %v3063
  %v3100 = vsel %vm481, %v3009, %v3067
  %v3101 = vsel %vm483, %v3100, %v3071
  %v3102 = vsel %vm485, %v3101, %v3075
  %v3103 = vsel %vm487, %v3102, %v3079
  %v3104 = vsel %vm489, %v3103, %v3083
  %v3105 = vsel %vm491, %v3104, %v3087
  %v3106 = vsel %vm493, %v3105, %v3091
  %3107 = vst [vmem:[#allocation3 + $0x30] sm:$0xf] %v3099
  %3108 = vst [vmem:[#allocation3 + $0x38] sm:$0xf] %v3106
  %v3113 = vrot.slane %v2411, 1
  %v3114 = vrot.slane %v2412, 1
  %v3115 = vsel %vm986, %v3113, %v3114
  %v3116 = vrot.slane %v2413, 1
  %v3117 = vsel %vm986, %v3114, %v3116
  %v3118 = vrot.slane %v2414, 1
  %v3119 = vrot.slane %v2415, 1
  %v3120 = vsel %vm986, %v3118, %v3119
  %v3121 = vrot.slane %v2416, 1
  %v3122 = vsel %vm986, %v3119, %v3121
  %v3123 = vrot.slane %v2417, 1
  %v3124 = vrot.slane %v2418, 1
  %v3125 = vsel %vm986, %v3123, %v3124
  %v3126 = vrot.slane %v2419, 1
  %v3127 = vsel %vm986, %v3124, %v3126
  %v3128 = vrot.slane %v2420, 1
  %v3129 = vrot.slane %v2421, 1
  %v3130 = vsel %vm986, %v3128, %v3129
  %v3131 = vrot.slane %v2422, 1
  %v3132 = vsel %vm986, %v3129, %v3131
  %v3141 = vcombine.low %v3115, %v3125
  %v3142 = vcombine.high %v3115, %v3125
  %v3144 = vunpack.c.l.s4 1983009808
  %v3145 = vunpack.c.0.s8 %v3144
  %v3146 = vlaneseq
  %v3147 = vshrl.u32 %v3146, 7
  %v3148 = vsub.s32 %v3145, %v3147
  %v3149 = vrot.slane %v3141, %v3148
  %v3151 = vunpack.c.l.s4 1983009808
  %v3152 = vunpack.c.0.s8 %v3151
  %v3153 = vlaneseq
  %v3154 = vshrl.u32 %v3153, 7
  %v3155 = vsub.s32 %v3152, %v3154
  %v3156 = vrot.slane %v3142, %v3155
  %v3157 = vcombine.low %v3120, %v3130
  %v3158 = vcombine.high %v3120, %v3130
  %v3160 = vunpack.c.l.s4 1983009808
  %v3161 = vunpack.c.0.s8 %v3160
  %v3162 = vlaneseq
  %v3163 = vshrl.u32 %v3162, 7
  %v3164 = vsub.s32 %v3161, %v3163
  %v3165 = vrot.slane %v3157, %v3164
  %v3167 = vunpack.c.l.s4 1983009808
  %v3168 = vunpack.c.0.s8 %v3167
  %v3169 = vlaneseq
  %v3170 = vshrl.u32 %v3169, 7
  %v3171 = vsub.s32 %v3168, %v3170
  %v3172 = vrot.slane %v3158, %v3171
  %v3173 = vcombine.low %v3149, %v3165
  %v3174 = vcombine.high %v3149, %v3165
  %v3176 = vunpack.c.l.s4 1934713408
  %v3177 = vunpack.c.0.s8 %v3176
  %v3178 = vlaneseq
  %v3179 = vshrl.u32 %v3178, 7
  %v3180 = vsub.s32 %v3177, %v3179
  %v3181 = vrot.slane %v3173, %v3180
  %v3183 = vunpack.c.l.s4 1934713408
  %v3184 = vunpack.c.0.s8 %v3183
  %v3185 = vlaneseq
  %v3186 = vshrl.u32 %v3185, 7
  %v3187 = vsub.s32 %v3184, %v3186
  %v3188 = vrot.slane %v3174, %v3187
  %v3189 = vcombine.low %v3156, %v3172
  %v3190 = vcombine.high %v3156, %v3172
  %v3192 = vunpack.c.l.s4 1934713408
  %v3193 = vunpack.c.0.s8 %v3192
  %v3194 = vlaneseq
  %v3195 = vshrl.u32 %v3194, 7
  %v3196 = vsub.s32 %v3193, %v3195
  %v3197 = vrot.slane %v3189, %v3196
  %v3199 = vunpack.c.l.s4 1934713408
  %v3200 = vunpack.c.0.s8 %v3199
  %v3201 = vlaneseq
  %v3202 = vshrl.u32 %v3201, 7
  %v3203 = vsub.s32 %v3200, %v3202
  %v3204 = vrot.slane %v3190, %v3203
  %v3205 = vcombine.high %v3181, 0.0
  %v3206 = vcombine.high %v3188, 0.0
  %v3207 = vcombine.high %v3197, 0.0
  %v3208 = vcombine.high %v3204, 0.0
  %v3209 = vcombine.low %v3117, %v3127
  %v3210 = vcombine.high %v3117, %v3127
  %v3212 = vunpack.c.l.s4 1983009808
  %v3213 = vunpack.c.0.s8 %v3212
  %v3214 = vlaneseq
  %v3215 = vshrl.u32 %v3214, 7
  %v3216 = vsub.s32 %v3213, %v3215
  %v3217 = vrot.slane %v3209, %v3216
  %v3219 = vunpack.c.l.s4 1983009808
  %v3220 = vunpack.c.0.s8 %v3219
  %v3221 = vlaneseq
  %v3222 = vshrl.u32 %v3221, 7
  %v3223 = vsub.s32 %v3220, %v3222
  %v3224 = vrot.slane %v3210, %v3223
  %v3225 = vcombine.low %v3122, %v3132
  %v3226 = vcombine.high %v3122, %v3132
  %v3228 = vunpack.c.l.s4 1983009808
  %v3229 = vunpack.c.0.s8 %v3228
  %v3230 = vlaneseq
  %v3231 = vshrl.u32 %v3230, 7
  %v3232 = vsub.s32 %v3229, %v3231
  %v3233 = vrot.slane %v3225, %v3232
  %v3235 = vunpack.c.l.s4 1983009808
  %v3236 = vunpack.c.0.s8 %v3235
  %v3237 = vlaneseq
  %v3238 = vshrl.u32 %v3237, 7
  %v3239 = vsub.s32 %v3236, %v3238
  %v3240 = vrot.slane %v3226, %v3239
  %v3241 = vcombine.low %v3217, %v3233
  %v3242 = vcombine.high %v3217, %v3233
  %v3244 = vunpack.c.l.s4 1934713408
  %v3245 = vunpack.c.0.s8 %v3244
  %v3246 = vlaneseq
  %v3247 = vshrl.u32 %v3246, 7
  %v3248 = vsub.s32 %v3245, %v3247
  %v3249 = vrot.slane %v3241, %v3248
  %v3251 = vunpack.c.l.s4 1934713408
  %v3252 = vunpack.c.0.s8 %v3251
  %v3253 = vlaneseq
  %v3254 = vshrl.u32 %v3253, 7
  %v3255 = vsub.s32 %v3252, %v3254
  %v3256 = vrot.slane %v3242, %v3255
  %v3257 = vcombine.low %v3224, %v3240
  %v3258 = vcombine.high %v3224, %v3240
  %v3260 = vunpack.c.l.s4 1934713408
  %v3261 = vunpack.c.0.s8 %v3260
  %v3262 = vlaneseq
  %v3263 = vshrl.u32 %v3262, 7
  %v3264 = vsub.s32 %v3261, %v3263
  %v3265 = vrot.slane %v3257, %v3264
  %v3267 = vunpack.c.l.s4 1934713408
  %v3268 = vunpack.c.0.s8 %v3267
  %v3269 = vlaneseq
  %v3270 = vshrl.u32 %v3269, 7
  %v3271 = vsub.s32 %v3268, %v3270
  %v3272 = vrot.slane %v3258, %v3271
  %v3273 = vcombine.high %v3249, 0.0
  %v3274 = vcombine.high %v3256, 0.0
  %v3275 = vcombine.high %v3265, 0.0
  %v3276 = vcombine.high %v3272, 0.0
  %3278 = vrot.lane.b32.xlu0 %v3205, 16
  %v3279 = vpop.permute.xlu0 %3278
  %3282 = vrot.lane.b32.xlu0 %v3188, 32
  %v3283 = vpop.permute.xlu0 %3282
  %3286 = vrot.lane.b32.xlu0 %v3206, 48
  %v3287 = vpop.permute.xlu0 %3286
  %3290 = vrot.lane.b32.xlu0 %v3197, 64
  %v3291 = vpop.permute.xlu0 %3290
  %3294 = vrot.lane.b32.xlu0 %v3207, 80
  %v3295 = vpop.permute.xlu0 %3294
  %3298 = vrot.lane.b32.xlu0 %v3204, 96
  %v3299 = vpop.permute.xlu0 %3298
  %3302 = vrot.lane.b32.xlu0 %v3208, 112
  %v3303 = vpop.permute.xlu0 %3302
  %3306 = vrot.lane.b32.xlu0 %v3273, 16
  %v3307 = vpop.permute.xlu0 %3306
  %3310 = vrot.lane.b32.xlu0 %v3256, 32
  %v3311 = vpop.permute.xlu0 %3310
  %3314 = vrot.lane.b32.xlu0 %v3274, 48
  %v3315 = vpop.permute.xlu0 %3314
  %3318 = vrot.lane.b32.xlu0 %v3265, 64
  %v3319 = vpop.permute.xlu0 %3318
  %3322 = vrot.lane.b32.xlu0 %v3275, 80
  %v3323 = vpop.permute.xlu0 %3322
  %3326 = vrot.lane.b32.xlu0 %v3272, 96
  %v3327 = vpop.permute.xlu0 %3326
  %3330 = vrot.lane.b32.xlu0 %v3276, 112
  %v3331 = vpop.permute.xlu0 %3330
  %v3333 = vsel %vm481, %v3181, %v3279
  %v3334 = vsel %vm483, %v3333, %v3283
  %v3335 = vsel %vm485, %v3334, %v3287
  %v3336 = vsel %vm487, %v3335, %v3291
  %v3337 = vsel %vm489, %v3336, %v3295
  %v3338 = vsel %vm491, %v3337, %v3299
  %v3339 = vsel %vm493, %v3338, %v3303
  %v3340 = vsel %vm481, %v3249, %v3307
  %v3341 = vsel %vm483, %v3340, %v3311
  %v3342 = vsel %vm485, %v3341, %v3315
  %v3343 = vsel %vm487, %v3342, %v3319
  %v3344 = vsel %vm489, %v3343, %v3323
  %v3345 = vsel %vm491, %v3344, %v3327
  %v3346 = vsel %vm493, %v3345, %v3331
  %v3349 = vrot.slane %v3339, 4
  %v3350 = vrot.slane %v3346, 4
  %3353 = vst [vmem:[#allocation3 + $0x30] sm:$0xf0] %v3349
  %3354 = vst [vmem:[#allocation3 + $0x38] sm:$0xf0] %v3350
  %v3355 = vcombine.high %v2179, %v2179
  %3357 = vst [vmem:[#allocation3 + $0x50] sm:$0xf] %v2179
  %3358 = vst [vmem:[#allocation3 + $0x58] sm:$0xf] %v3355
  %3359 = vrot.lane.b32.xlu0 %v3115, 126
  %v3360 = vpop.permute.xlu0 %3359
  %3361 = vrot.lane.b32.xlu0 %v3117, 126
  %v3362 = vpop.permute.xlu0 %3361
  %3363 = vrot.lane.b32.xlu0 %v3120, 126
  %v3364 = vpop.permute.xlu0 %3363
  %3365 = vrot.lane.b32.xlu0 %v3122, 126
  %v3366 = vpop.permute.xlu0 %3365
  %3367 = vrot.lane.b32.xlu0 %v3125, 126
  %v3368 = vpop.permute.xlu0 %3367
  %3369 = vrot.lane.b32.xlu0 %v3127, 126
  %v3370 = vpop.permute.xlu0 %3369
  %3371 = vrot.lane.b32.xlu0 %v3130, 126
  %v3372 = vpop.permute.xlu0 %3371
  %3373 = vrot.lane.b32.xlu0 %v3132, 126
  %v3374 = vpop.permute.xlu0 %3373
  %v3383 = vcombine.low %v3360, %v3368
  %v3384 = vcombine.high %v3360, %v3368
  %v3386 = vunpack.c.l.s4 1983009808
  %v3387 = vunpack.c.0.s8 %v3386
  %v3388 = vlaneseq
  %v3389 = vshrl.u32 %v3388, 7
  %v3390 = vsub.s32 %v3387, %v3389
  %v3391 = vrot.slane %v3383, %v3390
  %v3393 = vunpack.c.l.s4 1983009808
  %v3394 = vunpack.c.0.s8 %v3393
  %v3395 = vlaneseq
  %v3396 = vshrl.u32 %v3395, 7
  %v3397 = vsub.s32 %v3394, %v3396
  %v3398 = vrot.slane %v3384, %v3397
  %v3399 = vcombine.low %v3364, %v3372
  %v3400 = vcombine.high %v3364, %v3372
  %v3402 = vunpack.c.l.s4 1983009808
  %v3403 = vunpack.c.0.s8 %v3402
  %v3404 = vlaneseq
  %v3405 = vshrl.u32 %v3404, 7
  %v3406 = vsub.s32 %v3403, %v3405
  %v3407 = vrot.slane %v3399, %v3406
  %v3409 = vunpack.c.l.s4 1983009808
  %v3410 = vunpack.c.0.s8 %v3409
  %v3411 = vlaneseq
  %v3412 = vshrl.u32 %v3411, 7
  %v3413 = vsub.s32 %v3410, %v3412
  %v3414 = vrot.slane %v3400, %v3413
  %v3415 = vcombine.low %v3391, %v3407
  %v3416 = vcombine.high %v3391, %v3407
  %v3418 = vunpack.c.l.s4 1934713408
  %v3419 = vunpack.c.0.s8 %v3418
  %v3420 = vlaneseq
  %v3421 = vshrl.u32 %v3420, 7
  %v3422 = vsub.s32 %v3419, %v3421
  %v3423 = vrot.slane %v3415, %v3422
  %v3425 = vunpack.c.l.s4 1934713408
  %v3426 = vunpack.c.0.s8 %v3425
  %v3427 = vlaneseq
  %v3428 = vshrl.u32 %v3427, 7
  %v3429 = vsub.s32 %v3426, %v3428
  %v3430 = vrot.slane %v3416, %v3429
  %v3431 = vcombine.low %v3398, %v3414
  %v3432 = vcombine.high %v3398, %v3414
  %v3434 = vunpack.c.l.s4 1934713408
  %v3435 = vunpack.c.0.s8 %v3434
  %v3436 = vlaneseq
  %v3437 = vshrl.u32 %v3436, 7
  %v3438 = vsub.s32 %v3435, %v3437
  %v3439 = vrot.slane %v3431, %v3438
  %v3441 = vunpack.c.l.s4 1934713408
  %v3442 = vunpack.c.0.s8 %v3441
  %v3443 = vlaneseq
  %v3444 = vshrl.u32 %v3443, 7
  %v3445 = vsub.s32 %v3442, %v3444
  %v3446 = vrot.slane %v3432, %v3445
  %v3447 = vcombine.high %v3423, 0.0
  %v3448 = vcombine.high %v3430, 0.0
  %v3449 = vcombine.high %v3439, 0.0
  %v3450 = vcombine.high %v3446, 0.0
  %v3451 = vcombine.low %v3362, %v3370
  %v3452 = vcombine.high %v3362, %v3370
  %v3454 = vunpack.c.l.s4 1983009808
  %v3455 = vunpack.c.0.s8 %v3454
  %v3456 = vlaneseq
  %v3457 = vshrl.u32 %v3456, 7
  %v3458 = vsub.s32 %v3455, %v3457
  %v3459 = vrot.slane %v3451, %v3458
  %v3461 = vunpack.c.l.s4 1983009808
  %v3462 = vunpack.c.0.s8 %v3461
  %v3463 = vlaneseq
  %v3464 = vshrl.u32 %v3463, 7
  %v3465 = vsub.s32 %v3462, %v3464
  %v3466 = vrot.slane %v3452, %v3465
  %v3467 = vcombine.low %v3366, %v3374
  %v3468 = vcombine.high %v3366, %v3374
  %v3470 = vunpack.c.l.s4 1983009808
  %v3471 = vunpack.c.0.s8 %v3470
  %v3472 = vlaneseq
  %v3473 = vshrl.u32 %v3472, 7
  %v3474 = vsub.s32 %v3471, %v3473
  %v3475 = vrot.slane %v3467, %v3474
  %v3477 = vunpack.c.l.s4 1983009808
  %v3478 = vunpack.c.0.s8 %v3477
  %v3479 = vlaneseq
  %v3480 = vshrl.u32 %v3479, 7
  %v3481 = vsub.s32 %v3478, %v3480
  %v3482 = vrot.slane %v3468, %v3481
  %v3483 = vcombine.low %v3459, %v3475
  %v3484 = vcombine.high %v3459, %v3475
  %v3486 = vunpack.c.l.s4 1934713408
  %v3487 = vunpack.c.0.s8 %v3486
  %v3488 = vlaneseq
  %v3489 = vshrl.u32 %v3488, 7
  %v3490 = vsub.s32 %v3487, %v3489
  %v3491 = vrot.slane %v3483, %v3490
  %v3493 = vunpack.c.l.s4 1934713408
  %v3494 = vunpack.c.0.s8 %v3493
  %v3495 = vlaneseq
  %v3496 = vshrl.u32 %v3495, 7
  %v3497 = vsub.s32 %v3494, %v3496
  %v3498 = vrot.slane %v3484, %v3497
  %v3499 = vcombine.low %v3466, %v3482
  %v3500 = vcombine.high %v3466, %v3482
  %v3502 = vunpack.c.l.s4 1934713408
  %v3503 = vunpack.c.0.s8 %v3502
  %v3504 = vlaneseq
  %v3505 = vshrl.u32 %v3504, 7
  %v3506 = vsub.s32 %v3503, %v3505
  %v3507 = vrot.slane %v3499, %v3506
  %v3509 = vunpack.c.l.s4 1934713408
  %v3510 = vunpack.c.0.s8 %v3509
  %v3511 = vlaneseq
  %v3512 = vshrl.u32 %v3511, 7
  %v3513 = vsub.s32 %v3510, %v3512
  %v3514 = vrot.slane %v3500, %v3513
  %v3515 = vcombine.high %v3491, 0.0
  %v3516 = vcombine.high %v3498, 0.0
  %v3517 = vcombine.high %v3507, 0.0
  %v3518 = vcombine.high %v3514, 0.0
  %3520 = vrot.lane.b32.xlu0 %v3447, 16
  %v3521 = vpop.permute.xlu0 %3520
  %3524 = vrot.lane.b32.xlu0 %v3430, 32
  %v3525 = vpop.permute.xlu0 %3524
  %3528 = vrot.lane.b32.xlu0 %v3448, 48
  %v3529 = vpop.permute.xlu0 %3528
  %3532 = vrot.lane.b32.xlu0 %v3439, 64
  %v3533 = vpop.permute.xlu0 %3532
  %3536 = vrot.lane.b32.xlu0 %v3449, 80
  %v3537 = vpop.permute.xlu0 %3536
  %3540 = vrot.lane.b32.xlu0 %v3446, 96
  %v3541 = vpop.permute.xlu0 %3540
  %3544 = vrot.lane.b32.xlu0 %v3450, 112
  %v3545 = vpop.permute.xlu0 %3544
  %3548 = vrot.lane.b32.xlu0 %v3515, 16
  %v3549 = vpop.permute.xlu0 %3548
  %3552 = vrot.lane.b32.xlu0 %v3498, 32
  %v3553 = vpop.permute.xlu0 %3552
  %3556 = vrot.lane.b32.xlu0 %v3516, 48
  %v3557 = vpop.permute.xlu0 %3556
  %3560 = vrot.lane.b32.xlu0 %v3507, 64
  %v3561 = vpop.permute.xlu0 %3560
  %3564 = vrot.lane.b32.xlu0 %v3517, 80
  %v3565 = vpop.permute.xlu0 %3564
  %3568 = vrot.lane.b32.xlu0 %v3514, 96
  %v3569 = vpop.permute.xlu0 %3568
  %3572 = vrot.lane.b32.xlu0 %v3518, 112
  %v3573 = vpop.permute.xlu0 %3572
  %v3575 = vsel %vm481, %v3423, %v3521
  %v3576 = vsel %vm483, %v3575, %v3525
  %v3577 = vsel %vm485, %v3576, %v3529
  %v3578 = vsel %vm487, %v3577, %v3533
  %v3579 = vsel %vm489, %v3578, %v3537
  %v3580 = vsel %vm491, %v3579, %v3541
  %v3581 = vsel %vm493, %v3580, %v3545
  %v3582 = vsel %vm481, %v3491, %v3549
  %v3583 = vsel %vm483, %v3582, %v3553
  %v3584 = vsel %vm485, %v3583, %v3557
  %v3585 = vsel %vm487, %v3584, %v3561
  %v3586 = vsel %vm489, %v3585, %v3565
  %v3587 = vsel %vm491, %v3586, %v3569
  %v3588 = vsel %vm493, %v3587, %v3573
  %v3591 = vrot.slane %v3581, 4
  %v3592 = vrot.slane %v3588, 4
  %3595 = vst [vmem:[#allocation3 + $0x50] sm:$0xf0] %v3591
  %3596 = vst [vmem:[#allocation3 + $0x58] sm:$0xf0] %v3592
  %v3597 = vrot.slane %v2411, 2
  %v3598 = vrot.slane %v2412, 2
  %v3599 = vsel %vm1471, %v3597, %v3598
  %v3600 = vrot.slane %v2413, 2
  %v3601 = vsel %vm1471, %v3598, %v3600
  %v3602 = vrot.slane %v2414, 2
  %v3603 = vrot.slane %v2415, 2
  %v3604 = vsel %vm1471, %v3602, %v3603
  %v3605 = vrot.slane %v2416, 2
  %v3606 = vsel %vm1471, %v3603, %v3605
  %v3607 = vrot.slane %v2417, 2
  %v3608 = vrot.slane %v2418, 2
  %v3609 = vsel %vm1471, %v3607, %v3608
  %v3610 = vrot.slane %v2419, 2
  %v3611 = vsel %vm1471, %v3608, %v3610
  %v3612 = vrot.slane %v2420, 2
  %v3613 = vrot.slane %v2421, 2
  %v3614 = vsel %vm1471, %v3612, %v3613
  %v3615 = vrot.slane %v2422, 2
  %v3616 = vsel %vm1471, %v3613, %v3615
  %v3625 = vcombine.low %v3599, %v3609
  %v3626 = vcombine.high %v3599, %v3609
  %v3628 = vunpack.c.l.s4 1983009808
  %v3629 = vunpack.c.0.s8 %v3628
  %v3630 = vlaneseq
  %v3631 = vshrl.u32 %v3630, 7
  %v3632 = vsub.s32 %v3629, %v3631
  %v3633 = vrot.slane %v3625, %v3632
  %v3635 = vunpack.c.l.s4 1983009808
  %v3636 = vunpack.c.0.s8 %v3635
  %v3637 = vlaneseq
  %v3638 = vshrl.u32 %v3637, 7
  %v3639 = vsub.s32 %v3636, %v3638
  %v3640 = vrot.slane %v3626, %v3639
  %v3641 = vcombine.low %v3604, %v3614
  %v3642 = vcombine.high %v3604, %v3614
  %v3644 = vunpack.c.l.s4 1983009808
  %v3645 = vunpack.c.0.s8 %v3644
  %v3646 = vlaneseq
  %v3647 = vshrl.u32 %v3646, 7
  %v3648 = vsub.s32 %v3645, %v3647
  %v3649 = vrot.slane %v3641, %v3648
  %v3651 = vunpack.c.l.s4 1983009808
  %v3652 = vunpack.c.0.s8 %v3651
  %v3653 = vlaneseq
  %v3654 = vshrl.u32 %v3653, 7
  %v3655 = vsub.s32 %v3652, %v3654
  %v3656 = vrot.slane %v3642, %v3655
  %v3657 = vcombine.low %v3633, %v3649
  %v3658 = vcombine.high %v3633, %v3649
  %v3660 = vunpack.c.l.s4 1934713408
  %v3661 = vunpack.c.0.s8 %v3660
  %v3662 = vlaneseq
  %v3663 = vshrl.u32 %v3662, 7
  %v3664 = vsub.s32 %v3661, %v3663
  %v3665 = vrot.slane %v3657, %v3664
  %v3667 = vunpack.c.l.s4 1934713408
  %v3668 = vunpack.c.0.s8 %v3667
  %v3669 = vlaneseq
  %v3670 = vshrl.u32 %v3669, 7
  %v3671 = vsub.s32 %v3668, %v3670
  %v3672 = vrot.slane %v3658, %v3671
  %v3673 = vcombine.low %v3640, %v3656
  %v3674 = vcombine.high %v3640, %v3656
  %v3676 = vunpack.c.l.s4 1934713408
  %v3677 = vunpack.c.0.s8 %v3676
  %v3678 = vlaneseq
  %v3679 = vshrl.u32 %v3678, 7
  %v3680 = vsub.s32 %v3677, %v3679
  %v3681 = vrot.slane %v3673, %v3680
  %v3683 = vunpack.c.l.s4 1934713408
  %v3684 = vunpack.c.0.s8 %v3683
  %v3685 = vlaneseq
  %v3686 = vshrl.u32 %v3685, 7
  %v3687 = vsub.s32 %v3684, %v3686
  %v3688 = vrot.slane %v3674, %v3687
  %v3689 = vcombine.high %v3665, 0.0
  %v3690 = vcombine.high %v3672, 0.0
  %v3691 = vcombine.high %v3681, 0.0
  %v3692 = vcombine.high %v3688, 0.0
  %v3693 = vcombine.low %v3601, %v3611
  %v3694 = vcombine.high %v3601, %v3611
  %v3696 = vunpack.c.l.s4 1983009808
  %v3697 = vunpack.c.0.s8 %v3696
  %v3698 = vlaneseq
  %v3699 = vshrl.u32 %v3698, 7
  %v3700 = vsub.s32 %v3697, %v3699
  %v3701 = vrot.slane %v3693, %v3700
  %v3703 = vunpack.c.l.s4 1983009808
  %v3704 = vunpack.c.0.s8 %v3703
  %v3705 = vlaneseq
  %v3706 = vshrl.u32 %v3705, 7
  %v3707 = vsub.s32 %v3704, %v3706
  %v3708 = vrot.slane %v3694, %v3707
  %v3709 = vcombine.low %v3606, %v3616
  %v3710 = vcombine.high %v3606, %v3616
  %v3712 = vunpack.c.l.s4 1983009808
  %v3713 = vunpack.c.0.s8 %v3712
  %v3714 = vlaneseq
  %v3715 = vshrl.u32 %v3714, 7
  %v3716 = vsub.s32 %v3713, %v3715
  %v3717 = vrot.slane %v3709, %v3716
  %v3719 = vunpack.c.l.s4 1983009808
  %v3720 = vunpack.c.0.s8 %v3719
  %v3721 = vlaneseq
  %v3722 = vshrl.u32 %v3721, 7
  %v3723 = vsub.s32 %v3720, %v3722
  %v3724 = vrot.slane %v3710, %v3723
  %v3725 = vcombine.low %v3701, %v3717
  %v3726 = vcombine.high %v3701, %v3717
  %v3728 = vunpack.c.l.s4 1934713408
  %v3729 = vunpack.c.0.s8 %v3728
  %v3730 = vlaneseq
  %v3731 = vshrl.u32 %v3730, 7
  %v3732 = vsub.s32 %v3729, %v3731
  %v3733 = vrot.slane %v3725, %v3732
  %v3735 = vunpack.c.l.s4 1934713408
  %v3736 = vunpack.c.0.s8 %v3735
  %v3737 = vlaneseq
  %v3738 = vshrl.u32 %v3737, 7
  %v3739 = vsub.s32 %v3736, %v3738
  %v3740 = vrot.slane %v3726, %v3739
  %v3741 = vcombine.low %v3708, %v3724
  %v3742 = vcombine.high %v3708, %v3724
  %v3744 = vunpack.c.l.s4 1934713408
  %v3745 = vunpack.c.0.s8 %v3744
  %v3746 = vlaneseq
  %v3747 = vshrl.u32 %v3746, 7
  %v3748 = vsub.s32 %v3745, %v3747
  %v3749 = vrot.slane %v3741, %v3748
  %v3751 = vunpack.c.l.s4 1934713408
  %v3752 = vunpack.c.0.s8 %v3751
  %v3753 = vlaneseq
  %v3754 = vshrl.u32 %v3753, 7
  %v3755 = vsub.s32 %v3752, %v3754
  %v3756 = vrot.slane %v3742, %v3755
  %v3757 = vcombine.high %v3733, 0.0
  %v3758 = vcombine.high %v3740, 0.0
  %v3759 = vcombine.high %v3749, 0.0
  %v3760 = vcombine.high %v3756, 0.0
  %3762 = vrot.lane.b32.xlu0 %v3689, 16
  %v3763 = vpop.permute.xlu0 %3762
  %3766 = vrot.lane.b32.xlu0 %v3672, 32
  %v3767 = vpop.permute.xlu0 %3766
  %3770 = vrot.lane.b32.xlu0 %v3690, 48
  %v3771 = vpop.permute.xlu0 %3770
  %3774 = vrot.lane.b32.xlu0 %v3681, 64
  %v3775 = vpop.permute.xlu0 %3774
  %3778 = vrot.lane.b32.xlu0 %v3691, 80
  %v3779 = vpop.permute.xlu0 %3778
  %3782 = vrot.lane.b32.xlu0 %v3688, 96
  %v3783 = vpop.permute.xlu0 %3782
  %3786 = vrot.lane.b32.xlu0 %v3692, 112
  %v3787 = vpop.permute.xlu0 %3786
  %3790 = vrot.lane.b32.xlu0 %v3757, 16
  %v3791 = vpop.permute.xlu0 %3790
  %3794 = vrot.lane.b32.xlu0 %v3740, 32
  %v3795 = vpop.permute.xlu0 %3794
  %3798 = vrot.lane.b32.xlu0 %v3758, 48
  %v3799 = vpop.permute.xlu0 %3798
  %3802 = vrot.lane.b32.xlu0 %v3749, 64
  %v3803 = vpop.permute.xlu0 %3802
  %3806 = vrot.lane.b32.xlu0 %v3759, 80
  %v3807 = vpop.permute.xlu0 %3806
  %3810 = vrot.lane.b32.xlu0 %v3756, 96
  %v3811 = vpop.permute.xlu0 %3810
  %3814 = vrot.lane.b32.xlu0 %v3760, 112
  %v3815 = vpop.permute.xlu0 %3814
  %v3817 = vsel %vm481, %v3665, %v3763
  %v3818 = vsel %vm483, %v3817, %v3767
  %v3819 = vsel %vm485, %v3818, %v3771
  %v3820 = vsel %vm487, %v3819, %v3775
  %v3821 = vsel %vm489, %v3820, %v3779
  %v3822 = vsel %vm491, %v3821, %v3783
  %v3823 = vsel %vm493, %v3822, %v3787
  %v3824 = vsel %vm481, %v3733, %v3791
  %v3825 = vsel %vm483, %v3824, %v3795
  %v3826 = vsel %vm485, %v3825, %v3799
  %v3827 = vsel %vm487, %v3826, %v3803
  %v3828 = vsel %vm489, %v3827, %v3807
  %v3829 = vsel %vm491, %v3828, %v3811
  %v3830 = vsel %vm493, %v3829, %v3815
  %3831 = vst [vmem:[#allocation3 + $0x70] sm:$0xf] %v3823
  %3832 = vst [vmem:[#allocation3 + $0x78] sm:$0xf] %v3830
  %3833 = vrot.lane.b32.xlu0 %v3599, 127
  %v3834 = vpop.permute.xlu0 %3833
  %3835 = vrot.lane.b32.xlu0 %v3601, 127
  %v3836 = vpop.permute.xlu0 %3835
  %3837 = vrot.lane.b32.xlu0 %v3604, 127
  %v3838 = vpop.permute.xlu0 %3837
  %3839 = vrot.lane.b32.xlu0 %v3606, 127
  %v3840 = vpop.permute.xlu0 %3839
  %3841 = vrot.lane.b32.xlu0 %v3609, 127
  %v3842 = vpop.permute.xlu0 %3841
  %3843 = vrot.lane.b32.xlu0 %v3611, 127
  %v3844 = vpop.permute.xlu0 %3843
  %3845 = vrot.lane.b32.xlu0 %v3614, 127
  %v3846 = vpop.permute.xlu0 %3845
  %3847 = vrot.lane.b32.xlu0 %v3616, 127
  %v3848 = vpop.permute.xlu0 %3847
  %v3857 = vcombine.low %v3834, %v3842
  %v3858 = vcombine.high %v3834, %v3842
  %v3860 = vunpack.c.l.s4 1983009808
  %v3861 = vunpack.c.0.s8 %v3860
  %v3862 = vlaneseq
  %v3863 = vshrl.u32 %v3862, 7
  %v3864 = vsub.s32 %v3861, %v3863
  %v3865 = vrot.slane %v3857, %v3864
  %v3867 = vunpack.c.l.s4 1983009808
  %v3868 = vunpack.c.0.s8 %v3867
  %v3869 = vlaneseq
  %v3870 = vshrl.u32 %v3869, 7
  %v3871 = vsub.s32 %v3868, %v3870
  %v3872 = vrot.slane %v3858, %v3871
  %v3873 = vcombine.low %v3838, %v3846
  %v3874 = vcombine.high %v3838, %v3846
  %v3876 = vunpack.c.l.s4 1983009808
  %v3877 = vunpack.c.0.s8 %v3876
  %v3878 = vlaneseq
  %v3879 = vshrl.u32 %v3878, 7
  %v3880 = vsub.s32 %v3877, %v3879
  %v3881 = vrot.slane %v3873, %v3880
  %v3883 = vunpack.c.l.s4 1983009808
  %v3884 = vunpack.c.0.s8 %v3883
  %v3885 = vlaneseq
  %v3886 = vshrl.u32 %v3885, 7
  %v3887 = vsub.s32 %v3884, %v3886
  %v3888 = vrot.slane %v3874, %v3887
  %v3889 = vcombine.low %v3865, %v3881
  %v3890 = vcombine.high %v3865, %v3881
  %v3892 = vunpack.c.l.s4 1934713408
  %v3893 = vunpack.c.0.s8 %v3892
  %v3894 = vlaneseq
  %v3895 = vshrl.u32 %v3894, 7
  %v3896 = vsub.s32 %v3893, %v3895
  %v3897 = vrot.slane %v3889, %v3896
  %v3899 = vunpack.c.l.s4 1934713408
  %v3900 = vunpack.c.0.s8 %v3899
  %v3901 = vlaneseq
  %v3902 = vshrl.u32 %v3901, 7
  %v3903 = vsub.s32 %v3900, %v3902
  %v3904 = vrot.slane %v3890, %v3903
  %v3905 = vcombine.low %v3872, %v3888
  %v3906 = vcombine.high %v3872, %v3888
  %v3908 = vunpack.c.l.s4 1934713408
  %v3909 = vunpack.c.0.s8 %v3908
  %v3910 = vlaneseq
  %v3911 = vshrl.u32 %v3910, 7
  %v3912 = vsub.s32 %v3909, %v3911
  %v3913 = vrot.slane %v3905, %v3912
  %v3915 = vunpack.c.l.s4 1934713408
  %v3916 = vunpack.c.0.s8 %v3915
  %v3917 = vlaneseq
  %v3918 = vshrl.u32 %v3917, 7
  %v3919 = vsub.s32 %v3916, %v3918
  %v3920 = vrot.slane %v3906, %v3919
  %v3921 = vcombine.high %v3897, 0.0
  %v3922 = vcombine.high %v3904, 0.0
  %v3923 = vcombine.high %v3913, 0.0
  %v3924 = vcombine.high %v3920, 0.0
  %v3925 = vcombine.low %v3836, %v3844
  %v3926 = vcombine.high %v3836, %v3844
  %v3928 = vunpack.c.l.s4 1983009808
  %v3929 = vunpack.c.0.s8 %v3928
  %v3930 = vlaneseq
  %v3931 = vshrl.u32 %v3930, 7
  %v3932 = vsub.s32 %v3929, %v3931
  %v3933 = vrot.slane %v3925, %v3932
  %v3935 = vunpack.c.l.s4 1983009808
  %v3936 = vunpack.c.0.s8 %v3935
  %v3937 = vlaneseq
  %v3938 = vshrl.u32 %v3937, 7
  %v3939 = vsub.s32 %v3936, %v3938
  %v3940 = vrot.slane %v3926, %v3939
  %v3941 = vcombine.low %v3840, %v3848
  %v3942 = vcombine.high %v3840, %v3848
  %v3944 = vunpack.c.l.s4 1983009808
  %v3945 = vunpack.c.0.s8 %v3944
  %v3946 = vlaneseq
  %v3947 = vshrl.u32 %v3946, 7
  %v3948 = vsub.s32 %v3945, %v3947
  %v3949 = vrot.slane %v3941, %v3948
  %v3951 = vunpack.c.l.s4 1983009808
  %v3952 = vunpack.c.0.s8 %v3951
  %v3953 = vlaneseq
  %v3954 = vshrl.u32 %v3953, 7
  %v3955 = vsub.s32 %v3952, %v3954
  %v3956 = vrot.slane %v3942, %v3955
  %v3957 = vcombine.low %v3933, %v3949
  %v3958 = vcombine.high %v3933, %v3949
  %v3960 = vunpack.c.l.s4 1934713408
  %v3961 = vunpack.c.0.s8 %v3960
  %v3962 = vlaneseq
  %v3963 = vshrl.u32 %v3962, 7
  %v3964 = vsub.s32 %v3961, %v3963
  %v3965 = vrot.slane %v3957, %v3964
  %v3967 = vunpack.c.l.s4 1934713408
  %v3968 = vunpack.c.0.s8 %v3967
  %v3969 = vlaneseq
  %v3970 = vshrl.u32 %v3969, 7
  %v3971 = vsub.s32 %v3968, %v3970
  %v3972 = vrot.slane %v3958, %v3971
  %v3973 = vcombine.low %v3940, %v3956
  %v3974 = vcombine.high %v3940, %v3956
  %v3976 = vunpack.c.l.s4 1934713408
  %v3977 = vunpack.c.0.s8 %v3976
  %v3978 = vlaneseq
  %v3979 = vshrl.u32 %v3978, 7
  %v3980 = vsub.s32 %v3977, %v3979
  %v3981 = vrot.slane %v3973, %v3980
  %v3983 = vunpack.c.l.s4 1934713408
  %v3984 = vunpack.c.0.s8 %v3983
  %v3985 = vlaneseq
  %v3986 = vshrl.u32 %v3985, 7
  %v3987 = vsub.s32 %v3984, %v3986
  %v3988 = vrot.slane %v3974, %v3987
  %v3989 = vcombine.high %v3965, 0.0
  %v3990 = vcombine.high %v3972, 0.0
  %v3991 = vcombine.high %v3981, 0.0
  %v3992 = vcombine.high %v3988, 0.0
  %3994 = vrot.lane.b32.xlu0 %v3921, 16
  %v3995 = vpop.permute.xlu0 %3994
  %3998 = vrot.lane.b32.xlu0 %v3904, 32
  %v3999 = vpop.permute.xlu0 %3998
  %4002 = vrot.lane.b32.xlu0 %v3922, 48
  %v4003 = vpop.permute.xlu0 %4002
  %4006 = vrot.lane.b32.xlu0 %v3913, 64
  %v4007 = vpop.permute.xlu0 %4006
  %4010 = vrot.lane.b32.xlu0 %v3923, 80
  %v4011 = vpop.permute.xlu0 %4010
  %4014 = vrot.lane.b32.xlu0 %v3920, 96
  %v4015 = vpop.permute.xlu0 %4014
  %4018 = vrot.lane.b32.xlu0 %v3924, 112
  %v4019 = vpop.permute.xlu0 %4018
  %4022 = vrot.lane.b32.xlu0 %v3989, 16
  %v4023 = vpop.permute.xlu0 %4022
  %4026 = vrot.lane.b32.xlu0 %v3972, 32
  %v4027 = vpop.permute.xlu0 %4026
  %4030 = vrot.lane.b32.xlu0 %v3990, 48
  %v4031 = vpop.permute.xlu0 %4030
  %4034 = vrot.lane.b32.xlu0 %v3981, 64
  %v4035 = vpop.permute.xlu0 %4034
  %4038 = vrot.lane.b32.xlu0 %v3991, 80
  %v4039 = vpop.permute.xlu0 %4038
  %4042 = vrot.lane.b32.xlu0 %v3988, 96
  %v4043 = vpop.permute.xlu0 %4042
  %4046 = vrot.lane.b32.xlu0 %v3992, 112
  %v4047 = vpop.permute.xlu0 %4046
  %v4049 = vsel %vm481, %v3897, %v3995
  %v4050 = vsel %vm483, %v4049, %v3999
  %v4051 = vsel %vm485, %v4050, %v4003
  %v4052 = vsel %vm487, %v4051, %v4007
  %v4053 = vsel %vm489, %v4052, %v4011
  %v4054 = vsel %vm491, %v4053, %v4015
  %v4055 = vsel %vm493, %v4054, %v4019
  %v4056 = vsel %vm481, %v3965, %v4023
  %v4057 = vsel %vm483, %v4056, %v4027
  %v4058 = vsel %vm485, %v4057, %v4031
  %v4059 = vsel %vm487, %v4058, %v4035
  %v4060 = vsel %vm489, %v4059, %v4039
  %v4061 = vsel %vm491, %v4060, %v4043
  %v4062 = vsel %vm493, %v4061, %v4047
  %v4065 = vrot.slane %v4055, 4
  %v4066 = vrot.slane %v4062, 4
  %4069 = vst [vmem:[#allocation3 + $0x70] sm:$0xf0] %v4065
  %4070 = vst [vmem:[#allocation3 + $0x78] sm:$0xf0] %v4066
  %4071 = vrot.lane.b32.xlu0 %v3599, 126
  %v4072 = vpop.permute.xlu0 %4071
  %4073 = vrot.lane.b32.xlu0 %v3601, 126
  %v4074 = vpop.permute.xlu0 %4073
  %4075 = vrot.lane.b32.xlu0 %v3604, 126
  %v4076 = vpop.permute.xlu0 %4075
  %4077 = vrot.lane.b32.xlu0 %v3606, 126
  %v4078 = vpop.permute.xlu0 %4077
  %4079 = vrot.lane.b32.xlu0 %v3609, 126
  %v4080 = vpop.permute.xlu0 %4079
  %4081 = vrot.lane.b32.xlu0 %v3611, 126
  %v4082 = vpop.permute.xlu0 %4081
  %4083 = vrot.lane.b32.xlu0 %v3614, 126
  %v4084 = vpop.permute.xlu0 %4083
  %4085 = vrot.lane.b32.xlu0 %v3616, 126
  %v4086 = vpop.permute.xlu0 %4085
  %v4095 = vcombine.low %v4072, %v4080
  %v4096 = vcombine.high %v4072, %v4080
  %v4098 = vunpack.c.l.s4 1983009808
  %v4099 = vunpack.c.0.s8 %v4098
  %v4100 = vlaneseq
  %v4101 = vshrl.u32 %v4100, 7
  %v4102 = vsub.s32 %v4099, %v4101
  %v4103 = vrot.slane %v4095, %v4102
  %v4105 = vunpack.c.l.s4 1983009808
  %v4106 = vunpack.c.0.s8 %v4105
  %v4107 = vlaneseq
  %v4108 = vshrl.u32 %v4107, 7
  %v4109 = vsub.s32 %v4106, %v4108
  %v4110 = vrot.slane %v4096, %v4109
  %v4111 = vcombine.low %v4076, %v4084
  %v4112 = vcombine.high %v4076, %v4084
  %v4114 = vunpack.c.l.s4 1983009808
  %v4115 = vunpack.c.0.s8 %v4114
  %v4116 = vlaneseq
  %v4117 = vshrl.u32 %v4116, 7
  %v4118 = vsub.s32 %v4115, %v4117
  %v4119 = vrot.slane %v4111, %v4118
  %v4121 = vunpack.c.l.s4 1983009808
  %v4122 = vunpack.c.0.s8 %v4121
  %v4123 = vlaneseq
  %v4124 = vshrl.u32 %v4123, 7
  %v4125 = vsub.s32 %v4122, %v4124
  %v4126 = vrot.slane %v4112, %v4125
  %v4127 = vcombine.low %v4103, %v4119
  %v4128 = vcombine.high %v4103, %v4119
  %v4130 = vunpack.c.l.s4 1934713408
  %v4131 = vunpack.c.0.s8 %v4130
  %v4132 = vlaneseq
  %v4133 = vshrl.u32 %v4132, 7
  %v4134 = vsub.s32 %v4131, %v4133
  %v4135 = vrot.slane %v4127, %v4134
  %v4137 = vunpack.c.l.s4 1934713408
  %v4138 = vunpack.c.0.s8 %v4137
  %v4139 = vlaneseq
  %v4140 = vshrl.u32 %v4139, 7
  %v4141 = vsub.s32 %v4138, %v4140
  %v4142 = vrot.slane %v4128, %v4141
  %v4143 = vcombine.low %v4110, %v4126
  %v4144 = vcombine.high %v4110, %v4126
  %v4146 = vunpack.c.l.s4 1934713408
  %v4147 = vunpack.c.0.s8 %v4146
  %v4148 = vlaneseq
  %v4149 = vshrl.u32 %v4148, 7
  %v4150 = vsub.s32 %v4147, %v4149
  %v4151 = vrot.slane %v4143, %v4150
  %v4153 = vunpack.c.l.s4 1934713408
  %v4154 = vunpack.c.0.s8 %v4153
  %v4155 = vlaneseq
  %v4156 = vshrl.u32 %v4155, 7
  %v4157 = vsub.s32 %v4154, %v4156
  %v4158 = vrot.slane %v4144, %v4157
  %v4159 = vcombine.high %v4135, 0.0
  %v4160 = vcombine.high %v4142, 0.0
  %v4161 = vcombine.high %v4151, 0.0
  %v4162 = vcombine.high %v4158, 0.0
  %v4163 = vcombine.low %v4074, %v4082
  %v4164 = vcombine.high %v4074, %v4082
  %v4166 = vunpack.c.l.s4 1983009808
  %v4167 = vunpack.c.0.s8 %v4166
  %v4168 = vlaneseq
  %v4169 = vshrl.u32 %v4168, 7
  %v4170 = vsub.s32 %v4167, %v4169
  %v4171 = vrot.slane %v4163, %v4170
  %v4173 = vunpack.c.l.s4 1983009808
  %v4174 = vunpack.c.0.s8 %v4173
  %v4175 = vlaneseq
  %v4176 = vshrl.u32 %v4175, 7
  %v4177 = vsub.s32 %v4174, %v4176
  %v4178 = vrot.slane %v4164, %v4177
  %v4179 = vcombine.low %v4078, %v4086
  %v4180 = vcombine.high %v4078, %v4086
  %v4182 = vunpack.c.l.s4 1983009808
  %v4183 = vunpack.c.0.s8 %v4182
  %v4184 = vlaneseq
  %v4185 = vshrl.u32 %v4184, 7
  %v4186 = vsub.s32 %v4183, %v4185
  %v4187 = vrot.slane %v4179, %v4186
  %v4189 = vunpack.c.l.s4 1983009808
  %v4190 = vunpack.c.0.s8 %v4189
  %v4191 = vlaneseq
  %v4192 = vshrl.u32 %v4191, 7
  %v4193 = vsub.s32 %v4190, %v4192
  %v4194 = vrot.slane %v4180, %v4193
  %v4195 = vcombine.low %v4171, %v4187
  %v4196 = vcombine.high %v4171, %v4187
  %v4198 = vunpack.c.l.s4 1934713408
  %v4199 = vunpack.c.0.s8 %v4198
  %v4200 = vlaneseq
  %v4201 = vshrl.u32 %v4200, 7
  %v4202 = vsub.s32 %v4199, %v4201
  %v4203 = vrot.slane %v4195, %v4202
  %v4205 = vunpack.c.l.s4 1934713408
  %v4206 = vunpack.c.0.s8 %v4205
  %v4207 = vlaneseq
  %v4208 = vshrl.u32 %v4207, 7
  %v4209 = vsub.s32 %v4206, %v4208
  %v4210 = vrot.slane %v4196, %v4209
  %v4211 = vcombine.low %v4178, %v4194
  %v4212 = vcombine.high %v4178, %v4194
  %v4214 = vunpack.c.l.s4 1934713408
  %v4215 = vunpack.c.0.s8 %v4214
  %v4216 = vlaneseq
  %v4217 = vshrl.u32 %v4216, 7
  %v4218 = vsub.s32 %v4215, %v4217
  %v4219 = vrot.slane %v4211, %v4218
  %v4221 = vunpack.c.l.s4 1934713408
  %v4222 = vunpack.c.0.s8 %v4221
  %v4223 = vlaneseq
  %v4224 = vshrl.u32 %v4223, 7
  %v4225 = vsub.s32 %v4222, %v4224
  %v4226 = vrot.slane %v4212, %v4225
  %v4227 = vcombine.high %v4203, 0.0
  %v4228 = vcombine.high %v4210, 0.0
  %v4229 = vcombine.high %v4219, 0.0
  %v4230 = vcombine.high %v4226, 0.0
  %4232 = vrot.lane.b32.xlu0 %v4159, 16
  %v4233 = vpop.permute.xlu0 %4232
  %4236 = vrot.lane.b32.xlu0 %v4142, 32
  %v4237 = vpop.permute.xlu0 %4236
  %4240 = vrot.lane.b32.xlu0 %v4160, 48
  %v4241 = vpop.permute.xlu0 %4240
  %4244 = vrot.lane.b32.xlu0 %v4151, 64
  %v4245 = vpop.permute.xlu0 %4244
  %4248 = vrot.lane.b32.xlu0 %v4161, 80
  %v4249 = vpop.permute.xlu0 %4248
  %4252 = vrot.lane.b32.xlu0 %v4158, 96
  %v4253 = vpop.permute.xlu0 %4252
  %4256 = vrot.lane.b32.xlu0 %v4162, 112
  %v4257 = vpop.permute.xlu0 %4256
  %4260 = vrot.lane.b32.xlu0 %v4227, 16
  %v4261 = vpop.permute.xlu0 %4260
  %4264 = vrot.lane.b32.xlu0 %v4210, 32
  %v4265 = vpop.permute.xlu0 %4264
  %4268 = vrot.lane.b32.xlu0 %v4228, 48
  %v4269 = vpop.permute.xlu0 %4268
  %4272 = vrot.lane.b32.xlu0 %v4219, 64
  %v4273 = vpop.permute.xlu0 %4272
  %4276 = vrot.lane.b32.xlu0 %v4229, 80
  %v4277 = vpop.permute.xlu0 %4276
  %4280 = vrot.lane.b32.xlu0 %v4226, 96
  %v4281 = vpop.permute.xlu0 %4280
  %4284 = vrot.lane.b32.xlu0 %v4230, 112
  %v4285 = vpop.permute.xlu0 %4284
  %v4287 = vsel %vm481, %v4135, %v4233
  %v4288 = vsel %vm483, %v4287, %v4237
  %v4289 = vsel %vm485, %v4288, %v4241
  %v4290 = vsel %vm487, %v4289, %v4245
  %v4291 = vsel %vm489, %v4290, %v4249
  %v4292 = vsel %vm491, %v4291, %v4253
  %v4293 = vsel %vm493, %v4292, %v4257
  %v4294 = vsel %vm481, %v4203, %v4261
  %v4295 = vsel %vm483, %v4294, %v4265
  %v4296 = vsel %vm485, %v4295, %v4269
  %v4297 = vsel %vm487, %v4296, %v4273
  %v4298 = vsel %vm489, %v4297, %v4277
  %v4299 = vsel %vm491, %v4298, %v4281
  %v4300 = vsel %vm493, %v4299, %v4285
  %4301 = vst [vmem:[#allocation3 + $0x90] sm:$0xf] %v4293
  %4302 = vst [vmem:[#allocation3 + $0x98] sm:$0xf] %v4300
  %v4303 = vld [vmem:[%s1] sm:$0xf]
  %v4304 = vld [vmem:[%s1 + $0x4] sm:$0xf]
  %v4305 = vld [vmem:[%s1 + $0x8] sm:$0xf]
  %v4306 = vld [vmem:[%s1 + $0xc] sm:$0xf]
  %v4307 = vld [vmem:[#allocation3] sm:$0xff]
  %v4308 = vld [vmem:[#allocation3 + $0x8] sm:$0xff]
  %v4309 = vld [vmem:[#allocation3 + $0x10] sm:$0xff]
  %v4310 = vld [vmem:[#allocation3 + $0x18] sm:$0xff]
  %v4311 = vld [vmem:[#allocation3 + $0x20] sm:$0xff]
  %v4312 = vld [vmem:[#allocation3 + $0x28] sm:$0xff]
  %v4313 = vld [vmem:[#allocation3 + $0x30] sm:$0xff]
  %v4314 = vld [vmem:[#allocation3 + $0x38] sm:$0xff]
  %v4315 = vld [vmem:[#allocation3 + $0x40] sm:$0xff]
  %v4316 = vld [vmem:[#allocation3 + $0x48] sm:$0xff]
  %v4317 = vld [vmem:[#allocation3 + $0x50] sm:$0xff]
  %v4318 = vld [vmem:[#allocation3 + $0x58] sm:$0xff]
  %v4319 = vld [vmem:[#allocation3 + $0x60] sm:$0xff]
  %v4320 = vld [vmem:[#allocation3 + $0x68] sm:$0xff]
  %v4321 = vld [vmem:[#allocation3 + $0x70] sm:$0xff]
  %v4322 = vld [vmem:[#allocation3 + $0x78] sm:$0xff]
  %v4323 = vld [vmem:[#allocation3 + $0x80] sm:$0xff]
  %v4324 = vld [vmem:[#allocation3 + $0x88] sm:$0xff]
  %v4325 = vld [vmem:[#allocation3 + $0x90] sm:$0xff]
  %v4326 = vld [vmem:[#allocation3 + $0x98] sm:$0xff]
  %v4327 = vpack.c.bf16 %v4311, %v4307
  %v4328 = vpack.c.bf16 %v4312, %v4308
  %v4329 = vpack.c.bf16 %v4313, %v4309
  %v4330 = vpack.c.bf16 %v4314, %v4310
  %v4331 = vpack.c.bf16 %v4319, %v4315
  %v4332 = vpack.c.bf16 %v4320, %v4316
  %v4333 = vpack.c.bf16 %v4321, %v4317
  %v4334 = vpack.c.bf16 %v4322, %v4318
  %v4335 = vpack.c.bf16 %v4323, %v4323
  %v4336 = vpack.c.bf16 %v4324, %v4324
  %v4337 = vpack.c.bf16 %v4325, %v4325
  %v4338 = vpack.c.bf16 %v4326, %v4326
  %v4339 = vld [vmem:[%s2] sm:$0xff]
  %v4340 = vld [vmem:[%s2 + $0x8] sm:$0xff]
  %v4341 = vld [vmem:[%s2 + $0x10] sm:$0xff]
  %v4342 = vld [vmem:[%s2 + $0x18] sm:$0xff]
  %4344 = vset.pattern.permute.xlu0 0
  %4345 = vperm.xlu0 %4344, %v4339
  %v4346 = vpop.permute.xlu0 %4345
  %4349 = vset.pattern.permute.xlu0 0
  %4350 = vperm.xlu0 %4349, %v4340
  %v4351 = vpop.permute.xlu0 %4350
  %4354 = vset.pattern.permute.xlu0 0
  %4355 = vperm.xlu0 %4354, %v4341
  %v4356 = vpop.permute.xlu0 %4355
  %4359 = vset.pattern.permute.xlu0 0
  %4360 = vperm.xlu0 %4359, %v4342
  %v4361 = vpop.permute.xlu0 %4360
  %v4367 = vunpack.c.l.b16 %v4303
  %v4368 = vunpack.c.l.b16 %v4304
  %v4369 = vunpack.c.l.b16 %v4305
  %v4370 = vunpack.c.l.b16 %v4306
  %v4371 = vpack.c.b16 %v4368, %v4367
  %v4372 = vpack.c.b16 %v4370, %v4369
  %vm4373 = vcmask 326656
  %v4375 = vsel %vm4373, %v4371, 0
  %v4378 = vsel %vm4373, %v4372, 0
  %vm4380 = vcmask 1043456
  %v4382 = vsel %vm4380, %v4335, 0
  %v4385 = vsel %vm4380, %v4336, 0
  %v4388 = vsel %vm4380, %v4337, 0
  %v4391 = vsel %vm4380, %v4338, 0
  %4393 = vmatprep.subr.bf16.mxu0 0
  %4394 = vmatpush1.bf16.msra.mxu0 0
  %4395 = vmatprep.subr.bf16.mxu0 0
  %4396 = vmatpush1.bf16.msra.mxu0 0
  %4397 = vmatprep.subr.bf16.mxu0 0
  %4398 = vmatpush1.bf16.msra.mxu0 0
  %4399 = vmatprep.subr.bf16.mxu0 0
  %4400 = vmatpush1.bf16.msra.mxu0 0
  %4401 = vmatprep.subr.bf16.mxu0 0
  %4402 = vmatpush1.bf16.msra.mxu0 0
  %4403 = vmatprep.subr.bf16.mxu0 %v4385
  %4404 = vmatpush1.bf16.msra.mxu0 %v4382
  %4405 = vmatprep.subr.bf16.mxu0 %v4332
  %4406 = vmatpush1.bf16.msra.mxu0 %v4331
  %4407 = vmatprep.subr.bf16.mxu0 %v4328
  %4408 = vmatpush1.bf16.msra.mxu0 %v4327
  %4409 = vmatprep.subr.bf16.mxu0 0
  %4410 = vmatpush2.bf16.msra.mxu0 0
  %4411 = vmatprep.subr.bf16.mxu0 0
  %4412 = vmatpush2.bf16.msra.mxu0 0
  %4413 = vmatprep.subr.bf16.mxu0 0
  %4414 = vmatpush2.bf16.msra.mxu0 0
  %4415 = vmatprep.subr.bf16.mxu0 0
  %4416 = vmatpush2.bf16.msra.mxu0 0
  %4417 = vmatprep.subr.bf16.mxu0 0
  %4418 = vmatpush2.bf16.msra.mxu0 0
  %4419 = vmatprep.subr.bf16.mxu0 0
  %4420 = vmatpush2.bf16.msra.mxu0 0
  %4421 = vmatprep.subr.bf16.mxu0 0
  %4422 = vmatpush2.bf16.msra.mxu0 0
  %4423 = vmatprep.subr.bf16.mxu0 0
  %4424 = vmatpush2.bf16.msra.mxu0 0
  %4425 = vmatprep.mubr.bf16.mxu0 0
  %4426 = vmatmul.mubr.bf16.gmra.mxu0 %v4375
  %v4427 = vpop.f32.mrf.mxu0
  %v4428 = vadd.f32 %v4346, %v4427
  %v4429 = vpop.f32.mrf.mxu0
  %v4430 = vadd.f32 %v4346, %v4429
  %v4431 = vpop.f32.mrf.mxu0
  %v4432 = vadd.f32 %v4351, %v4431
  %v4433 = vpop.f32.mrf.mxu0
  %v4434 = vadd.f32 %v4351, %v4433
  %4435 = vmatprep.mubr.bf16.mxu0 0
  %4436 = vmatmul.mubr.bf16.gmra.mxu0 %v4378
  %v4437 = vpop.f32.mrf.mxu0
  %v4438 = vadd.f32 %v4356, %v4437
  %v4439 = vpop.f32.mrf.mxu0
  %v4440 = vadd.f32 %v4356, %v4439
  %v4441 = vpop.f32.mrf.mxu0
  %v4442 = vadd.f32 %v4361, %v4441
  %v4443 = vpop.f32.mrf.mxu0
  %v4444 = vadd.f32 %v4361, %v4443
  %4445 = vdwg.mxu0
  %4446 = vmatprep.subr.bf16.mxu0 0
  %4447 = vmatpush1.bf16.msra.mxu0 0
  %4448 = vmatprep.subr.bf16.mxu0 0
  %4449 = vmatpush1.bf16.msra.mxu0 0
  %4450 = vmatprep.subr.bf16.mxu0 0
  %4451 = vmatpush1.bf16.msra.mxu0 0
  %4452 = vmatprep.subr.bf16.mxu0 0
  %4453 = vmatpush1.bf16.msra.mxu0 0
  %4454 = vmatprep.subr.bf16.mxu0 0
  %4455 = vmatpush1.bf16.msra.mxu0 0
  %4456 = vmatprep.subr.bf16.mxu0 %v4391
  %4457 = vmatpush1.bf16.msra.mxu0 %v4388
  %4458 = vmatprep.subr.bf16.mxu0 %v4334
  %4459 = vmatpush1.bf16.msra.mxu0 %v4333
  %4460 = vmatprep.subr.bf16.mxu0 %v4330
  %4461 = vmatpush1.bf16.msra.mxu0 %v4329
  %4462 = vmatprep.subr.bf16.mxu0 0
  %4463 = vmatpush2.bf16.msra.mxu0 0
  %4464 = vmatprep.subr.bf16.mxu0 0
  %4465 = vmatpush2.bf16.msra.mxu0 0
  %4466 = vmatprep.subr.bf16.mxu0 0
  %4467 = vmatpush2.bf16.msra.mxu0 0
  %4468 = vmatprep.subr.bf16.mxu0 0
  %4469 = vmatpush2.bf16.msra.mxu0 0
  %4470 = vmatprep.subr.bf16.mxu0 0
  %4471 = vmatpush2.bf16.msra.mxu0 0
  %4472 = vmatprep.subr.bf16.mxu0 0
  %4473 = vmatpush2.bf16.msra.mxu0 0
  %4474 = vmatprep.subr.bf16.mxu0 0
  %4475 = vmatpush2.bf16.msra.mxu0 0
  %4476 = vmatprep.subr.bf16.mxu0 0
  %4477 = vmatpush2.bf16.msra.mxu0 0
  %4478 = vmatprep.mubr.bf16.mxu0 0
  %4479 = vmatmul.mubr.bf16.gmra.mxu0 %v4375
  %v4480 = vpop.f32.mrf.mxu0
  %v4481 = vadd.f32 %v4346, %v4480
  %v4482 = vpop.f32.mrf.mxu0
  %v4483 = vadd.f32 %v4346, %v4482
  %v4484 = vpop.f32.mrf.mxu0
  %v4485 = vadd.f32 %v4351, %v4484
  %v4486 = vpop.f32.mrf.mxu0
  %v4487 = vadd.f32 %v4351, %v4486
  %4488 = vmatprep.mubr.bf16.mxu0 0
  %4489 = vmatmul.mubr.bf16.gmra.mxu0 %v4378
  %v4490 = vpop.f32.mrf.mxu0
  %v4491 = vadd.f32 %v4356, %v4490
  %v4492 = vpop.f32.mrf.mxu0
  %v4493 = vadd.f32 %v4356, %v4492
  %v4494 = vpop.f32.mrf.mxu0
  %v4495 = vadd.f32 %v4361, %v4494
  %v4496 = vpop.f32.mrf.mxu0
  %v4497 = vadd.f32 %v4361, %v4496
  %4498 = vdwg.mxu0
  %v4499 = vmax.f32 %v4428, 0.0
  %v4500 = vmax.f32 %v4430, 0.0
  %v4501 = vmax.f32 %v4481, 0.0
  %v4502 = vmax.f32 %v4483, 0.0
  %v4503 = vmax.f32 %v4432, 0.0
  %v4504 = vmax.f32 %v4434, 0.0
  %v4505 = vmax.f32 %v4485, 0.0
  %v4506 = vmax.f32 %v4487, 0.0
  %v4507 = vmax.f32 %v4438, 0.0
  %v4508 = vmax.f32 %v4440, 0.0
  %v4509 = vmax.f32 %v4491, 0.0
  %v4510 = vmax.f32 %v4493, 0.0
  %v4511 = vmax.f32 %v4442, 0.0
  %v4512 = vmax.f32 %v4444, 0.0
  %v4513 = vmax.f32 %v4495, 0.0
  %v4514 = vmax.f32 %v4497, 0.0
  %v4515 = vld [vmem:[%s0] sm:$0xff]
  %v4517 = vcombine.high %v4515, %v4515
  %4519 = vst [vmem:[%s3] sm:$0xf] %v4515
  %4520 = vst [vmem:[%s3 + $0x8] sm:$0xf] %v4517
  %v4529 = vrot.slane %v4499, 4
  %v4530 = vrot.slane %v4500, 4
  %v4531 = vrot.slane %v4503, 4
  %v4532 = vsel %vm4380, %v4529, %v4531
  %v4533 = vrot.slane %v4504, 4
  %v4534 = vsel %vm4380, %v4530, %v4533
  %v4535 = vrot.slane %v4507, 4
  %v4536 = vsel %vm4380, %v4531, %v4535
  %v4537 = vrot.slane %v4508, 4
  %v4538 = vsel %vm4380, %v4533, %v4537
  %v4539 = vrot.slane %v4511, 4
  %v4540 = vsel %vm4380, %v4535, %v4539
  %v4541 = vrot.slane %v4512, 4
  %v4542 = vsel %vm4380, %v4537, %v4541
  %4553 = vst [vmem:[%s3] sm:$0xf0] %v4529
  %4554 = vst [vmem:[%s3 + $0x8] sm:$0xf0] %v4530
  %4555 = vst [vmem:[%s3 + $0x10] sm:$0xff] %v4532
  %4556 = vst [vmem:[%s3 + $0x18] sm:$0xff] %v4534
  %4557 = vst [vmem:[%s3 + $0x20] sm:$0xff] %v4536
  %4558 = vst [vmem:[%s3 + $0x28] sm:$0xff] %v4538
  %4559 = vst [vmem:[%s3 + $0x30] sm:$0xff] %v4540
  %4560 = vst [vmem:[%s3 + $0x38] sm:$0xff] %v4542
  %4561 = vst [vmem:[%s3 + $0x40] sm:$0xf] %v4539
  %4562 = vst [vmem:[%s3 + $0x48] sm:$0xf] %v4541
  %v4563 = vld [vmem:[%s2178] sm:$0xff]
  %v4565 = vcombine.high %v4563, %v4563
  %s4567 = scalar_lea.vmem %s3, 80
  %4568 = vst [vmem:[%s4567] sm:$0xf] %v4563
  %4569 = vst [vmem:[%s4567 + $0x8] sm:$0xf] %v4565
  %v4578 = vrot.slane %v4501, 4
  %v4579 = vrot.slane %v4502, 4
  %v4580 = vrot.slane %v4505, 4
  %v4581 = vsel %vm4380, %v4578, %v4580
  %v4582 = vrot.slane %v4506, 4
  %v4583 = vsel %vm4380, %v4579, %v4582
  %v4584 = vrot.slane %v4509, 4
  %v4585 = vsel %vm4380, %v4580, %v4584
  %v4586 = vrot.slane %v4510, 4
  %v4587 = vsel %vm4380, %v4582, %v4586
  %v4588 = vrot.slane %v4513, 4
  %v4589 = vsel %vm4380, %v4584, %v4588
  %v4590 = vrot.slane %v4514, 4
  %v4591 = vsel %vm4380, %v4586, %v4590
  %4602 = vst [vmem:[%s4567] sm:$0xf0] %v4578
  %4603 = vst [vmem:[%s4567 + $0x8] sm:$0xf0] %v4579
  %4604 = vst [vmem:[%s4567 + $0x10] sm:$0xff] %v4581
  %4605 = vst [vmem:[%s4567 + $0x18] sm:$0xff] %v4583
  %4606 = vst [vmem:[%s4567 + $0x20] sm:$0xff] %v4585
  %4607 = vst [vmem:[%s4567 + $0x28] sm:$0xff] %v4587
  %4608 = vst [vmem:[%s4567 + $0x30] sm:$0xff] %v4589
  %4609 = vst [vmem:[%s4567 + $0x38] sm:$0xff] %v4591
  %4610 = vst [vmem:[%s4567 + $0x40] sm:$0xf] %v4588
  %4611 = vst [vmem:[%s4567 + $0x48] sm:$0xf] %v4590
  // Predicated region
  $region14: #{_lambda_.1} parent=0 // pred_check
    _
  $region15: #{_lambda_.1} parent=0 // pred_check_branch
    %4613 = sbr.rel (0) target = $region17
  $region16: #{_lambda_.1} parent=0 // pred_region
    _
  $region17: #{_lambda_.1} parent=0 // pred_fallthru
    _
  // Predicated region
  $region18: #{_lambda_.1} parent=0 // pred_check
    _
  $region19: #{_lambda_.1} parent=0 // pred_check_branch
    %4615 = sbr.rel (0) target = $region21
  $region20: #{_lambda_.1} parent=0 // pred_region
    _
  $region21: #{_lambda_.1} parent=0 // pred_fallthru
    _

</llo_original>
